<compile_context>
chip_gen: v7x
topology: tpu7x:2x2x1
jax: 0.10.0
libtpu: 0.0.40
codegen_flags: <defaults>
</compile_context>

<pallas_src>
import functools
import math

import numpy as np

import jax
import jax.numpy as jnp
from jax.experimental import pallas as pl
from jax.experimental.pallas import tpu as pltpu


# -----------------------------------------------------------------------------
# Fused kernel.
#   x_ref        : (R, L0)        f32   input, channels padded, batch folded
#   ts_ref       : (2R, 3*(2S+1)) f32   per-row depthwise tap scales per step
#   sh_ref       : (64, 2S+3)     f32   per-row shift per step (+ head, fc)
#   pwc1_ref     : (R, R)         bf16  conv1 pointwise (bn1 folded)
#   pwin_ref     : (S, 2R, 2R)    bf16  stage input-node pair pointwise
#                                       (bn + sigmoid merge-mix folded)
#   pwm_ref      : (S, R, 2R)     bf16  stage merge-node pair pointwise
#                                       (bn + output averaging folded)
#   pwh_ref      : (N*32, R)      bf16  head 1x1 conv (bn2 folded)
#   pwfc_ref     : (N*ncls, N*32) bf16  fc
#   tap refs     : (3L, L/2)      bf16  stride-2 tap-selection matrices
#   out_ref      : (N*ncls, 1)    f32
# -----------------------------------------------------------------------------
def _fused_kernel(x_ref, ts_ref, sh_ref, pwc1_ref, pwin_ref, pwm_ref,
                  pwh_ref, pwfc_ref, *rest, r, n_stages, head_rows, out_rows):
    tap_refs = rest[:n_stages + 1]
    out_ref = rest[n_stages + 1]

    ts = ts_ref[...]                         # (2R, 3*(2S+1)) f32
    sh = sh_ref[...]                         # (64, 2S+3)     f32

    def tap_scales(blk, rows):
        c = 3 * blk
        return (ts[:rows, c:c + 1], ts[:rows, c + 1:c + 2], ts[:rows, c + 2:c + 3])

    def shift_col(col, rows):
        return sh[:rows, col:col + 1]

    def stride2_dw(a, blk, t_ref):
        # Depthwise conv k=3, stride 2, pad 1 as ONE folded-tap MXU matmul:
        # concat the three per-row-scaled copies along lanes and hit the
        # precomputed (3L, Lout) 0/1 selection matrix.
        rows = a.shape[0]
        s0, s1, s2 = tap_scales(blk, rows)
        a3 = jnp.concatenate([(a * s0).astype(jnp.bfloat16),
                              (a * s1).astype(jnp.bfloat16),
                              (a * s2).astype(jnp.bfloat16)], axis=1)
        return jnp.dot(a3, t_ref[...], preferred_element_type=jnp.float32)

    def stride1_dw(a, blk):
        # Depthwise conv k=3, stride 1, pad 1 via lane shifts (VPU/XLU only,
        # boundary zeros from the explicit zero column) — no MXU ops.
        rows, l = a.shape
        s0, s1, s2 = tap_scales(blk, rows)
        zero = jnp.zeros((rows, 1), a.dtype)
        left = jnp.concatenate([zero, a[:, :l - 1]], axis=1)    # x[j-1]
        right = jnp.concatenate([a[:, 1:], zero], axis=1)       # x[j+1]
        return a * s1 + left * s0 + right * s2

    # ---- conv1 + bn1 (stride 2, no preceding ReLU) ----
    dw = stride2_dw(x_ref[...], 0, tap_refs[0])
    a = jnp.dot(pwc1_ref[...], dw.astype(jnp.bfloat16),
                preferred_element_type=jnp.float32) + shift_col(0, r)

    # ---- 5 random-wired stages (fixed 2-input / 2-merge topology) ----
    for s in range(n_stages):
        ar = jnp.maximum(a, 0.0)
        ar2 = jnp.concatenate([ar, ar], axis=0)                  # (2R, L) shared input
        # both input nodes in ONE tap matmul + ONE pointwise matmul
        dwi = stride2_dw(ar2, 1 + 2 * s, tap_refs[1 + s])        # (2R, L/2)
        z = jnp.dot(pwin_ref[s], dwi.astype(jnp.bfloat16),
                    preferred_element_type=jnp.float32) + shift_col(1 + 2 * s, 2 * r)
        # z already contains the sigmoid(mean_weight)-mixed merge-node inputs
        zr = jnp.maximum(z, 0.0)
        dwm = stride1_dw(zr, 2 + 2 * s)                          # lane shifts, no MXU
        # both merge nodes + output averaging in ONE (R, 2R) pointwise matmul
        a = jnp.dot(pwm_ref[s], dwm.astype(jnp.bfloat16),
                    preferred_element_type=jnp.float32) + shift_col(2 + 2 * s, r)

    # ---- head: ReLU -> 1x1 conv (+bn2 folded) -> ReLU -> AvgPool1d(1,1)
    #      (identity) -> AdaptiveMaxPool1d(1) -> FC ----
    h = jnp.maximum(a, 0.0)
    y = jnp.dot(pwh_ref[...], h.astype(jnp.bfloat16),
                preferred_element_type=jnp.float32) + shift_col(2 * n_stages + 1, head_rows)
    y = jnp.maximum(y, 0.0)
    pooled = jnp.max(y, axis=1, keepdims=True)                   # max over length (lanes)
    out_ref[...] = jnp.dot(pwfc_ref[...], pooled.astype(jnp.bfloat16),
                           preferred_element_type=jnp.float32) \
        + shift_col(2 * n_stages + 2, out_rows)


# -----------------------------------------------------------------------------
# Wrapper: one pallas_call for the whole network.
# -----------------------------------------------------------------------------
def cnn_forward(packed, x):
    """x: (N, 1, L) exactly as the PyTorch module would receive it (NCL)."""
    n, c_in, l0 = x.shape
    n_stages = packed['pw_in'].shape[0]
    r = packed['pw_in'].shape[1] // 2
    cp = r // n
    head_rows = packed['pw_head'].shape[0]
    out_rows = packed['pw_fc'].shape[0]
    ncls = out_rows // n

    # Embed input channels into the padded (N*Cp, L) row layout (channels x
    # batch on sublanes, length on lanes).  Padded rows/weights stay zero.
    x_rows = jnp.pad(x.astype(jnp.float32),
                     ((0, 0), (0, cp - c_in), (0, 0))).reshape(n * cp, l0)

    dense = [x_rows, packed['tap_scales'], packed['shifts'],
             packed['pw_c1'], packed['pw_in'], packed['pw_m'],
             packed['pw_head'], packed['pw_fc'], *packed['taps']]

    def full_spec(shape):
        nd = len(shape)
        return pl.BlockSpec(shape, lambda i, _nd=nd: (0,) * _nd)

    kernel = functools.partial(_fused_kernel, r=r, n_stages=n_stages,
                               head_rows=head_rows, out_rows=out_rows)

    out = pl.pallas_call(
        kernel,
        out_shape=jax.ShapeDtypeStruct((out_rows, 1), jnp.float32),
        grid=(1,),
        in_specs=[full_spec(a.shape) for a in dense],
        out_specs=full_spec((out_rows, 1)),
        compiler_params=pltpu.CompilerParams(
            dimension_semantics=("arbitrary",),
            # Total resident footprint is ~1 MB (taps ~0.4 MB bf16 + params +
            # activations); 32 MiB leaves ample headroom and is <= the scoped
            # default on v6e/v7x and < physical VMEM on every generation.
            vmem_limit_bytes=32 * 1024 * 1024),
    )(*dense)
    return out.reshape(n, ncls)


# -----------------------------------------------------------------------------
# Parameter init + packing (done once, outside the forward pass).
# -----------------------------------------------------------------------------
class KeyGen:
    def __init__(self, seed):
        self._key = jax.random.PRNGKey(seed)

    def __call__(self):
        self._key, sub = jax.random.split(self._key)
        return sub


def _make_tap_matrix(l, stride=2):
    # T[k*L + i, j] = 1 iff i == stride*j + k - 1 (Conv1d k=3, pad=1 zero pad).
    lout = (l - 1) // stride + 1
    i = np.arange(l)[:, None]
    j = np.arange(lout)[None, :]
    blocks = [(i == stride * j + k - 1).astype(np.float32) for k in range(3)]
    return jnp.asarray(np.concatenate(blocks, axis=0), dtype=jnp.bfloat16)


def init_and_pack_params(seed, channels, num_classes, n_batch, length, n_stages=5):
    kg = KeyGen(seed)
    eps = 1e-5
    cp = channels                                   # padded channel width
    r = n_batch * cp
    eye_n = jnp.eye(n_batch, dtype=jnp.float32)

    def raw_triplet(cin, cout):
        return dict(
            dw_w=0.3 * jax.random.normal(kg(), (3, cin), jnp.float32),
            dw_b=0.1 * jax.random.normal(kg(), (cin,), jnp.float32),
            pw_w=(1.0 / math.sqrt(cin))
                 * jax.random.normal(kg(), (cin, cout), jnp.float32),
            pw_b=0.1 * jax.random.normal(kg(), (cout,), jnp.float32),
            gamma=1.0 + 0.1 * jax.random.normal(kg(), (cout,), jnp.float32),
            beta=0.1 * jax.random.normal(kg(), (cout,), jnp.float32),
        )

    def eff_triplet(cin, cout):
        # Fold dw bias, pw bias and eval-mode BN into (pointwise, shift, taps),
        # padded to Cp channels and batch-folded with kron(I_N, .).
        p = raw_triplet(cin, cout)
        scale = p['gamma'] / jnp.sqrt(jnp.float32(1.0 + eps))     # BN: mean 0, var 1
        pc = jnp.pad(scale[:, None] * p['pw_w'].T,
                     ((0, cp - cout), (0, cp - cin)))
        pw = jnp.kron(eye_n, pc)                                  # (r, r) block-diag
        hc = scale * (p['pw_w'].T @ p['dw_b'] + p['pw_b']) + p['beta']
        h = jnp.tile(jnp.pad(hc, (0, cp - cout)), (n_batch,))     # (r,)
        sc = jnp.pad(p['dw_w'].T, ((0, cp - cin), (0, 0)))        # (cp, 3)
        s = jnp.tile(sc, (n_batch, 1))                            # (r, 3)
        return pw, h, s

    # conv1 + bn1
    p1_pw, p1_sh, p1_ts = eff_triplet(1, channels // 2)

    rows_total = max(2 * r, n_batch * 32, n_batch * num_classes)

    def col(v):
        return jnp.pad(v, (0, rows_total - v.shape[0]))[:, None]

    ts_blocks = [jnp.pad(p1_ts, ((0, r), (0, 0)))]                # block 0: conv1
    sh_cols = [col(p1_sh)]
    pw_in, pw_m = [], []

    for s in range(n_stages):
        cin_in = channels // 2 if s == 0 else channels
        pi0, hi0, si0 = eff_triplet(cin_in, channels)             # input node 0
        pi1, hi1, si1 = eff_triplet(cin_in, channels)             # input node 1
        qm0, gm0, sm0 = eff_triplet(channels, channels)           # merge node 0
        qm1, gm1, sm1 = eff_triplet(channels, channels)           # merge node 1
        # sigmoid(mean_weight), mean_weight initialised to ones (as in PyTorch).
        mw = jax.nn.sigmoid(jnp.ones((2, 2), jnp.float32))        # [merge, parent]
        # Fold the merge-node weighted sum (linear, pre-ReLU) into the stacked
        # input-node pointwise.
        top = jnp.concatenate([mw[0, 0] * pi0, mw[0, 1] * pi1], axis=1)
        bot = jnp.concatenate([mw[1, 0] * pi0, mw[1, 1] * pi1], axis=1)
        pw_in.append(jnp.concatenate([top, bot], axis=0))         # (2r, 2r)
        sh_cols.append(col(jnp.concatenate([mw[0, 0] * hi0 + mw[0, 1] * hi1,
                                            mw[1, 0] * hi0 + mw[1, 1] * hi1])))
        ts_blocks.append(jnp.concatenate([si0, si1], axis=0))     # (2r, 3)
        # Fold the output-node averaging (linear, pre-ReLU) into the stacked
        # merge-node pointwise.
        pw_m.append(0.5 * jnp.concatenate([qm0, qm1], axis=1))    # (r, 2r)
        sh_cols.append(col(0.5 * (gm0 + gm1)))
        ts_blocks.append(jnp.concatenate([sm0, sm1], axis=0))

    # Head: 1x1 conv (C->32) with bn2 folded, then fc(32 -> num_classes).
    conv_w = (1.0 / math.sqrt(channels)) * jax.random.normal(
        kg(), (channels, 32), jnp.float32)
    conv_b = 0.1 * jax.random.normal(kg(), (32,), jnp.float32)
    gamma2 = 1.0 + 0.1 * jax.random.normal(kg(), (32,), jnp.float32)
    beta2 = 0.1 * jax.random.normal(kg(), (32,), jnp.float32)
    scale2 = gamma2 / jnp.sqrt(jnp.float32(1.0 + eps))
    pw_head = jnp.kron(eye_n, scale2[:, None] * conv_w.T)         # (n*32, r)
    sh_cols.append(col(jnp.tile(scale2 * conv_b + beta2, (n_batch,))))
    fc_w = (1.0 / math.sqrt(32)) * jax.random.normal(
        kg(), (32, num_classes), jnp.float32)
    fc_b = 0.1 * jax.random.normal(kg(), (num_classes,), jnp.float32)
    pw_fc = jnp.kron(eye_n, fc_w.T)                               # (n*ncls, n*32)
    sh_cols.append(col(jnp.tile(fc_b, (n_batch,))))

    # Precomputed stride-2 tap-selection matrices (bf16, lane-dense).
    taps, l = [], length
    for _ in range(n_stages + 1):
        taps.append(_make_tap_matrix(l))
        l = (l - 1) // 2 + 1

    bf16 = jnp.bfloat16
    return dict(
        tap_scales=jnp.concatenate(ts_blocks, axis=1),            # (2r, 3*(2S+1)) f32
        shifts=jnp.concatenate(sh_cols, axis=1),                  # (64, 2S+3)     f32
        pw_c1=p1_pw.astype(bf16),                                 # (r, r)
        pw_in=jnp.stack(pw_in).astype(bf16),                      # (S, 2r, 2r)
        pw_m=jnp.stack(pw_m).astype(bf16),                        # (S, r, 2r)
        pw_head=pw_head.astype(bf16),                             # (n*32, r)
        pw_fc=pw_fc.astype(bf16),                                 # (n*ncls, n*32)
        taps=tuple(taps),
    )


if __name__ == "__main__":
    N, L, CHANNELS, NUM_CLASSES = 2, 256, 8, 3
    x = jax.random.normal(jax.random.PRNGKey(0), (N, 1, L), jnp.float32)
    packed = init_and_pack_params(seed=0, channels=CHANNELS,
                                  num_classes=NUM_CLASSES, n_batch=N, length=L)

    out = jax.jit(cnn_forward)(packed, x)
    out = jax.block_until_ready(out)
    assert out.shape == (N, NUM_CLASSES), out.shape
    assert bool(jnp.all(jnp.isfinite(out)))
    print("KERNEL_OK")
</pallas_src>

<mosaic_0001>
module attributes {stable_mosaic.version = 11 : i64} {
  func.func @_fused_kernel(%arg0: i32, %arg1: memref<16x256xf32, #tpu.memory_space<vmem>>, %arg2: memref<32x33xf32, #tpu.memory_space<vmem>>, %arg3: memref<64x13xf32, #tpu.memory_space<vmem>>, %arg4: memref<16x16xbf16, #tpu.memory_space<vmem>>, %arg5: memref<5x32x32xbf16, #tpu.memory_space<vmem>>, %arg6: memref<5x16x32xbf16, #tpu.memory_space<vmem>>, %arg7: memref<64x16xbf16, #tpu.memory_space<vmem>>, %arg8: memref<6x64xbf16, #tpu.memory_space<vmem>>, %arg9: memref<768x128xbf16, #tpu.memory_space<vmem>>, %arg10: memref<384x64xbf16, #tpu.memory_space<vmem>>, %arg11: memref<192x32xbf16, #tpu.memory_space<vmem>>, %arg12: memref<96x16xbf16, #tpu.memory_space<vmem>>, %arg13: memref<48x8xbf16, #tpu.memory_space<vmem>>, %arg14: memref<24x4xbf16, #tpu.memory_space<vmem>>, %arg15: memref<6x1xf32, #tpu.memory_space<vmem>>) attributes {dimension_semantics = [#tpu.dimension_semantics<arbitrary>], iteration_bounds = array<i64: 1>, scalar_prefetch = 0 : i64, scratch_operands = 0 : i64, tpu.core_type = #tpu.core_type<tc>, window_params = [{pipeline_mode = #tpu.pipeline_mode<synchronous>, transform_indices = @transform_0, window_bounds = array<i64: 16, 256>}, {pipeline_mode = #tpu.pipeline_mode<synchronous>, transform_indices = @transform_1, window_bounds = array<i64: 32, 33>}, {pipeline_mode = #tpu.pipeline_mode<synchronous>, transform_indices = @transform_2, window_bounds = array<i64: 64, 13>}, {pipeline_mode = #tpu.pipeline_mode<synchronous>, transform_indices = @transform_3, window_bounds = array<i64: 16, 16>}, {pipeline_mode = #tpu.pipeline_mode<synchronous>, transform_indices = @transform_4, window_bounds = array<i64: 5, 32, 32>}, {pipeline_mode = #tpu.pipeline_mode<synchronous>, transform_indices = @transform_5, window_bounds = array<i64: 5, 16, 32>}, {pipeline_mode = #tpu.pipeline_mode<synchronous>, transform_indices = @transform_6, window_bounds = array<i64: 64, 16>}, {pipeline_mode = #tpu.pipeline_mode<synchronous>, transform_indices = @transform_7, window_bounds = array<i64: 6, 64>}, {pipeline_mode = #tpu.pipeline_mode<synchronous>, transform_indices = @transform_8, window_bounds = array<i64: 768, 128>}, {pipeline_mode = #tpu.pipeline_mode<synchronous>, transform_indices = @transform_9, window_bounds = array<i64: 384, 64>}, {pipeline_mode = #tpu.pipeline_mode<synchronous>, transform_indices = @transform_10, window_bounds = array<i64: 192, 32>}, {pipeline_mode = #tpu.pipeline_mode<synchronous>, transform_indices = @transform_11, window_bounds = array<i64: 96, 16>}, {pipeline_mode = #tpu.pipeline_mode<synchronous>, transform_indices = @transform_12, window_bounds = array<i64: 48, 8>}, {pipeline_mode = #tpu.pipeline_mode<synchronous>, transform_indices = @transform_13, window_bounds = array<i64: 24, 4>}, {pipeline_mode = #tpu.pipeline_mode<synchronous>, transform_indices = @transform_14, window_bounds = array<i64: 6, 1>}]} {
    %c0 = arith.constant 0 : index
    %c0_0 = arith.constant 0 : index
    %0 = vector.load %arg2[%c0, %c0_0] : memref<32x33xf32, #tpu.memory_space<vmem>>, vector<32x33xf32>
    %c0_1 = arith.constant 0 : index
    %c0_2 = arith.constant 0 : index
    %1 = vector.load %arg3[%c0_1, %c0_2] : memref<64x13xf32, #tpu.memory_space<vmem>>, vector<64x13xf32>
    %c0_3 = arith.constant 0 : index
    %c0_4 = arith.constant 0 : index
    %2 = vector.load %arg1[%c0_3, %c0_4] : memref<16x256xf32, #tpu.memory_space<vmem>>, vector<16x256xf32>
    %3 = vector.extract_strided_slice %0 {offsets = [0, 0], sizes = [16, 1], strides = [1, 1]} : vector<32x33xf32> to vector<16x1xf32>
    %4 = vector.extract_strided_slice %0 {offsets = [0, 1], sizes = [16, 1], strides = [1, 1]} : vector<32x33xf32> to vector<16x1xf32>
    %5 = vector.extract_strided_slice %0 {offsets = [0, 2], sizes = [16, 1], strides = [1, 1]} : vector<32x33xf32> to vector<16x1xf32>
    %6 = vector.broadcast %3 : vector<16x1xf32> to vector<16x256xf32>
    %7 = arith.mulf %2, %6 : vector<16x256xf32>
    %8 = arith.truncf %7 : vector<16x256xf32> to vector<16x256xbf16>
    %9 = vector.broadcast %4 : vector<16x1xf32> to vector<16x256xf32>
    %10 = arith.mulf %2, %9 : vector<16x256xf32>
    %11 = arith.truncf %10 : vector<16x256xf32> to vector<16x256xbf16>
    %12 = vector.broadcast %5 : vector<16x1xf32> to vector<16x256xf32>
    %13 = arith.mulf %2, %12 : vector<16x256xf32>
    %14 = arith.truncf %13 : vector<16x256xf32> to vector<16x256xbf16>
    %15 = tpu.concatenate %8, %11, %14 in 1 : vector<16x256xbf16>, vector<16x256xbf16>, vector<16x256xbf16> -> vector<16x768xbf16>
    %c0_5 = arith.constant 0 : index
    %c0_6 = arith.constant 0 : index
    %16 = vector.load %arg9[%c0_5, %c0_6] : memref<768x128xbf16, #tpu.memory_space<vmem>>, vector<768x128xbf16>
    %cst = arith.constant dense<0.000000e+00> : vector<16x128xf32>
    %17 = tpu.matmul %15, %16, %cst {dimension_numbers = #tpu.dot_dimension_numbers<[1], [0], [0], [1], [0, 0, 1, 1], [], []>} : vector<16x768xbf16>, vector<768x128xbf16>, vector<16x128xf32> -> vector<16x128xf32>
    %c0_7 = arith.constant 0 : index
    %c0_8 = arith.constant 0 : index
    %18 = vector.load %arg4[%c0_7, %c0_8] : memref<16x16xbf16, #tpu.memory_space<vmem>>, vector<16x16xbf16>
    %19 = arith.truncf %17 : vector<16x128xf32> to vector<16x128xbf16>
    %cst_9 = arith.constant dense<0.000000e+00> : vector<16x128xf32>
    %20 = tpu.matmul %18, %19, %cst_9 {dimension_numbers = #tpu.dot_dimension_numbers<[1], [0], [0], [1], [0, 0, 1, 1], [], []>} : vector<16x16xbf16>, vector<16x128xbf16>, vector<16x128xf32> -> vector<16x128xf32>
    %21 = vector.extract_strided_slice %1 {offsets = [0, 0], sizes = [16, 1], strides = [1, 1]} : vector<64x13xf32> to vector<16x1xf32>
    %22 = vector.broadcast %21 : vector<16x1xf32> to vector<16x128xf32>
    %23 = arith.addf %20, %22 : vector<16x128xf32>
    %cst_10 = arith.constant 0.000000e+00 : f32
    %24 = vector.broadcast %cst_10 : f32 to vector<16x128xf32>
    %25 = arith.maximumf %23, %24 : vector<16x128xf32>
    %26 = tpu.concatenate %25, %25 in 0 : vector<16x128xf32>, vector<16x128xf32> -> vector<32x128xf32>
    %27 = vector.extract_strided_slice %0 {offsets = [0, 3], sizes = [32, 1], strides = [1, 1]} : vector<32x33xf32> to vector<32x1xf32>
    %28 = vector.extract_strided_slice %0 {offsets = [0, 4], sizes = [32, 1], strides = [1, 1]} : vector<32x33xf32> to vector<32x1xf32>
    %29 = vector.extract_strided_slice %0 {offsets = [0, 5], sizes = [32, 1], strides = [1, 1]} : vector<32x33xf32> to vector<32x1xf32>
    %30 = vector.broadcast %27 : vector<32x1xf32> to vector<32x128xf32>
    %31 = arith.mulf %26, %30 : vector<32x128xf32>
    %32 = arith.truncf %31 : vector<32x128xf32> to vector<32x128xbf16>
    %33 = vector.broadcast %28 : vector<32x1xf32> to vector<32x128xf32>
    %34 = arith.mulf %26, %33 : vector<32x128xf32>
    %35 = arith.truncf %34 : vector<32x128xf32> to vector<32x128xbf16>
    %36 = vector.broadcast %29 : vector<32x1xf32> to vector<32x128xf32>
    %37 = arith.mulf %26, %36 : vector<32x128xf32>
    %38 = arith.truncf %37 : vector<32x128xf32> to vector<32x128xbf16>
    %39 = tpu.concatenate %32, %35, %38 in 1 : vector<32x128xbf16>, vector<32x128xbf16>, vector<32x128xbf16> -> vector<32x384xbf16>
    %c0_11 = arith.constant 0 : index
    %c0_12 = arith.constant 0 : index
    %40 = vector.load %arg10[%c0_11, %c0_12] : memref<384x64xbf16, #tpu.memory_space<vmem>>, vector<384x64xbf16>
    %cst_13 = arith.constant dense<0.000000e+00> : vector<32x64xf32>
    %41 = tpu.matmul %39, %40, %cst_13 {dimension_numbers = #tpu.dot_dimension_numbers<[1], [0], [0], [1], [0, 0, 1, 1], [], []>} : vector<32x384xbf16>, vector<384x64xbf16>, vector<32x64xf32> -> vector<32x64xf32>
    %c0_14 = arith.constant 0 : index
    %c0_15 = arith.constant 0 : index
    %c0_16 = arith.constant 0 : index
    %42 = vector.load %arg5[%c0_14, %c0_15, %c0_16] : memref<5x32x32xbf16, #tpu.memory_space<vmem>>, vector<1x32x32xbf16>
    %43 = vector.shape_cast %42 : vector<1x32x32xbf16> to vector<32x32xbf16>
    %44 = arith.truncf %41 : vector<32x64xf32> to vector<32x64xbf16>
    %cst_17 = arith.constant dense<0.000000e+00> : vector<32x64xf32>
    %45 = tpu.matmul %43, %44, %cst_17 {dimension_numbers = #tpu.dot_dimension_numbers<[1], [0], [0], [1], [0, 0, 1, 1], [], []>} : vector<32x32xbf16>, vector<32x64xbf16>, vector<32x64xf32> -> vector<32x64xf32>
    %46 = vector.extract_strided_slice %1 {offsets = [0, 1], sizes = [32, 1], strides = [1, 1]} : vector<64x13xf32> to vector<32x1xf32>
    %47 = vector.broadcast %46 : vector<32x1xf32> to vector<32x64xf32>
    %48 = arith.addf %45, %47 : vector<32x64xf32>
    %cst_18 = arith.constant 0.000000e+00 : f32
    %49 = vector.broadcast %cst_18 : f32 to vector<32x64xf32>
    %50 = arith.maximumf %48, %49 : vector<32x64xf32>
    %51 = vector.extract_strided_slice %0 {offsets = [0, 6], sizes = [32, 1], strides = [1, 1]} : vector<32x33xf32> to vector<32x1xf32>
    %52 = vector.extract_strided_slice %0 {offsets = [0, 7], sizes = [32, 1], strides = [1, 1]} : vector<32x33xf32> to vector<32x1xf32>
    %53 = vector.extract_strided_slice %0 {offsets = [0, 8], sizes = [32, 1], strides = [1, 1]} : vector<32x33xf32> to vector<32x1xf32>
    %cst_19 = arith.constant 0.000000e+00 : f32
    %54 = vector.broadcast %cst_19 : f32 to vector<32x1xf32>
    %55 = vector.extract_strided_slice %50 {offsets = [0, 0], sizes = [32, 63], strides = [1, 1]} : vector<32x64xf32> to vector<32x63xf32>
    %56 = tpu.concatenate %54, %55 in 1 : vector<32x1xf32>, vector<32x63xf32> -> vector<32x64xf32>
    %57 = vector.extract_strided_slice %50 {offsets = [0, 1], sizes = [32, 63], strides = [1, 1]} : vector<32x64xf32> to vector<32x63xf32>
    %58 = tpu.concatenate %57, %54 in 1 : vector<32x63xf32>, vector<32x1xf32> -> vector<32x64xf32>
    %59 = vector.broadcast %52 : vector<32x1xf32> to vector<32x64xf32>
    %60 = arith.mulf %50, %59 : vector<32x64xf32>
    %61 = vector.broadcast %51 : vector<32x1xf32> to vector<32x64xf32>
    %62 = arith.mulf %56, %61 : vector<32x64xf32>
    %63 = arith.addf %60, %62 : vector<32x64xf32>
    %64 = vector.broadcast %53 : vector<32x1xf32> to vector<32x64xf32>
    %65 = arith.mulf %58, %64 : vector<32x64xf32>
    %66 = arith.addf %63, %65 : vector<32x64xf32>
    %c0_20 = arith.constant 0 : index
    %c0_21 = arith.constant 0 : index
    %c0_22 = arith.constant 0 : index
    %67 = vector.load %arg6[%c0_20, %c0_21, %c0_22] : memref<5x16x32xbf16, #tpu.memory_space<vmem>>, vector<1x16x32xbf16>
    %68 = vector.shape_cast %67 : vector<1x16x32xbf16> to vector<16x32xbf16>
    %69 = arith.truncf %66 : vector<32x64xf32> to vector<32x64xbf16>
    %cst_23 = arith.constant dense<0.000000e+00> : vector<16x64xf32>
    %70 = tpu.matmul %68, %69, %cst_23 {dimension_numbers = #tpu.dot_dimension_numbers<[1], [0], [0], [1], [0, 0, 1, 1], [], []>} : vector<16x32xbf16>, vector<32x64xbf16>, vector<16x64xf32> -> vector<16x64xf32>
    %71 = vector.extract_strided_slice %1 {offsets = [0, 2], sizes = [16, 1], strides = [1, 1]} : vector<64x13xf32> to vector<16x1xf32>
    %72 = vector.broadcast %71 : vector<16x1xf32> to vector<16x64xf32>
    %73 = arith.addf %70, %72 : vector<16x64xf32>
    %cst_24 = arith.constant 0.000000e+00 : f32
    %74 = vector.broadcast %cst_24 : f32 to vector<16x64xf32>
    %75 = arith.maximumf %73, %74 : vector<16x64xf32>
    %76 = tpu.concatenate %75, %75 in 0 : vector<16x64xf32>, vector<16x64xf32> -> vector<32x64xf32>
    %77 = vector.extract_strided_slice %0 {offsets = [0, 9], sizes = [32, 1], strides = [1, 1]} : vector<32x33xf32> to vector<32x1xf32>
    %78 = vector.extract_strided_slice %0 {offsets = [0, 10], sizes = [32, 1], strides = [1, 1]} : vector<32x33xf32> to vector<32x1xf32>
    %79 = vector.extract_strided_slice %0 {offsets = [0, 11], sizes = [32, 1], strides = [1, 1]} : vector<32x33xf32> to vector<32x1xf32>
    %80 = vector.broadcast %77 : vector<32x1xf32> to vector<32x64xf32>
    %81 = arith.mulf %76, %80 : vector<32x64xf32>
    %82 = arith.truncf %81 : vector<32x64xf32> to vector<32x64xbf16>
    %83 = vector.broadcast %78 : vector<32x1xf32> to vector<32x64xf32>
    %84 = arith.mulf %76, %83 : vector<32x64xf32>
    %85 = arith.truncf %84 : vector<32x64xf32> to vector<32x64xbf16>
    %86 = vector.broadcast %79 : vector<32x1xf32> to vector<32x64xf32>
    %87 = arith.mulf %76, %86 : vector<32x64xf32>
    %88 = arith.truncf %87 : vector<32x64xf32> to vector<32x64xbf16>
    %89 = tpu.concatenate %82, %85, %88 in 1 : vector<32x64xbf16>, vector<32x64xbf16>, vector<32x64xbf16> -> vector<32x192xbf16>
    %c0_25 = arith.constant 0 : index
    %c0_26 = arith.constant 0 : index
    %90 = vector.load %arg11[%c0_25, %c0_26] : memref<192x32xbf16, #tpu.memory_space<vmem>>, vector<192x32xbf16>
    %cst_27 = arith.constant dense<0.000000e+00> : vector<32x32xf32>
    %91 = tpu.matmul %89, %90, %cst_27 {dimension_numbers = #tpu.dot_dimension_numbers<[1], [0], [0], [1], [0, 0, 1, 1], [], []>} : vector<32x192xbf16>, vector<192x32xbf16>, vector<32x32xf32> -> vector<32x32xf32>
    %c1 = arith.constant 1 : index
    %c0_28 = arith.constant 0 : index
    %c0_29 = arith.constant 0 : index
    %92 = vector.load %arg5[%c1, %c0_28, %c0_29] : memref<5x32x32xbf16, #tpu.memory_space<vmem>>, vector<1x32x32xbf16>
    %93 = vector.shape_cast %92 : vector<1x32x32xbf16> to vector<32x32xbf16>
    %94 = arith.truncf %91 : vector<32x32xf32> to vector<32x32xbf16>
    %cst_30 = arith.constant dense<0.000000e+00> : vector<32x32xf32>
    %95 = tpu.matmul %93, %94, %cst_30 {dimension_numbers = #tpu.dot_dimension_numbers<[1], [0], [0], [1], [0, 0, 1, 1], [], []>} : vector<32x32xbf16>, vector<32x32xbf16>, vector<32x32xf32> -> vector<32x32xf32>
    %96 = vector.extract_strided_slice %1 {offsets = [0, 3], sizes = [32, 1], strides = [1, 1]} : vector<64x13xf32> to vector<32x1xf32>
    %97 = vector.broadcast %96 : vector<32x1xf32> to vector<32x32xf32>
    %98 = arith.addf %95, %97 : vector<32x32xf32>
    %cst_31 = arith.constant 0.000000e+00 : f32
    %99 = vector.broadcast %cst_31 : f32 to vector<32x32xf32>
    %100 = arith.maximumf %98, %99 : vector<32x32xf32>
    %101 = vector.extract_strided_slice %0 {offsets = [0, 12], sizes = [32, 1], strides = [1, 1]} : vector<32x33xf32> to vector<32x1xf32>
    %102 = vector.extract_strided_slice %0 {offsets = [0, 13], sizes = [32, 1], strides = [1, 1]} : vector<32x33xf32> to vector<32x1xf32>
    %103 = vector.extract_strided_slice %0 {offsets = [0, 14], sizes = [32, 1], strides = [1, 1]} : vector<32x33xf32> to vector<32x1xf32>
    %cst_32 = arith.constant 0.000000e+00 : f32
    %104 = vector.broadcast %cst_32 : f32 to vector<32x1xf32>
    %105 = vector.extract_strided_slice %100 {offsets = [0, 0], sizes = [32, 31], strides = [1, 1]} : vector<32x32xf32> to vector<32x31xf32>
    %106 = tpu.concatenate %104, %105 in 1 : vector<32x1xf32>, vector<32x31xf32> -> vector<32x32xf32>
    %107 = vector.extract_strided_slice %100 {offsets = [0, 1], sizes = [32, 31], strides = [1, 1]} : vector<32x32xf32> to vector<32x31xf32>
    %108 = tpu.concatenate %107, %104 in 1 : vector<32x31xf32>, vector<32x1xf32> -> vector<32x32xf32>
    %109 = vector.broadcast %102 : vector<32x1xf32> to vector<32x32xf32>
    %110 = arith.mulf %100, %109 : vector<32x32xf32>
    %111 = vector.broadcast %101 : vector<32x1xf32> to vector<32x32xf32>
    %112 = arith.mulf %106, %111 : vector<32x32xf32>
    %113 = arith.addf %110, %112 : vector<32x32xf32>
    %114 = vector.broadcast %103 : vector<32x1xf32> to vector<32x32xf32>
    %115 = arith.mulf %108, %114 : vector<32x32xf32>
    %116 = arith.addf %113, %115 : vector<32x32xf32>
    %c1_33 = arith.constant 1 : index
    %c0_34 = arith.constant 0 : index
    %c0_35 = arith.constant 0 : index
    %117 = vector.load %arg6[%c1_33, %c0_34, %c0_35] : memref<5x16x32xbf16, #tpu.memory_space<vmem>>, vector<1x16x32xbf16>
    %118 = vector.shape_cast %117 : vector<1x16x32xbf16> to vector<16x32xbf16>
    %119 = arith.truncf %116 : vector<32x32xf32> to vector<32x32xbf16>
    %cst_36 = arith.constant dense<0.000000e+00> : vector<16x32xf32>
    %120 = tpu.matmul %118, %119, %cst_36 {dimension_numbers = #tpu.dot_dimension_numbers<[1], [0], [0], [1], [0, 0, 1, 1], [], []>} : vector<16x32xbf16>, vector<32x32xbf16>, vector<16x32xf32> -> vector<16x32xf32>
    %121 = vector.extract_strided_slice %1 {offsets = [0, 4], sizes = [16, 1], strides = [1, 1]} : vector<64x13xf32> to vector<16x1xf32>
    %122 = vector.broadcast %121 : vector<16x1xf32> to vector<16x32xf32>
    %123 = arith.addf %120, %122 : vector<16x32xf32>
    %cst_37 = arith.constant 0.000000e+00 : f32
    %124 = vector.broadcast %cst_37 : f32 to vector<16x32xf32>
    %125 = arith.maximumf %123, %124 : vector<16x32xf32>
    %126 = tpu.concatenate %125, %125 in 0 : vector<16x32xf32>, vector<16x32xf32> -> vector<32x32xf32>
    %127 = vector.extract_strided_slice %0 {offsets = [0, 15], sizes = [32, 1], strides = [1, 1]} : vector<32x33xf32> to vector<32x1xf32>
    %128 = vector.extract_strided_slice %0 {offsets = [0, 16], sizes = [32, 1], strides = [1, 1]} : vector<32x33xf32> to vector<32x1xf32>
    %129 = vector.extract_strided_slice %0 {offsets = [0, 17], sizes = [32, 1], strides = [1, 1]} : vector<32x33xf32> to vector<32x1xf32>
    %130 = vector.broadcast %127 : vector<32x1xf32> to vector<32x32xf32>
    %131 = arith.mulf %126, %130 : vector<32x32xf32>
    %132 = arith.truncf %131 : vector<32x32xf32> to vector<32x32xbf16>
    %133 = vector.broadcast %128 : vector<32x1xf32> to vector<32x32xf32>
    %134 = arith.mulf %126, %133 : vector<32x32xf32>
    %135 = arith.truncf %134 : vector<32x32xf32> to vector<32x32xbf16>
    %136 = vector.broadcast %129 : vector<32x1xf32> to vector<32x32xf32>
    %137 = arith.mulf %126, %136 : vector<32x32xf32>
    %138 = arith.truncf %137 : vector<32x32xf32> to vector<32x32xbf16>
    %139 = tpu.concatenate %132, %135, %138 in 1 : vector<32x32xbf16>, vector<32x32xbf16>, vector<32x32xbf16> -> vector<32x96xbf16>
    %c0_38 = arith.constant 0 : index
    %c0_39 = arith.constant 0 : index
    %140 = vector.load %arg12[%c0_38, %c0_39] : memref<96x16xbf16, #tpu.memory_space<vmem>>, vector<96x16xbf16>
    %cst_40 = arith.constant dense<0.000000e+00> : vector<32x16xf32>
    %141 = tpu.matmul %139, %140, %cst_40 {dimension_numbers = #tpu.dot_dimension_numbers<[1], [0], [0], [1], [0, 0, 1, 1], [], []>} : vector<32x96xbf16>, vector<96x16xbf16>, vector<32x16xf32> -> vector<32x16xf32>
    %c2 = arith.constant 2 : index
    %c0_41 = arith.constant 0 : index
    %c0_42 = arith.constant 0 : index
    %142 = vector.load %arg5[%c2, %c0_41, %c0_42] : memref<5x32x32xbf16, #tpu.memory_space<vmem>>, vector<1x32x32xbf16>
    %143 = vector.shape_cast %142 : vector<1x32x32xbf16> to vector<32x32xbf16>
    %144 = arith.truncf %141 : vector<32x16xf32> to vector<32x16xbf16>
    %cst_43 = arith.constant dense<0.000000e+00> : vector<32x16xf32>
    %145 = tpu.matmul %143, %144, %cst_43 {dimension_numbers = #tpu.dot_dimension_numbers<[1], [0], [0], [1], [0, 0, 1, 1], [], []>} : vector<32x32xbf16>, vector<32x16xbf16>, vector<32x16xf32> -> vector<32x16xf32>
    %146 = vector.extract_strided_slice %1 {offsets = [0, 5], sizes = [32, 1], strides = [1, 1]} : vector<64x13xf32> to vector<32x1xf32>
    %147 = vector.broadcast %146 : vector<32x1xf32> to vector<32x16xf32>
    %148 = arith.addf %145, %147 : vector<32x16xf32>
    %cst_44 = arith.constant 0.000000e+00 : f32
    %149 = vector.broadcast %cst_44 : f32 to vector<32x16xf32>
    %150 = arith.maximumf %148, %149 : vector<32x16xf32>
    %151 = vector.extract_strided_slice %0 {offsets = [0, 18], sizes = [32, 1], strides = [1, 1]} : vector<32x33xf32> to vector<32x1xf32>
    %152 = vector.extract_strided_slice %0 {offsets = [0, 19], sizes = [32, 1], strides = [1, 1]} : vector<32x33xf32> to vector<32x1xf32>
    %153 = vector.extract_strided_slice %0 {offsets = [0, 20], sizes = [32, 1], strides = [1, 1]} : vector<32x33xf32> to vector<32x1xf32>
    %cst_45 = arith.constant 0.000000e+00 : f32
    %154 = vector.broadcast %cst_45 : f32 to vector<32x1xf32>
    %155 = vector.extract_strided_slice %150 {offsets = [0, 0], sizes = [32, 15], strides = [1, 1]} : vector<32x16xf32> to vector<32x15xf32>
    %156 = tpu.concatenate %154, %155 in 1 : vector<32x1xf32>, vector<32x15xf32> -> vector<32x16xf32>
    %157 = vector.extract_strided_slice %150 {offsets = [0, 1], sizes = [32, 15], strides = [1, 1]} : vector<32x16xf32> to vector<32x15xf32>
    %158 = tpu.concatenate %157, %154 in 1 : vector<32x15xf32>, vector<32x1xf32> -> vector<32x16xf32>
    %159 = vector.broadcast %152 : vector<32x1xf32> to vector<32x16xf32>
    %160 = arith.mulf %150, %159 : vector<32x16xf32>
    %161 = vector.broadcast %151 : vector<32x1xf32> to vector<32x16xf32>
    %162 = arith.mulf %156, %161 : vector<32x16xf32>
    %163 = arith.addf %160, %162 : vector<32x16xf32>
    %164 = vector.broadcast %153 : vector<32x1xf32> to vector<32x16xf32>
    %165 = arith.mulf %158, %164 : vector<32x16xf32>
    %166 = arith.addf %163, %165 : vector<32x16xf32>
    %c2_46 = arith.constant 2 : index
    %c0_47 = arith.constant 0 : index
    %c0_48 = arith.constant 0 : index
    %167 = vector.load %arg6[%c2_46, %c0_47, %c0_48] : memref<5x16x32xbf16, #tpu.memory_space<vmem>>, vector<1x16x32xbf16>
    %168 = vector.shape_cast %167 : vector<1x16x32xbf16> to vector<16x32xbf16>
    %169 = arith.truncf %166 : vector<32x16xf32> to vector<32x16xbf16>
    %cst_49 = arith.constant dense<0.000000e+00> : vector<16x16xf32>
    %170 = tpu.matmul %168, %169, %cst_49 {dimension_numbers = #tpu.dot_dimension_numbers<[1], [0], [0], [1], [0, 0, 1, 1], [], []>} : vector<16x32xbf16>, vector<32x16xbf16>, vector<16x16xf32> -> vector<16x16xf32>
    %171 = vector.extract_strided_slice %1 {offsets = [0, 6], sizes = [16, 1], strides = [1, 1]} : vector<64x13xf32> to vector<16x1xf32>
    %172 = vector.broadcast %171 : vector<16x1xf32> to vector<16x16xf32>
    %173 = arith.addf %170, %172 : vector<16x16xf32>
    %cst_50 = arith.constant 0.000000e+00 : f32
    %174 = vector.broadcast %cst_50 : f32 to vector<16x16xf32>
    %175 = arith.maximumf %173, %174 : vector<16x16xf32>
    %176 = tpu.concatenate %175, %175 in 0 : vector<16x16xf32>, vector<16x16xf32> -> vector<32x16xf32>
    %177 = vector.extract_strided_slice %0 {offsets = [0, 21], sizes = [32, 1], strides = [1, 1]} : vector<32x33xf32> to vector<32x1xf32>
    %178 = vector.extract_strided_slice %0 {offsets = [0, 22], sizes = [32, 1], strides = [1, 1]} : vector<32x33xf32> to vector<32x1xf32>
    %179 = vector.extract_strided_slice %0 {offsets = [0, 23], sizes = [32, 1], strides = [1, 1]} : vector<32x33xf32> to vector<32x1xf32>
    %180 = vector.broadcast %177 : vector<32x1xf32> to vector<32x16xf32>
    %181 = arith.mulf %176, %180 : vector<32x16xf32>
    %182 = arith.truncf %181 : vector<32x16xf32> to vector<32x16xbf16>
    %183 = vector.broadcast %178 : vector<32x1xf32> to vector<32x16xf32>
    %184 = arith.mulf %176, %183 : vector<32x16xf32>
    %185 = arith.truncf %184 : vector<32x16xf32> to vector<32x16xbf16>
    %186 = vector.broadcast %179 : vector<32x1xf32> to vector<32x16xf32>
    %187 = arith.mulf %176, %186 : vector<32x16xf32>
    %188 = arith.truncf %187 : vector<32x16xf32> to vector<32x16xbf16>
    %189 = tpu.concatenate %182, %185, %188 in 1 : vector<32x16xbf16>, vector<32x16xbf16>, vector<32x16xbf16> -> vector<32x48xbf16>
    %c0_51 = arith.constant 0 : index
    %c0_52 = arith.constant 0 : index
    %190 = vector.load %arg13[%c0_51, %c0_52] : memref<48x8xbf16, #tpu.memory_space<vmem>>, vector<48x8xbf16>
    %cst_53 = arith.constant dense<0.000000e+00> : vector<32x8xf32>
    %191 = tpu.matmul %189, %190, %cst_53 {dimension_numbers = #tpu.dot_dimension_numbers<[1], [0], [0], [1], [0, 0, 1, 1], [], []>} : vector<32x48xbf16>, vector<48x8xbf16>, vector<32x8xf32> -> vector<32x8xf32>
    %c3 = arith.constant 3 : index
    %c0_54 = arith.constant 0 : index
    %c0_55 = arith.constant 0 : index
    %192 = vector.load %arg5[%c3, %c0_54, %c0_55] : memref<5x32x32xbf16, #tpu.memory_space<vmem>>, vector<1x32x32xbf16>
    %193 = vector.shape_cast %192 : vector<1x32x32xbf16> to vector<32x32xbf16>
    %194 = arith.truncf %191 : vector<32x8xf32> to vector<32x8xbf16>
    %cst_56 = arith.constant dense<0.000000e+00> : vector<32x8xf32>
    %195 = tpu.matmul %193, %194, %cst_56 {dimension_numbers = #tpu.dot_dimension_numbers<[1], [0], [0], [1], [0, 0, 1, 1], [], []>} : vector<32x32xbf16>, vector<32x8xbf16>, vector<32x8xf32> -> vector<32x8xf32>
    %196 = vector.extract_strided_slice %1 {offsets = [0, 7], sizes = [32, 1], strides = [1, 1]} : vector<64x13xf32> to vector<32x1xf32>
    %197 = vector.broadcast %196 : vector<32x1xf32> to vector<32x8xf32>
    %198 = arith.addf %195, %197 : vector<32x8xf32>
    %cst_57 = arith.constant 0.000000e+00 : f32
    %199 = vector.broadcast %cst_57 : f32 to vector<32x8xf32>
    %200 = arith.maximumf %198, %199 : vector<32x8xf32>
    %201 = vector.extract_strided_slice %0 {offsets = [0, 24], sizes = [32, 1], strides = [1, 1]} : vector<32x33xf32> to vector<32x1xf32>
    %202 = vector.extract_strided_slice %0 {offsets = [0, 25], sizes = [32, 1], strides = [1, 1]} : vector<32x33xf32> to vector<32x1xf32>
    %203 = vector.extract_strided_slice %0 {offsets = [0, 26], sizes = [32, 1], strides = [1, 1]} : vector<32x33xf32> to vector<32x1xf32>
    %cst_58 = arith.constant 0.000000e+00 : f32
    %204 = vector.broadcast %cst_58 : f32 to vector<32x1xf32>
    %205 = vector.extract_strided_slice %200 {offsets = [0, 0], sizes = [32, 7], strides = [1, 1]} : vector<32x8xf32> to vector<32x7xf32>
    %206 = tpu.concatenate %204, %205 in 1 : vector<32x1xf32>, vector<32x7xf32> -> vector<32x8xf32>
    %207 = vector.extract_strided_slice %200 {offsets = [0, 1], sizes = [32, 7], strides = [1, 1]} : vector<32x8xf32> to vector<32x7xf32>
    %208 = tpu.concatenate %207, %204 in 1 : vector<32x7xf32>, vector<32x1xf32> -> vector<32x8xf32>
    %209 = vector.broadcast %202 : vector<32x1xf32> to vector<32x8xf32>
    %210 = arith.mulf %200, %209 : vector<32x8xf32>
    %211 = vector.broadcast %201 : vector<32x1xf32> to vector<32x8xf32>
    %212 = arith.mulf %206, %211 : vector<32x8xf32>
    %213 = arith.addf %210, %212 : vector<32x8xf32>
    %214 = vector.broadcast %203 : vector<32x1xf32> to vector<32x8xf32>
    %215 = arith.mulf %208, %214 : vector<32x8xf32>
    %216 = arith.addf %213, %215 : vector<32x8xf32>
    %c3_59 = arith.constant 3 : index
    %c0_60 = arith.constant 0 : index
    %c0_61 = arith.constant 0 : index
    %217 = vector.load %arg6[%c3_59, %c0_60, %c0_61] : memref<5x16x32xbf16, #tpu.memory_space<vmem>>, vector<1x16x32xbf16>
    %218 = vector.shape_cast %217 : vector<1x16x32xbf16> to vector<16x32xbf16>
    %219 = arith.truncf %216 : vector<32x8xf32> to vector<32x8xbf16>
    %cst_62 = arith.constant dense<0.000000e+00> : vector<16x8xf32>
    %220 = tpu.matmul %218, %219, %cst_62 {dimension_numbers = #tpu.dot_dimension_numbers<[1], [0], [0], [1], [0, 0, 1, 1], [], []>} : vector<16x32xbf16>, vector<32x8xbf16>, vector<16x8xf32> -> vector<16x8xf32>
    %221 = vector.extract_strided_slice %1 {offsets = [0, 8], sizes = [16, 1], strides = [1, 1]} : vector<64x13xf32> to vector<16x1xf32>
    %222 = vector.broadcast %221 : vector<16x1xf32> to vector<16x8xf32>
    %223 = arith.addf %220, %222 : vector<16x8xf32>
    %cst_63 = arith.constant 0.000000e+00 : f32
    %224 = vector.broadcast %cst_63 : f32 to vector<16x8xf32>
    %225 = arith.maximumf %223, %224 : vector<16x8xf32>
    %226 = tpu.concatenate %225, %225 in 0 : vector<16x8xf32>, vector<16x8xf32> -> vector<32x8xf32>
    %227 = vector.extract_strided_slice %0 {offsets = [0, 27], sizes = [32, 1], strides = [1, 1]} : vector<32x33xf32> to vector<32x1xf32>
    %228 = vector.extract_strided_slice %0 {offsets = [0, 28], sizes = [32, 1], strides = [1, 1]} : vector<32x33xf32> to vector<32x1xf32>
    %229 = vector.extract_strided_slice %0 {offsets = [0, 29], sizes = [32, 1], strides = [1, 1]} : vector<32x33xf32> to vector<32x1xf32>
    %230 = vector.broadcast %227 : vector<32x1xf32> to vector<32x8xf32>
    %231 = arith.mulf %226, %230 : vector<32x8xf32>
    %232 = arith.truncf %231 : vector<32x8xf32> to vector<32x8xbf16>
    %233 = vector.broadcast %228 : vector<32x1xf32> to vector<32x8xf32>
    %234 = arith.mulf %226, %233 : vector<32x8xf32>
    %235 = arith.truncf %234 : vector<32x8xf32> to vector<32x8xbf16>
    %236 = vector.broadcast %229 : vector<32x1xf32> to vector<32x8xf32>
    %237 = arith.mulf %226, %236 : vector<32x8xf32>
    %238 = arith.truncf %237 : vector<32x8xf32> to vector<32x8xbf16>
    %239 = tpu.concatenate %232, %235, %238 in 1 : vector<32x8xbf16>, vector<32x8xbf16>, vector<32x8xbf16> -> vector<32x24xbf16>
    %c0_64 = arith.constant 0 : index
    %c0_65 = arith.constant 0 : index
    %240 = vector.load %arg14[%c0_64, %c0_65] : memref<24x4xbf16, #tpu.memory_space<vmem>>, vector<24x4xbf16>
    %cst_66 = arith.constant dense<0.000000e+00> : vector<32x4xf32>
    %241 = tpu.matmul %239, %240, %cst_66 {dimension_numbers = #tpu.dot_dimension_numbers<[1], [0], [0], [1], [0, 0, 1, 1], [], []>} : vector<32x24xbf16>, vector<24x4xbf16>, vector<32x4xf32> -> vector<32x4xf32>
    %c4 = arith.constant 4 : index
    %c0_67 = arith.constant 0 : index
    %c0_68 = arith.constant 0 : index
    %242 = vector.load %arg5[%c4, %c0_67, %c0_68] : memref<5x32x32xbf16, #tpu.memory_space<vmem>>, vector<1x32x32xbf16>
    %243 = vector.shape_cast %242 : vector<1x32x32xbf16> to vector<32x32xbf16>
    %244 = arith.truncf %241 : vector<32x4xf32> to vector<32x4xbf16>
    %cst_69 = arith.constant dense<0.000000e+00> : vector<32x4xf32>
    %245 = tpu.matmul %243, %244, %cst_69 {dimension_numbers = #tpu.dot_dimension_numbers<[1], [0], [0], [1], [0, 0, 1, 1], [], []>} : vector<32x32xbf16>, vector<32x4xbf16>, vector<32x4xf32> -> vector<32x4xf32>
    %246 = vector.extract_strided_slice %1 {offsets = [0, 9], sizes = [32, 1], strides = [1, 1]} : vector<64x13xf32> to vector<32x1xf32>
    %247 = vector.broadcast %246 : vector<32x1xf32> to vector<32x4xf32>
    %248 = arith.addf %245, %247 : vector<32x4xf32>
    %cst_70 = arith.constant 0.000000e+00 : f32
    %249 = vector.broadcast %cst_70 : f32 to vector<32x4xf32>
    %250 = arith.maximumf %248, %249 : vector<32x4xf32>
    %251 = vector.extract_strided_slice %0 {offsets = [0, 30], sizes = [32, 1], strides = [1, 1]} : vector<32x33xf32> to vector<32x1xf32>
    %252 = vector.extract_strided_slice %0 {offsets = [0, 31], sizes = [32, 1], strides = [1, 1]} : vector<32x33xf32> to vector<32x1xf32>
    %253 = vector.extract_strided_slice %0 {offsets = [0, 32], sizes = [32, 1], strides = [1, 1]} : vector<32x33xf32> to vector<32x1xf32>
    %cst_71 = arith.constant 0.000000e+00 : f32
    %254 = vector.broadcast %cst_71 : f32 to vector<32x1xf32>
    %255 = vector.extract_strided_slice %250 {offsets = [0, 0], sizes = [32, 3], strides = [1, 1]} : vector<32x4xf32> to vector<32x3xf32>
    %256 = tpu.concatenate %254, %255 in 1 : vector<32x1xf32>, vector<32x3xf32> -> vector<32x4xf32>
    %257 = vector.extract_strided_slice %250 {offsets = [0, 1], sizes = [32, 3], strides = [1, 1]} : vector<32x4xf32> to vector<32x3xf32>
    %258 = tpu.concatenate %257, %254 in 1 : vector<32x3xf32>, vector<32x1xf32> -> vector<32x4xf32>
    %259 = vector.broadcast %252 : vector<32x1xf32> to vector<32x4xf32>
    %260 = arith.mulf %250, %259 : vector<32x4xf32>
    %261 = vector.broadcast %251 : vector<32x1xf32> to vector<32x4xf32>
    %262 = arith.mulf %256, %261 : vector<32x4xf32>
    %263 = arith.addf %260, %262 : vector<32x4xf32>
    %264 = vector.broadcast %253 : vector<32x1xf32> to vector<32x4xf32>
    %265 = arith.mulf %258, %264 : vector<32x4xf32>
    %266 = arith.addf %263, %265 : vector<32x4xf32>
    %c4_72 = arith.constant 4 : index
    %c0_73 = arith.constant 0 : index
    %c0_74 = arith.constant 0 : index
    %267 = vector.load %arg6[%c4_72, %c0_73, %c0_74] : memref<5x16x32xbf16, #tpu.memory_space<vmem>>, vector<1x16x32xbf16>
    %268 = vector.shape_cast %267 : vector<1x16x32xbf16> to vector<16x32xbf16>
    %269 = arith.truncf %266 : vector<32x4xf32> to vector<32x4xbf16>
    %cst_75 = arith.constant dense<0.000000e+00> : vector<16x4xf32>
    %270 = tpu.matmul %268, %269, %cst_75 {dimension_numbers = #tpu.dot_dimension_numbers<[1], [0], [0], [1], [0, 0, 1, 1], [], []>} : vector<16x32xbf16>, vector<32x4xbf16>, vector<16x4xf32> -> vector<16x4xf32>
    %271 = vector.extract_strided_slice %1 {offsets = [0, 10], sizes = [16, 1], strides = [1, 1]} : vector<64x13xf32> to vector<16x1xf32>
    %272 = vector.broadcast %271 : vector<16x1xf32> to vector<16x4xf32>
    %273 = arith.addf %270, %272 : vector<16x4xf32>
    %cst_76 = arith.constant 0.000000e+00 : f32
    %274 = vector.broadcast %cst_76 : f32 to vector<16x4xf32>
    %275 = arith.maximumf %273, %274 : vector<16x4xf32>
    %c0_77 = arith.constant 0 : index
    %c0_78 = arith.constant 0 : index
    %276 = vector.load %arg7[%c0_77, %c0_78] : memref<64x16xbf16, #tpu.memory_space<vmem>>, vector<64x16xbf16>
    %277 = arith.truncf %275 : vector<16x4xf32> to vector<16x4xbf16>
    %cst_79 = arith.constant dense<0.000000e+00> : vector<64x4xf32>
    %278 = tpu.matmul %276, %277, %cst_79 {dimension_numbers = #tpu.dot_dimension_numbers<[1], [0], [0], [1], [0, 0, 1, 1], [], []>} : vector<64x16xbf16>, vector<16x4xbf16>, vector<64x4xf32> -> vector<64x4xf32>
    %279 = vector.extract_strided_slice %1 {offsets = [0, 11], sizes = [64, 1], strides = [1, 1]} : vector<64x13xf32> to vector<64x1xf32>
    %280 = vector.broadcast %279 : vector<64x1xf32> to vector<64x4xf32>
    %281 = arith.addf %278, %280 : vector<64x4xf32>
    %cst_80 = arith.constant 0.000000e+00 : f32
    %282 = vector.broadcast %cst_80 : f32 to vector<64x4xf32>
    %283 = arith.maximumf %281, %282 : vector<64x4xf32>
    %cst_81 = arith.constant dense<0xFF800000> : vector<64xf32>
    %284 = vector.multi_reduction <maximumf>, %283, %cst_81 [1] : vector<64x4xf32> to vector<64xf32>
    %285 = vector.shape_cast %284 : vector<64xf32> to vector<64x1xf32>
    %c0_82 = arith.constant 0 : index
    %c0_83 = arith.constant 0 : index
    %286 = vector.load %arg8[%c0_82, %c0_83] : memref<6x64xbf16, #tpu.memory_space<vmem>>, vector<6x64xbf16>
    %287 = arith.truncf %285 : vector<64x1xf32> to vector<64x1xbf16>
    %cst_84 = arith.constant dense<0.000000e+00> : vector<6x1xf32>
    %288 = tpu.matmul %286, %287, %cst_84 {dimension_numbers = #tpu.dot_dimension_numbers<[1], [0], [0], [1], [0, 0, 1, 1], [], []>} : vector<6x64xbf16>, vector<64x1xbf16>, vector<6x1xf32> -> vector<6x1xf32>
    %289 = vector.extract_strided_slice %1 {offsets = [0, 12], sizes = [6, 1], strides = [1, 1]} : vector<64x13xf32> to vector<6x1xf32>
    %290 = arith.addf %288, %289 : vector<6x1xf32>
    %c0_85 = arith.constant 0 : index
    %c0_86 = arith.constant 0 : index
    %291 = vector.load %arg15[%c0_85, %c0_86] : memref<6x1xf32, #tpu.memory_space<vmem>>, vector<6x1xf32>
    tpu.vector_store %arg15[%c0_85, %c0_86], %290 {strides = array<i32>} : memref<6x1xf32, #tpu.memory_space<vmem>>, vector<6x1xf32>,
    return
  }
  func.func @transform_0(%arg0: i32) -> (i32, i32) {
    %c0_i32 = arith.constant 0 : i32
    %c0_i32_0 = arith.constant 0 : i32
    %c0_i32_1 = arith.constant 0 : i32
    return %c0_i32, %c0_i32_0 : i32, i32
  }
  func.func @transform_1(%arg0: i32) -> (i32, i32) {
    %c0_i32 = arith.constant 0 : i32
    %c0_i32_0 = arith.constant 0 : i32
    %c0_i32_1 = arith.constant 0 : i32
    return %c0_i32, %c0_i32_0 : i32, i32
  }
  func.func @transform_2(%arg0: i32) -> (i32, i32) {
    %c0_i32 = arith.constant 0 : i32
    %c0_i32_0 = arith.constant 0 : i32
    %c0_i32_1 = arith.constant 0 : i32
    return %c0_i32, %c0_i32_0 : i32, i32
  }
  func.func @transform_3(%arg0: i32) -> (i32, i32) {
    %c0_i32 = arith.constant 0 : i32
    %c0_i32_0 = arith.constant 0 : i32
    %c0_i32_1 = arith.constant 0 : i32
    return %c0_i32, %c0_i32_0 : i32, i32
  }
  func.func @transform_4(%arg0: i32) -> (i32, i32, i32) {
    %c0_i32 = arith.constant 0 : i32
    %c0_i32_0 = arith.constant 0 : i32
    %c0_i32_1 = arith.constant 0 : i32
    %c0_i32_2 = arith.constant 0 : i32
    return %c0_i32, %c0_i32_0, %c0_i32_1 : i32, i32, i32
  }
  func.func @transform_5(%arg0: i32) -> (i32, i32, i32) {
    %c0_i32 = arith.constant 0 : i32
    %c0_i32_0 = arith.constant 0 : i32
    %c0_i32_1 = arith.constant 0 : i32
    %c0_i32_2 = arith.constant 0 : i32
    return %c0_i32, %c0_i32_0, %c0_i32_1 : i32, i32, i32
  }
  func.func @transform_6(%arg0: i32) -> (i32, i32) {
    %c0_i32 = arith.constant 0 : i32
    %c0_i32_0 = arith.constant 0 : i32
    %c0_i32_1 = arith.constant 0 : i32
    return %c0_i32, %c0_i32_0 : i32, i32
  }
  func.func @transform_7(%arg0: i32) -> (i32, i32) {
    %c0_i32 = arith.constant 0 : i32
    %c0_i32_0 = arith.constant 0 : i32
    %c0_i32_1 = arith.constant 0 : i32
    return %c0_i32, %c0_i32_0 : i32, i32
  }
  func.func @transform_8(%arg0: i32) -> (i32, i32) {
    %c0_i32 = arith.constant 0 : i32
    %c0_i32_0 = arith.constant 0 : i32
    %c0_i32_1 = arith.constant 0 : i32
    return %c0_i32, %c0_i32_0 : i32, i32
  }
  func.func @transform_9(%arg0: i32) -> (i32, i32) {
    %c0_i32 = arith.constant 0 : i32
    %c0_i32_0 = arith.constant 0 : i32
    %c0_i32_1 = arith.constant 0 : i32
    return %c0_i32, %c0_i32_0 : i32, i32
  }
  func.func @transform_10(%arg0: i32) -> (i32, i32) {
    %c0_i32 = arith.constant 0 : i32
    %c0_i32_0 = arith.constant 0 : i32
    %c0_i32_1 = arith.constant 0 : i32
    return %c0_i32, %c0_i32_0 : i32, i32
  }
  func.func @transform_11(%arg0: i32) -> (i32, i32) {
    %c0_i32 = arith.constant 0 : i32
    %c0_i32_0 = arith.constant 0 : i32
    %c0_i32_1 = arith.constant 0 : i32
    return %c0_i32, %c0_i32_0 : i32, i32
  }
  func.func @transform_12(%arg0: i32) -> (i32, i32) {
    %c0_i32 = arith.constant 0 : i32
    %c0_i32_0 = arith.constant 0 : i32
    %c0_i32_1 = arith.constant 0 : i32
    return %c0_i32, %c0_i32_0 : i32, i32
  }
  func.func @transform_13(%arg0: i32) -> (i32, i32) {
    %c0_i32 = arith.constant 0 : i32
    %c0_i32_0 = arith.constant 0 : i32
    %c0_i32_1 = arith.constant 0 : i32
    return %c0_i32, %c0_i32_0 : i32, i32
  }
  func.func @transform_14(%arg0: i32) -> (i32, i32) {
    %c0_i32 = arith.constant 0 : i32
    %c0_i32_0 = arith.constant 0 : i32
    %c0_i32_1 = arith.constant 0 : i32
    return %c0_i32, %c0_i32_0 : i32, i32
  }
}

</mosaic_0001>

<llo_original>
// kernel: cnn_forward.1
$region0: #{cnn_forward.1}
  #allocation0 [shape = 'u32[]', space=smem, size = 0x4, offset = 0x4, fixed_abs, tag = 'smem constant byte address 0x4 - core index']
  #allocation1 [shape = 'u32[144,128]{1,0:T(1,128)}', space=vmem, size = 0x12000, scoped, tag = 'internal scratch']
  %s0 = inlined_call_operand.vmem [shape: f32[16,256], index: 0, kind: input, shape index: {}]
  %s1 = inlined_call_operand.vmem [shape: f32[32,33], index: 1, kind: input, shape index: {}]
  %s2 = inlined_call_operand.vmem [shape: f32[64,13], index: 2, kind: input, shape index: {}]
  %s3 = inlined_call_operand.vmem [shape: bf16[16,16], index: 3, kind: input, shape index: {}]
  %s4 = inlined_call_operand.vmem [shape: bf16[5,32,32], index: 4, kind: input, shape index: {}]
  %s5 = inlined_call_operand.vmem [shape: bf16[5,16,32], index: 5, kind: input, shape index: {}]
  %s6 = inlined_call_operand.vmem [shape: bf16[64,16], index: 6, kind: input, shape index: {}]
  %s7 = inlined_call_operand.vmem [shape: bf16[6,64], index: 7, kind: input, shape index: {}]
  %s8 = inlined_call_operand.vmem [shape: bf16[768,128], index: 8, kind: input, shape index: {}]
  %s9 = inlined_call_operand.vmem [shape: bf16[384,64], index: 9, kind: input, shape index: {}]
  %s10 = inlined_call_operand.vmem [shape: bf16[192,32], index: 10, kind: input, shape index: {}]
  %s11 = inlined_call_operand.vmem [shape: bf16[96,16], index: 11, kind: input, shape index: {}]
  %s12 = inlined_call_operand.vmem [shape: bf16[48,8], index: 12, kind: input, shape index: {}]
  %s13 = inlined_call_operand.vmem [shape: bf16[24,4], index: 13, kind: input, shape index: {}]
  %s14 = inlined_call_operand.vmem [shape: f32[6,1], index: 14, kind: output, shape index: {}]
  %s15 = sld [smem:[#allocation0]]
  $region66: #{cnn_forward.1} parent=0
    _
  %s17 = ssub.s32 1, %s15
  %s18 = scalar_select 0, %s17, %s15
  // Predicated region
  $region2: #{cnn_forward.1} parent=0 // pred_check
    _
  $region3: #{cnn_forward.1} parent=0 // pred_check_branch
    %20 = sbr.rel (0) target = $region5
  $region4: #{cnn_forward.1} parent=0 // pred_region
    _
  $region5: #{cnn_forward.1} parent=0 // pred_fallthru
    _
  // Predicated region
  $region6: #{cnn_forward.1} parent=0 // pred_check
    _
  $region7: #{cnn_forward.1} parent=0 // pred_check_branch
    %22 = sbr.rel (0) target = $region9
  $region8: #{cnn_forward.1} parent=0 // pred_region
    _
  $region9: #{cnn_forward.1} parent=0 // pred_fallthru
    _
  // Predicated region
  $region10: #{cnn_forward.1} parent=0 // pred_check
    _
  $region11: #{cnn_forward.1} parent=0 // pred_check_branch
    %24 = sbr.rel (0) target = $region13
  $region12: #{cnn_forward.1} parent=0 // pred_region
    _
  $region13: #{cnn_forward.1} parent=0 // pred_fallthru
    _
  // Predicated region
  $region14: #{cnn_forward.1} parent=0 // pred_check
    _
  $region15: #{cnn_forward.1} parent=0 // pred_check_branch
    %26 = sbr.rel (0) target = $region17
  $region16: #{cnn_forward.1} parent=0 // pred_region
    _
  $region17: #{cnn_forward.1} parent=0 // pred_fallthru
    _
  // Predicated region
  $region18: #{cnn_forward.1} parent=0 // pred_check
    _
  $region19: #{cnn_forward.1} parent=0 // pred_check_branch
    %28 = sbr.rel (0) target = $region21
  $region20: #{cnn_forward.1} parent=0 // pred_region
    _
  $region21: #{cnn_forward.1} parent=0 // pred_fallthru
    _
  // Predicated region
  $region22: #{cnn_forward.1} parent=0 // pred_check
    _
  $region23: #{cnn_forward.1} parent=0 // pred_check_branch
    %30 = sbr.rel (0) target = $region25
  $region24: #{cnn_forward.1} parent=0 // pred_region
    _
  $region25: #{cnn_forward.1} parent=0 // pred_fallthru
    _
  // Predicated region
  $region26: #{cnn_forward.1} parent=0 // pred_check
    _
  $region27: #{cnn_forward.1} parent=0 // pred_check_branch
    %32 = sbr.rel (0) target = $region29
  $region28: #{cnn_forward.1} parent=0 // pred_region
    _
  $region29: #{cnn_forward.1} parent=0 // pred_fallthru
    _
  // Predicated region
  $region30: #{cnn_forward.1} parent=0 // pred_check
    _
  $region31: #{cnn_forward.1} parent=0 // pred_check_branch
    %34 = sbr.rel (0) target = $region33
  $region32: #{cnn_forward.1} parent=0 // pred_region
    _
  $region33: #{cnn_forward.1} parent=0 // pred_fallthru
    _
  // Predicated region
  $region34: #{cnn_forward.1} parent=0 // pred_check
    _
  $region35: #{cnn_forward.1} parent=0 // pred_check_branch
    %36 = sbr.rel (0) target = $region37
  $region36: #{cnn_forward.1} parent=0 // pred_region
    _
  $region37: #{cnn_forward.1} parent=0 // pred_fallthru
    _
  // Predicated region
  $region38: #{cnn_forward.1} parent=0 // pred_check
    _
  $region39: #{cnn_forward.1} parent=0 // pred_check_branch
    %38 = sbr.rel (0) target = $region41
  $region40: #{cnn_forward.1} parent=0 // pred_region
    _
  $region41: #{cnn_forward.1} parent=0 // pred_fallthru
    _
  // Predicated region
  $region42: #{cnn_forward.1} parent=0 // pred_check
    _
  $region43: #{cnn_forward.1} parent=0 // pred_check_branch
    %40 = sbr.rel (0) target = $region45
  $region44: #{cnn_forward.1} parent=0 // pred_region
    _
  $region45: #{cnn_forward.1} parent=0 // pred_fallthru
    _
  // Predicated region
  $region46: #{cnn_forward.1} parent=0 // pred_check
    _
  $region47: #{cnn_forward.1} parent=0 // pred_check_branch
    %42 = sbr.rel (0) target = $region49
  $region48: #{cnn_forward.1} parent=0 // pred_region
    _
  $region49: #{cnn_forward.1} parent=0 // pred_fallthru
    _
  // Predicated region
  $region50: #{cnn_forward.1} parent=0 // pred_check
    _
  $region51: #{cnn_forward.1} parent=0 // pred_check_branch
    %44 = sbr.rel (0) target = $region53
  $region52: #{cnn_forward.1} parent=0 // pred_region
    _
  $region53: #{cnn_forward.1} parent=0 // pred_fallthru
    _
  // Predicated region
  $region54: #{cnn_forward.1} parent=0 // pred_check
    _
  $region55: #{cnn_forward.1} parent=0 // pred_check_branch
    %46 = sbr.rel (0) target = $region57
  $region56: #{cnn_forward.1} parent=0 // pred_region
    _
  $region57: #{cnn_forward.1} parent=0 // pred_fallthru
    _
  %v48 = vld [vmem:[%s1] sm:$0xff]
  %v49 = vld [vmem:[%s1 + $0x8] sm:$0xff]
  %v50 = vld [vmem:[%s1 + $0x10] sm:$0xff]
  %v51 = vld [vmem:[%s1 + $0x18] sm:$0xff]
  %v52 = vld [vmem:[%s2] sm:$0xff]
  %v53 = vld [vmem:[%s2 + $0x8] sm:$0xff]
  %v54 = vld [vmem:[%s2 + $0x10] sm:$0xff]
  %v55 = vld [vmem:[%s2 + $0x18] sm:$0xff]
  %v56 = vld [vmem:[%s2 + $0x20] sm:$0xff]
  %v57 = vld [vmem:[%s2 + $0x28] sm:$0xff]
  %v58 = vld [vmem:[%s2 + $0x30] sm:$0xff]
  %v59 = vld [vmem:[%s2 + $0x38] sm:$0xff]
  %v60 = vld [vmem:[%s0] sm:$0xff]
  %v61 = vld [vmem:[%s0 + $0x8] sm:$0xff]
  %v62 = vld [vmem:[%s0 + $0x10] sm:$0xff]
  %v63 = vld [vmem:[%s0 + $0x18] sm:$0xff]
  %65 = vset.pattern.permute.xlu0 0
  %66 = vperm.xlu0 %65, %v48
  %v67 = vpop.permute.xlu0 %66
  %70 = vset.pattern.permute.xlu0 0
  %71 = vperm.xlu0 %70, %v49
  %v72 = vpop.permute.xlu0 %71
  %v74 = vmul.f32 %v60, %v67
  %v75 = vmul.f32 %v61, %v67
  %v76 = vmul.f32 %v62, %v72
  %v77 = vmul.f32 %v63, %v72
  %v78 = vpack.c.bf16 %v76, %v74
  %v79 = vpack.c.bf16 %v77, %v75
  %80 = vset.pattern.permute.xlu0 1
  %81 = vperm.xlu0 %80, %v48
  %v82 = vpop.permute.xlu0 %81
  %84 = vset.pattern.permute.xlu0 1
  %85 = vperm.xlu0 %84, %v49
  %v86 = vpop.permute.xlu0 %85
  %v88 = vmul.f32 %v60, %v82
  %v89 = vmul.f32 %v61, %v82
  %v90 = vmul.f32 %v62, %v86
  %v91 = vmul.f32 %v63, %v86
  %v92 = vpack.c.bf16 %v90, %v88
  %v93 = vpack.c.bf16 %v91, %v89
  %94 = vset.pattern.permute.xlu0 2
  %95 = vperm.xlu0 %94, %v48
  %v96 = vpop.permute.xlu0 %95
  %98 = vset.pattern.permute.xlu0 2
  %99 = vperm.xlu0 %98, %v49
  %v100 = vpop.permute.xlu0 %99
  %v102 = vmul.f32 %v60, %v96
  %v103 = vmul.f32 %v61, %v96
  %v104 = vmul.f32 %v62, %v100
  %v105 = vmul.f32 %v63, %v100
  %v106 = vpack.c.bf16 %v104, %v102
  %v107 = vpack.c.bf16 %v105, %v103
  %v108 = vld [vmem:[%s8] sm:$0xf]
  %v109 = vld [vmem:[%s8 + $0x4] sm:$0xf]
  %v110 = vld [vmem:[%s8 + $0x8] sm:$0xf]
  %v111 = vld [vmem:[%s8 + $0xc] sm:$0xf]
  %v112 = vld [vmem:[%s8 + $0x10] sm:$0xf]
  %v113 = vld [vmem:[%s8 + $0x14] sm:$0xf]
  %v114 = vld [vmem:[%s8 + $0x18] sm:$0xf]
  %v115 = vld [vmem:[%s8 + $0x1c] sm:$0xf]
  %v116 = vld [vmem:[%s8 + $0x20] sm:$0xf]
  %v117 = vld [vmem:[%s8 + $0x24] sm:$0xf]
  %v118 = vld [vmem:[%s8 + $0x28] sm:$0xf]
  %v119 = vld [vmem:[%s8 + $0x2c] sm:$0xf]
  %v120 = vld [vmem:[%s8 + $0x30] sm:$0xf]
  %v121 = vld [vmem:[%s8 + $0x34] sm:$0xf]
  %v122 = vld [vmem:[%s8 + $0x38] sm:$0xf]
  %v123 = vld [vmem:[%s8 + $0x3c] sm:$0xf]
  %v124 = vld [vmem:[%s8 + $0x40] sm:$0xf]
  %v125 = vld [vmem:[%s8 + $0x44] sm:$0xf]
  %v126 = vld [vmem:[%s8 + $0x48] sm:$0xf]
  %v127 = vld [vmem:[%s8 + $0x4c] sm:$0xf]
  %v128 = vld [vmem:[%s8 + $0x50] sm:$0xf]
  %v129 = vld [vmem:[%s8 + $0x54] sm:$0xf]
  %v130 = vld [vmem:[%s8 + $0x58] sm:$0xf]
  %v131 = vld [vmem:[%s8 + $0x5c] sm:$0xf]
  %v132 = vld [vmem:[%s8 + $0x60] sm:$0xf]
  %v133 = vld [vmem:[%s8 + $0x64] sm:$0xf]
  %v134 = vld [vmem:[%s8 + $0x68] sm:$0xf]
  %v135 = vld [vmem:[%s8 + $0x6c] sm:$0xf]
  %v136 = vld [vmem:[%s8 + $0x70] sm:$0xf]
  %v137 = vld [vmem:[%s8 + $0x74] sm:$0xf]
  %v138 = vld [vmem:[%s8 + $0x78] sm:$0xf]
  %v139 = vld [vmem:[%s8 + $0x7c] sm:$0xf]
  %v140 = vld [vmem:[%s8 + $0x80] sm:$0xf]
  %v141 = vld [vmem:[%s8 + $0x84] sm:$0xf]
  %v142 = vld [vmem:[%s8 + $0x88] sm:$0xf]
  %v143 = vld [vmem:[%s8 + $0x8c] sm:$0xf]
  %v144 = vld [vmem:[%s8 + $0x90] sm:$0xf]
  %v145 = vld [vmem:[%s8 + $0x94] sm:$0xf]
  %v146 = vld [vmem:[%s8 + $0x98] sm:$0xf]
  %v147 = vld [vmem:[%s8 + $0x9c] sm:$0xf]
  %v148 = vld [vmem:[%s8 + $0xa0] sm:$0xf]
  %v149 = vld [vmem:[%s8 + $0xa4] sm:$0xf]
  %v150 = vld [vmem:[%s8 + $0xa8] sm:$0xf]
  %v151 = vld [vmem:[%s8 + $0xac] sm:$0xf]
  %v152 = vld [vmem:[%s8 + $0xb0] sm:$0xf]
  %v153 = vld [vmem:[%s8 + $0xb4] sm:$0xf]
  %v154 = vld [vmem:[%s8 + $0xb8] sm:$0xf]
  %v155 = vld [vmem:[%s8 + $0xbc] sm:$0xf]
  %v156 = vld [vmem:[%s8 + $0xc0] sm:$0xf]
  %v157 = vld [vmem:[%s8 + $0xc4] sm:$0xf]
  %v158 = vld [vmem:[%s8 + $0xc8] sm:$0xf]
  %v159 = vld [vmem:[%s8 + $0xcc] sm:$0xf]
  %v160 = vld [vmem:[%s8 + $0xd0] sm:$0xf]
  %v161 = vld [vmem:[%s8 + $0xd4] sm:$0xf]
  %v162 = vld [vmem:[%s8 + $0xd8] sm:$0xf]
  %v163 = vld [vmem:[%s8 + $0xdc] sm:$0xf]
  %v164 = vld [vmem:[%s8 + $0xe0] sm:$0xf]
  %v165 = vld [vmem:[%s8 + $0xe4] sm:$0xf]
  %v166 = vld [vmem:[%s8 + $0xe8] sm:$0xf]
  %v167 = vld [vmem:[%s8 + $0xec] sm:$0xf]
  %v168 = vld [vmem:[%s8 + $0xf0] sm:$0xf]
  %v169 = vld [vmem:[%s8 + $0xf4] sm:$0xf]
  %v170 = vld [vmem:[%s8 + $0xf8] sm:$0xf]
  %v171 = vld [vmem:[%s8 + $0xfc] sm:$0xf]
  %v172 = vld [vmem:[%s8 + $0x100] sm:$0xf]
  %v173 = vld [vmem:[%s8 + $0x104] sm:$0xf]
  %v174 = vld [vmem:[%s8 + $0x108] sm:$0xf]
  %v175 = vld [vmem:[%s8 + $0x10c] sm:$0xf]
  %v176 = vld [vmem:[%s8 + $0x110] sm:$0xf]
  %v177 = vld [vmem:[%s8 + $0x114] sm:$0xf]
  %v178 = vld [vmem:[%s8 + $0x118] sm:$0xf]
  %v179 = vld [vmem:[%s8 + $0x11c] sm:$0xf]
  %v180 = vld [vmem:[%s8 + $0x120] sm:$0xf]
  %v181 = vld [vmem:[%s8 + $0x124] sm:$0xf]
  %v182 = vld [vmem:[%s8 + $0x128] sm:$0xf]
  %v183 = vld [vmem:[%s8 + $0x12c] sm:$0xf]
  %v184 = vld [vmem:[%s8 + $0x130] sm:$0xf]
  %v185 = vld [vmem:[%s8 + $0x134] sm:$0xf]
  %v186 = vld [vmem:[%s8 + $0x138] sm:$0xf]
  %v187 = vld [vmem:[%s8 + $0x13c] sm:$0xf]
  %v188 = vld [vmem:[%s8 + $0x140] sm:$0xf]
  %v189 = vld [vmem:[%s8 + $0x144] sm:$0xf]
  %v190 = vld [vmem:[%s8 + $0x148] sm:$0xf]
  %v191 = vld [vmem:[%s8 + $0x14c] sm:$0xf]
  %v192 = vld [vmem:[%s8 + $0x150] sm:$0xf]
  %v193 = vld [vmem:[%s8 + $0x154] sm:$0xf]
  %v194 = vld [vmem:[%s8 + $0x158] sm:$0xf]
  %v195 = vld [vmem:[%s8 + $0x15c] sm:$0xf]
  %v196 = vld [vmem:[%s8 + $0x160] sm:$0xf]
  %v197 = vld [vmem:[%s8 + $0x164] sm:$0xf]
  %v198 = vld [vmem:[%s8 + $0x168] sm:$0xf]
  %v199 = vld [vmem:[%s8 + $0x16c] sm:$0xf]
  %v200 = vld [vmem:[%s8 + $0x170] sm:$0xf]
  %v201 = vld [vmem:[%s8 + $0x174] sm:$0xf]
  %v202 = vld [vmem:[%s8 + $0x178] sm:$0xf]
  %v203 = vld [vmem:[%s8 + $0x17c] sm:$0xf]
  %v300 = vunpack.c.l.b16 %v108
  %v301 = vunpack.c.l.b16 %v109
  %v302 = vunpack.c.l.b16 %v110
  %v303 = vunpack.c.l.b16 %v111
  %v304 = vunpack.c.l.b16 %v112
  %v305 = vunpack.c.l.b16 %v113
  %v306 = vunpack.c.l.b16 %v114
  %v307 = vunpack.c.l.b16 %v115
  %v308 = vunpack.c.l.b16 %v116
  %v309 = vunpack.c.l.b16 %v117
  %v310 = vunpack.c.l.b16 %v118
  %v311 = vunpack.c.l.b16 %v119
  %v312 = vunpack.c.l.b16 %v120
  %v313 = vunpack.c.l.b16 %v121
  %v314 = vunpack.c.l.b16 %v122
  %v315 = vunpack.c.l.b16 %v123
  %v316 = vunpack.c.l.b16 %v124
  %v317 = vunpack.c.l.b16 %v125
  %v318 = vunpack.c.l.b16 %v126
  %v319 = vunpack.c.l.b16 %v127
  %v320 = vunpack.c.l.b16 %v128
  %v321 = vunpack.c.l.b16 %v129
  %v322 = vunpack.c.l.b16 %v130
  %v323 = vunpack.c.l.b16 %v131
  %v324 = vunpack.c.l.b16 %v132
  %v325 = vunpack.c.l.b16 %v133
  %v326 = vunpack.c.l.b16 %v134
  %v327 = vunpack.c.l.b16 %v135
  %v328 = vunpack.c.l.b16 %v136
  %v329 = vunpack.c.l.b16 %v137
  %v330 = vunpack.c.l.b16 %v138
  %v331 = vunpack.c.l.b16 %v139
  %v332 = vunpack.c.l.b16 %v140
  %v333 = vunpack.c.l.b16 %v141
  %v334 = vunpack.c.l.b16 %v142
  %v335 = vunpack.c.l.b16 %v143
  %v336 = vunpack.c.l.b16 %v144
  %v337 = vunpack.c.l.b16 %v145
  %v338 = vunpack.c.l.b16 %v146
  %v339 = vunpack.c.l.b16 %v147
  %v340 = vunpack.c.l.b16 %v148
  %v341 = vunpack.c.l.b16 %v149
  %v342 = vunpack.c.l.b16 %v150
  %v343 = vunpack.c.l.b16 %v151
  %v344 = vunpack.c.l.b16 %v152
  %v345 = vunpack.c.l.b16 %v153
  %v346 = vunpack.c.l.b16 %v154
  %v347 = vunpack.c.l.b16 %v155
  %v348 = vunpack.c.l.b16 %v156
  %v349 = vunpack.c.l.b16 %v157
  %v350 = vunpack.c.l.b16 %v158
  %v351 = vunpack.c.l.b16 %v159
  %v352 = vunpack.c.l.b16 %v160
  %v353 = vunpack.c.l.b16 %v161
  %v354 = vunpack.c.l.b16 %v162
  %v355 = vunpack.c.l.b16 %v163
  %v356 = vunpack.c.l.b16 %v164
  %v357 = vunpack.c.l.b16 %v165
  %v358 = vunpack.c.l.b16 %v166
  %v359 = vunpack.c.l.b16 %v167
  %v360 = vunpack.c.l.b16 %v168
  %v361 = vunpack.c.l.b16 %v169
  %v362 = vunpack.c.l.b16 %v170
  %v363 = vunpack.c.l.b16 %v171
  %v364 = vunpack.c.l.b16 %v172
  %v365 = vunpack.c.l.b16 %v173
  %v366 = vunpack.c.l.b16 %v174
  %v367 = vunpack.c.l.b16 %v175
  %v368 = vunpack.c.l.b16 %v176
  %v369 = vunpack.c.l.b16 %v177
  %v370 = vunpack.c.l.b16 %v178
  %v371 = vunpack.c.l.b16 %v179
  %v372 = vunpack.c.l.b16 %v180
  %v373 = vunpack.c.l.b16 %v181
  %v374 = vunpack.c.l.b16 %v182
  %v375 = vunpack.c.l.b16 %v183
  %v376 = vunpack.c.l.b16 %v184
  %v377 = vunpack.c.l.b16 %v185
  %v378 = vunpack.c.l.b16 %v186
  %v379 = vunpack.c.l.b16 %v187
  %v380 = vunpack.c.l.b16 %v188
  %v381 = vunpack.c.l.b16 %v189
  %v382 = vunpack.c.l.b16 %v190
  %v383 = vunpack.c.l.b16 %v191
  %v384 = vunpack.c.l.b16 %v192
  %v385 = vunpack.c.l.b16 %v193
  %v386 = vunpack.c.l.b16 %v194
  %v387 = vunpack.c.l.b16 %v195
  %v388 = vunpack.c.l.b16 %v196
  %v389 = vunpack.c.l.b16 %v197
  %v390 = vunpack.c.l.b16 %v198
  %v391 = vunpack.c.l.b16 %v199
  %v392 = vunpack.c.l.b16 %v200
  %v393 = vunpack.c.l.b16 %v201
  %v394 = vunpack.c.l.b16 %v202
  %v395 = vunpack.c.l.b16 %v203
  %v396 = vpack.c.b16 %v301, %v300
  %v397 = vpack.c.b16 %v303, %v302
  %v398 = vpack.c.b16 %v305, %v304
  %v399 = vpack.c.b16 %v307, %v306
  %v400 = vpack.c.b16 %v309, %v308
  %v401 = vpack.c.b16 %v311, %v310
  %v402 = vpack.c.b16 %v313, %v312
  %v403 = vpack.c.b16 %v315, %v314
  %v404 = vpack.c.b16 %v317, %v316
  %v405 = vpack.c.b16 %v319, %v318
  %v406 = vpack.c.b16 %v321, %v320
  %v407 = vpack.c.b16 %v323, %v322
  %v408 = vpack.c.b16 %v325, %v324
  %v409 = vpack.c.b16 %v327, %v326
  %v410 = vpack.c.b16 %v329, %v328
  %v411 = vpack.c.b16 %v331, %v330
  %v412 = vpack.c.b16 %v333, %v332
  %v413 = vpack.c.b16 %v335, %v334
  %v414 = vpack.c.b16 %v337, %v336
  %v415 = vpack.c.b16 %v339, %v338
  %v416 = vpack.c.b16 %v341, %v340
  %v417 = vpack.c.b16 %v343, %v342
  %v418 = vpack.c.b16 %v345, %v344
  %v419 = vpack.c.b16 %v347, %v346
  %v420 = vpack.c.b16 %v349, %v348
  %v421 = vpack.c.b16 %v351, %v350
  %v422 = vpack.c.b16 %v353, %v352
  %v423 = vpack.c.b16 %v355, %v354
  %v424 = vpack.c.b16 %v357, %v356
  %v425 = vpack.c.b16 %v359, %v358
  %v426 = vpack.c.b16 %v361, %v360
  %v427 = vpack.c.b16 %v363, %v362
  %v428 = vpack.c.b16 %v365, %v364
  %v429 = vpack.c.b16 %v367, %v366
  %v430 = vpack.c.b16 %v369, %v368
  %v431 = vpack.c.b16 %v371, %v370
  %v432 = vpack.c.b16 %v373, %v372
  %v433 = vpack.c.b16 %v375, %v374
  %v434 = vpack.c.b16 %v377, %v376
  %v435 = vpack.c.b16 %v379, %v378
  %v436 = vpack.c.b16 %v381, %v380
  %v437 = vpack.c.b16 %v383, %v382
  %v438 = vpack.c.b16 %v385, %v384
  %v439 = vpack.c.b16 %v387, %v386
  %v440 = vpack.c.b16 %v389, %v388
  %v441 = vpack.c.b16 %v391, %v390
  %v442 = vpack.c.b16 %v393, %v392
  %v443 = vpack.c.b16 %v395, %v394
  %492 = vmatprep.subr.bf16.mxu0 0
  %493 = vmatpush1.bf16.msra.mxu0 %v396
  %494 = vmatprep.subr.bf16.mxu0 0
  %495 = vmatpush1.bf16.msra.mxu0 %v397
  %496 = vmatprep.subr.bf16.mxu0 0
  %497 = vmatpush1.bf16.msra.mxu0 %v398
  %498 = vmatprep.subr.bf16.mxu0 0
  %499 = vmatpush1.bf16.msra.mxu0 %v399
  %500 = vmatprep.subr.bf16.mxu0 0
  %501 = vmatpush1.bf16.msra.mxu0 %v400
  %502 = vmatprep.subr.bf16.mxu0 0
  %503 = vmatpush1.bf16.msra.mxu0 %v401
  %504 = vmatprep.subr.bf16.mxu0 0
  %505 = vmatpush1.bf16.msra.mxu0 %v402
  %506 = vmatprep.subr.bf16.mxu0 0
  %507 = vmatpush1.bf16.msra.mxu0 %v403
  %508 = vmatprep.subr.bf16.mxu0 0
  %509 = vmatpush1.bf16.msra.mxu0 %v404
  %510 = vmatprep.subr.bf16.mxu0 0
  %511 = vmatpush1.bf16.msra.mxu0 %v405
  %512 = vmatprep.subr.bf16.mxu0 0
  %513 = vmatpush1.bf16.msra.mxu0 %v406
  %514 = vmatprep.subr.bf16.mxu0 0
  %515 = vmatpush1.bf16.msra.mxu0 %v407
  %516 = vmatprep.subr.bf16.mxu0 0
  %517 = vmatpush1.bf16.msra.mxu0 %v408
  %518 = vmatprep.subr.bf16.mxu0 0
  %519 = vmatpush1.bf16.msra.mxu0 %v409
  %520 = vmatprep.subr.bf16.mxu0 0
  %521 = vmatpush1.bf16.msra.mxu0 %v410
  %522 = vmatprep.subr.bf16.mxu0 0
  %523 = vmatpush1.bf16.msra.mxu0 %v411
  %524 = vmatprep.mubr.bf16.mxu0 %v79
  %525 = vmatmul.mubr.bf16.gmra.mrb[0].mxu0 %v78
  %v526 = vpop.f32.mrb[0].mxu0
  %v527 = vadd.f32 0.0, %v526
  %v528 = vpop.f32.mrb[0].mxu0
  %v529 = vpop.f32.mrb[0].mxu0
  %v530 = vadd.f32 0.0, %v529
  %v531 = vpop.f32.mrb[0].mxu0
  %532 = vdwg.mxu0
  %533 = vmatprep.subr.bf16.mxu0 0
  %534 = vmatpush1.bf16.msra.mxu0 %v412
  %535 = vmatprep.subr.bf16.mxu0 0
  %536 = vmatpush1.bf16.msra.mxu0 %v413
  %537 = vmatprep.subr.bf16.mxu0 0
  %538 = vmatpush1.bf16.msra.mxu0 %v414
  %539 = vmatprep.subr.bf16.mxu0 0
  %540 = vmatpush1.bf16.msra.mxu0 %v415
  %541 = vmatprep.subr.bf16.mxu0 0
  %542 = vmatpush1.bf16.msra.mxu0 %v416
  %543 = vmatprep.subr.bf16.mxu0 0
  %544 = vmatpush1.bf16.msra.mxu0 %v417
  %545 = vmatprep.subr.bf16.mxu0 0
  %546 = vmatpush1.bf16.msra.mxu0 %v418
  %547 = vmatprep.subr.bf16.mxu0 0
  %548 = vmatpush1.bf16.msra.mxu0 %v419
  %549 = vmatprep.subr.bf16.mxu0 0
  %550 = vmatpush1.bf16.msra.mxu0 %v420
  %551 = vmatprep.subr.bf16.mxu0 0
  %552 = vmatpush1.bf16.msra.mxu0 %v421
  %553 = vmatprep.subr.bf16.mxu0 0
  %554 = vmatpush1.bf16.msra.mxu0 %v422
  %555 = vmatprep.subr.bf16.mxu0 0
  %556 = vmatpush1.bf16.msra.mxu0 %v423
  %557 = vmatprep.subr.bf16.mxu0 0
  %558 = vmatpush1.bf16.msra.mxu0 %v424
  %559 = vmatprep.subr.bf16.mxu0 0
  %560 = vmatpush1.bf16.msra.mxu0 %v425
  %561 = vmatprep.subr.bf16.mxu0 0
  %562 = vmatpush1.bf16.msra.mxu0 %v426
  %563 = vmatprep.subr.bf16.mxu0 0
  %564 = vmatpush1.bf16.msra.mxu0 %v427
  %565 = vmatprep.mubr.bf16.mxu0 %v93
  %566 = vmatmul.mubr.bf16.gmra.mrb[0].mxu0 %v92
  %v567 = vpop.f32.mrb[0].mxu0
  %v568 = vadd.f32 %v527, %v567
  %v569 = vpop.f32.mrb[0].mxu0
  %v570 = vpop.f32.mrb[0].mxu0
  %v571 = vadd.f32 %v530, %v570
  %v572 = vpop.f32.mrb[0].mxu0
  %573 = vdwg.mxu0
  %574 = vmatprep.subr.bf16.mxu0 0
  %575 = vmatpush1.bf16.msra.mxu0 %v428
  %576 = vmatprep.subr.bf16.mxu0 0
  %577 = vmatpush1.bf16.msra.mxu0 %v429
  %578 = vmatprep.subr.bf16.mxu0 0
  %579 = vmatpush1.bf16.msra.mxu0 %v430
  %580 = vmatprep.subr.bf16.mxu0 0
  %581 = vmatpush1.bf16.msra.mxu0 %v431
  %582 = vmatprep.subr.bf16.mxu0 0
  %583 = vmatpush1.bf16.msra.mxu0 %v432
  %584 = vmatprep.subr.bf16.mxu0 0
  %585 = vmatpush1.bf16.msra.mxu0 %v433
  %586 = vmatprep.subr.bf16.mxu0 0
  %587 = vmatpush1.bf16.msra.mxu0 %v434
  %588 = vmatprep.subr.bf16.mxu0 0
  %589 = vmatpush1.bf16.msra.mxu0 %v435
  %590 = vmatprep.subr.bf16.mxu0 0
  %591 = vmatpush1.bf16.msra.mxu0 %v436
  %592 = vmatprep.subr.bf16.mxu0 0
  %593 = vmatpush1.bf16.msra.mxu0 %v437
  %594 = vmatprep.subr.bf16.mxu0 0
  %595 = vmatpush1.bf16.msra.mxu0 %v438
  %596 = vmatprep.subr.bf16.mxu0 0
  %597 = vmatpush1.bf16.msra.mxu0 %v439
  %598 = vmatprep.subr.bf16.mxu0 0
  %599 = vmatpush1.bf16.msra.mxu0 %v440
  %600 = vmatprep.subr.bf16.mxu0 0
  %601 = vmatpush1.bf16.msra.mxu0 %v441
  %602 = vmatprep.subr.bf16.mxu0 0
  %603 = vmatpush1.bf16.msra.mxu0 %v442
  %604 = vmatprep.subr.bf16.mxu0 0
  %605 = vmatpush1.bf16.msra.mxu0 %v443
  %606 = vmatprep.mubr.bf16.mxu0 %v107
  %607 = vmatmul.mubr.bf16.gmra.mrb[0].mxu0 %v106
  %v608 = vpop.f32.mrb[0].mxu0
  %v609 = vadd.f32 %v568, %v608
  %v610 = vpop.f32.mrb[0].mxu0
  %v611 = vpop.f32.mrb[0].mxu0
  %v612 = vadd.f32 %v571, %v611
  %v613 = vpop.f32.mrb[0].mxu0
  %614 = vdwg.mxu0
  %v615 = vld [vmem:[%s3] sm:$0xf]
  %v616 = vld [vmem:[%s3 + $0x4] sm:$0xf]
  %v617 = vpack.c.bf16 %v612, %v609
  %619 = vset.pattern.permute.xlu0 0
  %620 = vperm.xlu0 %619, %v52
  %v621 = vpop.permute.xlu0 %620
  %624 = vset.pattern.permute.xlu0 0
  %625 = vperm.xlu0 %624, %v53
  %v626 = vpop.permute.xlu0 %625
  %v630 = vunpack.c.l.b16 %v615
  %v631 = vunpack.c.l.b16 %v616
  %v632 = vpack.c.b16 %v631, %v630
  %vm633 = vcmask 130048
  %v635 = vsel %vm633, %v632, 0
  %637 = vmatprep.subr.bf16.mxu0 0
  %638 = vmatpush1.bf16.msra.mxu0 %v617
  %639 = vmatprep.subr.bf16.mxu0 0
  %640 = vmatpush1.bf16.msra.mxu0 0
  %641 = vmatprep.subr.bf16.mxu0 0
  %642 = vmatpush1.bf16.msra.mxu0 0
  %643 = vmatprep.subr.bf16.mxu0 0
  %644 = vmatpush1.bf16.msra.mxu0 0
  %645 = vmatprep.subr.bf16.mxu0 0
  %646 = vmatpush1.bf16.msra.mxu0 0
  %647 = vmatprep.subr.bf16.mxu0 0
  %648 = vmatpush1.bf16.msra.mxu0 0
  %649 = vmatprep.subr.bf16.mxu0 0
  %650 = vmatpush1.bf16.msra.mxu0 0
  %651 = vmatprep.subr.bf16.mxu0 0
  %652 = vmatpush1.bf16.msra.mxu0 0
  %653 = vmatprep.subr.bf16.mxu0 0
  %654 = vmatpush1.bf16.msra.mxu0 0
  %655 = vmatprep.subr.bf16.mxu0 0
  %656 = vmatpush1.bf16.msra.mxu0 0
  %657 = vmatprep.subr.bf16.mxu0 0
  %658 = vmatpush1.bf16.msra.mxu0 0
  %659 = vmatprep.subr.bf16.mxu0 0
  %660 = vmatpush1.bf16.msra.mxu0 0
  %661 = vmatprep.subr.bf16.mxu0 0
  %662 = vmatpush1.bf16.msra.mxu0 0
  %663 = vmatprep.subr.bf16.mxu0 0
  %664 = vmatpush1.bf16.msra.mxu0 0
  %665 = vmatprep.subr.bf16.mxu0 0
  %666 = vmatpush1.bf16.msra.mxu0 0
  %667 = vmatprep.subr.bf16.mxu0 0
  %668 = vmatpush1.bf16.msra.mxu0 0
  %669 = vmatprep.mubr.bf16.mxu0 0
  %670 = vmatmul.mubr.bf16.gmra.mrb[0].mxu0 %v635
  %v671 = vpop.f32.mrb[0].mxu0
  %v672 = vadd.f32 %v621, %v671
  %v673 = vpop.f32.mrb[0].mxu0
  %v674 = vpop.f32.mrb[0].mxu0
  %v675 = vadd.f32 %v626, %v674
  %v676 = vpop.f32.mrb[0].mxu0
  %677 = vdwg.mxu0
  %v678 = vmax.f32 %v672, 0.0
  %v679 = vmax.f32 %v675, 0.0
  %680 = vset.pattern.permute.xlu0 3
  %681 = vperm.xlu0 %680, %v48
  %v682 = vpop.permute.xlu0 %681
  %684 = vset.pattern.permute.xlu0 3
  %685 = vperm.xlu0 %684, %v49
  %v686 = vpop.permute.xlu0 %685
  %689 = vset.pattern.permute.xlu0 3
  %690 = vperm.xlu0 %689, %v50
  %v691 = vpop.permute.xlu0 %690
  %694 = vset.pattern.permute.xlu0 3
  %695 = vperm.xlu0 %694, %v51
  %v696 = vpop.permute.xlu0 %695
  %v698 = vmul.f32 %v678, %v682
  %v699 = vmul.f32 %v679, %v686
  %v700 = vmul.f32 %v678, %v691
  %v701 = vmul.f32 %v679, %v696
  %v702 = vpack.c.bf16 %v699, %v698
  %v703 = vpack.c.bf16 %v701, %v700
  %704 = vset.pattern.permute.xlu0 4
  %705 = vperm.xlu0 %704, %v48
  %v706 = vpop.permute.xlu0 %705
  %708 = vset.pattern.permute.xlu0 4
  %709 = vperm.xlu0 %708, %v49
  %v710 = vpop.permute.xlu0 %709
  %712 = vset.pattern.permute.xlu0 4
  %713 = vperm.xlu0 %712, %v50
  %v714 = vpop.permute.xlu0 %713
  %716 = vset.pattern.permute.xlu0 4
  %717 = vperm.xlu0 %716, %v51
  %v718 = vpop.permute.xlu0 %717
  %v720 = vmul.f32 %v678, %v706
  %v721 = vmul.f32 %v679, %v710
  %v722 = vmul.f32 %v678, %v714
  %v723 = vmul.f32 %v679, %v718
  %v724 = vpack.c.bf16 %v721, %v720
  %v725 = vpack.c.bf16 %v723, %v722
  %726 = vset.pattern.permute.xlu0 5
  %727 = vperm.xlu0 %726, %v48
  %v728 = vpop.permute.xlu0 %727
  %730 = vset.pattern.permute.xlu0 5
  %731 = vperm.xlu0 %730, %v49
  %v732 = vpop.permute.xlu0 %731
  %734 = vset.pattern.permute.xlu0 5
  %735 = vperm.xlu0 %734, %v50
  %v736 = vpop.permute.xlu0 %735
  %738 = vset.pattern.permute.xlu0 5
  %739 = vperm.xlu0 %738, %v51
  %v740 = vpop.permute.xlu0 %739
  %v742 = vmul.f32 %v678, %v728
  %v743 = vmul.f32 %v679, %v732
  %v744 = vmul.f32 %v678, %v736
  %v745 = vmul.f32 %v679, %v740
  %v746 = vpack.c.bf16 %v743, %v742
  %v747 = vpack.c.bf16 %v745, %v744
  %v748 = vld [vmem:[%s9] sm:$0xf]
  %v749 = vld [vmem:[%s9 + $0x4] sm:$0xf]
  %v750 = vld [vmem:[%s9 + $0x8] sm:$0xf]
  %v751 = vld [vmem:[%s9 + $0xc] sm:$0xf]
  %v752 = vld [vmem:[%s9 + $0x10] sm:$0xf]
  %v753 = vld [vmem:[%s9 + $0x14] sm:$0xf]
  %v754 = vld [vmem:[%s9 + $0x18] sm:$0xf]
  %v755 = vld [vmem:[%s9 + $0x1c] sm:$0xf]
  %v756 = vld [vmem:[%s9 + $0x20] sm:$0xf]
  %v757 = vld [vmem:[%s9 + $0x24] sm:$0xf]
  %v758 = vld [vmem:[%s9 + $0x28] sm:$0xf]
  %v759 = vld [vmem:[%s9 + $0x2c] sm:$0xf]
  %v760 = vld [vmem:[%s9 + $0x30] sm:$0xf]
  %v761 = vld [vmem:[%s9 + $0x34] sm:$0xf]
  %v762 = vld [vmem:[%s9 + $0x38] sm:$0xf]
  %v763 = vld [vmem:[%s9 + $0x3c] sm:$0xf]
  %v764 = vld [vmem:[%s9 + $0x40] sm:$0xf]
  %v765 = vld [vmem:[%s9 + $0x44] sm:$0xf]
  %v766 = vld [vmem:[%s9 + $0x48] sm:$0xf]
  %v767 = vld [vmem:[%s9 + $0x4c] sm:$0xf]
  %v768 = vld [vmem:[%s9 + $0x50] sm:$0xf]
  %v769 = vld [vmem:[%s9 + $0x54] sm:$0xf]
  %v770 = vld [vmem:[%s9 + $0x58] sm:$0xf]
  %v771 = vld [vmem:[%s9 + $0x5c] sm:$0xf]
  %v772 = vld [vmem:[%s9 + $0x60] sm:$0xf]
  %v773 = vld [vmem:[%s9 + $0x64] sm:$0xf]
  %v774 = vld [vmem:[%s9 + $0x68] sm:$0xf]
  %v775 = vld [vmem:[%s9 + $0x6c] sm:$0xf]
  %v776 = vld [vmem:[%s9 + $0x70] sm:$0xf]
  %v777 = vld [vmem:[%s9 + $0x74] sm:$0xf]
  %v778 = vld [vmem:[%s9 + $0x78] sm:$0xf]
  %v779 = vld [vmem:[%s9 + $0x7c] sm:$0xf]
  %v780 = vld [vmem:[%s9 + $0x80] sm:$0xf]
  %v781 = vld [vmem:[%s9 + $0x84] sm:$0xf]
  %v782 = vld [vmem:[%s9 + $0x88] sm:$0xf]
  %v783 = vld [vmem:[%s9 + $0x8c] sm:$0xf]
  %v784 = vld [vmem:[%s9 + $0x90] sm:$0xf]
  %v785 = vld [vmem:[%s9 + $0x94] sm:$0xf]
  %v786 = vld [vmem:[%s9 + $0x98] sm:$0xf]
  %v787 = vld [vmem:[%s9 + $0x9c] sm:$0xf]
  %v788 = vld [vmem:[%s9 + $0xa0] sm:$0xf]
  %v789 = vld [vmem:[%s9 + $0xa4] sm:$0xf]
  %v790 = vld [vmem:[%s9 + $0xa8] sm:$0xf]
  %v791 = vld [vmem:[%s9 + $0xac] sm:$0xf]
  %v792 = vld [vmem:[%s9 + $0xb0] sm:$0xf]
  %v793 = vld [vmem:[%s9 + $0xb4] sm:$0xf]
  %v794 = vld [vmem:[%s9 + $0xb8] sm:$0xf]
  %v795 = vld [vmem:[%s9 + $0xbc] sm:$0xf]
  %v844 = vunpack.c.l.b16 %v748
  %v845 = vunpack.c.l.b16 %v749
  %v846 = vunpack.c.l.b16 %v750
  %v847 = vunpack.c.l.b16 %v751
  %v848 = vunpack.c.l.b16 %v752
  %v849 = vunpack.c.l.b16 %v753
  %v850 = vunpack.c.l.b16 %v754
  %v851 = vunpack.c.l.b16 %v755
  %v852 = vunpack.c.l.b16 %v756
  %v853 = vunpack.c.l.b16 %v757
  %v854 = vunpack.c.l.b16 %v758
  %v855 = vunpack.c.l.b16 %v759
  %v856 = vunpack.c.l.b16 %v760
  %v857 = vunpack.c.l.b16 %v761
  %v858 = vunpack.c.l.b16 %v762
  %v859 = vunpack.c.l.b16 %v763
  %v860 = vunpack.c.l.b16 %v764
  %v861 = vunpack.c.l.b16 %v765
  %v862 = vunpack.c.l.b16 %v766
  %v863 = vunpack.c.l.b16 %v767
  %v864 = vunpack.c.l.b16 %v768
  %v865 = vunpack.c.l.b16 %v769
  %v866 = vunpack.c.l.b16 %v770
  %v867 = vunpack.c.l.b16 %v771
  %v868 = vunpack.c.l.b16 %v772
  %v869 = vunpack.c.l.b16 %v773
  %v870 = vunpack.c.l.b16 %v774
  %v871 = vunpack.c.l.b16 %v775
  %v872 = vunpack.c.l.b16 %v776
  %v873 = vunpack.c.l.b16 %v777
  %v874 = vunpack.c.l.b16 %v778
  %v875 = vunpack.c.l.b16 %v779
  %v876 = vunpack.c.l.b16 %v780
  %v877 = vunpack.c.l.b16 %v781
  %v878 = vunpack.c.l.b16 %v782
  %v879 = vunpack.c.l.b16 %v783
  %v880 = vunpack.c.l.b16 %v784
  %v881 = vunpack.c.l.b16 %v785
  %v882 = vunpack.c.l.b16 %v786
  %v883 = vunpack.c.l.b16 %v787
  %v884 = vunpack.c.l.b16 %v788
  %v885 = vunpack.c.l.b16 %v789
  %v886 = vunpack.c.l.b16 %v790
  %v887 = vunpack.c.l.b16 %v791
  %v888 = vunpack.c.l.b16 %v792
  %v889 = vunpack.c.l.b16 %v793
  %v890 = vunpack.c.l.b16 %v794
  %v891 = vunpack.c.l.b16 %v795
  %v892 = vpack.c.b16 %v845, %v844
  %v893 = vpack.c.b16 %v847, %v846
  %v894 = vpack.c.b16 %v849, %v848
  %v895 = vpack.c.b16 %v851, %v850
  %v896 = vpack.c.b16 %v853, %v852
  %v897 = vpack.c.b16 %v855, %v854
  %v898 = vpack.c.b16 %v857, %v856
  %v899 = vpack.c.b16 %v859, %v858
  %v900 = vpack.c.b16 %v861, %v860
  %v901 = vpack.c.b16 %v863, %v862
  %v902 = vpack.c.b16 %v865, %v864
  %v903 = vpack.c.b16 %v867, %v866
  %v904 = vpack.c.b16 %v869, %v868
  %v905 = vpack.c.b16 %v871, %v870
  %v906 = vpack.c.b16 %v873, %v872
  %v907 = vpack.c.b16 %v875, %v874
  %v908 = vpack.c.b16 %v877, %v876
  %v909 = vpack.c.b16 %v879, %v878
  %v910 = vpack.c.b16 %v881, %v880
  %v911 = vpack.c.b16 %v883, %v882
  %v912 = vpack.c.b16 %v885, %v884
  %v913 = vpack.c.b16 %v887, %v886
  %v914 = vpack.c.b16 %v889, %v888
  %v915 = vpack.c.b16 %v891, %v890
  %940 = vmatprep.subr.bf16.mxu0 0
  %941 = vmatpush1.bf16.msra.mxu0 %v892
  %942 = vmatprep.subr.bf16.mxu0 0
  %943 = vmatpush1.bf16.msra.mxu0 %v893
  %944 = vmatprep.subr.bf16.mxu0 0
  %945 = vmatpush1.bf16.msra.mxu0 %v894
  %946 = vmatprep.subr.bf16.mxu0 0
  %947 = vmatpush1.bf16.msra.mxu0 %v895
  %948 = vmatprep.subr.bf16.mxu0 0
  %949 = vmatpush1.bf16.msra.mxu0 %v896
  %950 = vmatprep.subr.bf16.mxu0 0
  %951 = vmatpush1.bf16.msra.mxu0 %v897
  %952 = vmatprep.subr.bf16.mxu0 0
  %953 = vmatpush1.bf16.msra.mxu0 %v898
  %954 = vmatprep.subr.bf16.mxu0 0
  %955 = vmatpush1.bf16.msra.mxu0 %v899
  %956 = vmatprep.subr.bf16.mxu0 0
  %957 = vmatpush1.bf16.msra.mxu0 %v900
  %958 = vmatprep.subr.bf16.mxu0 0
  %959 = vmatpush1.bf16.msra.mxu0 %v901
  %960 = vmatprep.subr.bf16.mxu0 0
  %961 = vmatpush1.bf16.msra.mxu0 %v902
  %962 = vmatprep.subr.bf16.mxu0 0
  %963 = vmatpush1.bf16.msra.mxu0 %v903
  %964 = vmatprep.subr.bf16.mxu0 0
  %965 = vmatpush1.bf16.msra.mxu0 %v904
  %966 = vmatprep.subr.bf16.mxu0 0
  %967 = vmatpush1.bf16.msra.mxu0 %v905
  %968 = vmatprep.subr.bf16.mxu0 0
  %969 = vmatpush1.bf16.msra.mxu0 %v906
  %970 = vmatprep.subr.bf16.mxu0 0
  %971 = vmatpush1.bf16.msra.mxu0 %v907
  %972 = vmatprep.mubr.bf16.mxu0 %v724
  %973 = vmatmul.mubr.bf16.gmra.mrb[0].mxu0 %v702
  %v974 = vpop.f32.mrb[0].mxu0
  %v975 = vadd.f32 0.0, %v974
  %v976 = vpop.f32.mrb[0].mxu0
  %v977 = vpop.f32.mrb[0].mxu0
  %v978 = vadd.f32 0.0, %v977
  %v979 = vpop.f32.mrb[0].mxu0
  %980 = vmatprep.mubr.bf16.mxu0 %v725
  %981 = vmatmul.mubr.bf16.gmra.mrb[0].mxu0 %v703
  %v982 = vpop.f32.mrb[0].mxu0
  %v983 = vadd.f32 0.0, %v982
  %v984 = vpop.f32.mrb[0].mxu0
  %v985 = vpop.f32.mrb[0].mxu0
  %v986 = vadd.f32 0.0, %v985
  %v987 = vpop.f32.mrb[0].mxu0
  %988 = vdwg.mxu0
  %989 = vmatprep.subr.bf16.mxu0 0
  %990 = vmatpush1.bf16.msra.mxu0 %v908
  %991 = vmatprep.subr.bf16.mxu0 0
  %992 = vmatpush1.bf16.msra.mxu0 %v909
  %993 = vmatprep.subr.bf16.mxu0 0
  %994 = vmatpush1.bf16.msra.mxu0 %v910
  %995 = vmatprep.subr.bf16.mxu0 0
  %996 = vmatpush1.bf16.msra.mxu0 %v911
  %997 = vmatprep.subr.bf16.mxu0 0
  %998 = vmatpush1.bf16.msra.mxu0 %v912
  %999 = vmatprep.subr.bf16.mxu0 0
  %1000 = vmatpush1.bf16.msra.mxu0 %v913
  %1001 = vmatprep.subr.bf16.mxu0 0
  %1002 = vmatpush1.bf16.msra.mxu0 %v914
  %1003 = vmatprep.subr.bf16.mxu0 0
  %1004 = vmatpush1.bf16.msra.mxu0 %v915
  %1005 = vmatprep.subr.bf16.mxu0 0
  %1006 = vmatpush1.bf16.msra.mxu0 0
  %1007 = vmatprep.subr.bf16.mxu0 0
  %1008 = vmatpush1.bf16.msra.mxu0 0
  %1009 = vmatprep.subr.bf16.mxu0 0
  %1010 = vmatpush1.bf16.msra.mxu0 0
  %1011 = vmatprep.subr.bf16.mxu0 0
  %1012 = vmatpush1.bf16.msra.mxu0 0
  %1013 = vmatprep.subr.bf16.mxu0 0
  %1014 = vmatpush1.bf16.msra.mxu0 0
  %1015 = vmatprep.subr.bf16.mxu0 0
  %1016 = vmatpush1.bf16.msra.mxu0 0
  %1017 = vmatprep.subr.bf16.mxu0 0
  %1018 = vmatpush1.bf16.msra.mxu0 0
  %1019 = vmatprep.subr.bf16.mxu0 0
  %1020 = vmatpush1.bf16.msra.mxu0 0
  %1021 = vmatprep.mubr.bf16.mxu0 0
  %1022 = vmatmul.mubr.bf16.gmra.mrb[0].mxu0 %v746
  %v1023 = vpop.f32.mrb[0].mxu0
  %v1024 = vadd.f32 %v975, %v1023
  %v1025 = vpop.f32.mrb[0].mxu0
  %v1026 = vpop.f32.mrb[0].mxu0
  %v1027 = vadd.f32 %v978, %v1026
  %v1028 = vpop.f32.mrb[0].mxu0
  %1029 = vmatprep.mubr.bf16.mxu0 0
  %1030 = vmatmul.mubr.bf16.gmra.mrb[0].mxu0 %v747
  %v1031 = vpop.f32.mrb[0].mxu0
  %v1032 = vadd.f32 %v983, %v1031
  %v1033 = vpop.f32.mrb[0].mxu0
  %v1034 = vpop.f32.mrb[0].mxu0
  %v1035 = vadd.f32 %v986, %v1034
  %v1036 = vpop.f32.mrb[0].mxu0
  %1037 = vdwg.mxu0
  %v1038 = vld [vmem:[%s4] sm:$0xf]
  %v1039 = vld [vmem:[%s4 + $0x4] sm:$0xf]
  %v1040 = vld [vmem:[%s4 + $0x8] sm:$0xf]
  %v1041 = vld [vmem:[%s4 + $0xc] sm:$0xf]
  %v1042 = vpack.c.bf16 %v1027, %v1024
  %v1043 = vpack.c.bf16 %v1035, %v1032
  %1044 = vset.pattern.permute.xlu0 1
  %1045 = vperm.xlu0 %1044, %v52
  %v1046 = vpop.permute.xlu0 %1045
  %1048 = vset.pattern.permute.xlu0 1
  %1049 = vperm.xlu0 %1048, %v53
  %v1050 = vpop.permute.xlu0 %1049
  %1053 = vset.pattern.permute.xlu0 1
  %1054 = vperm.xlu0 %1053, %v54
  %v1055 = vpop.permute.xlu0 %1054
  %1058 = vset.pattern.permute.xlu0 1
  %1059 = vperm.xlu0 %1058, %v55
  %v1060 = vpop.permute.xlu0 %1059
  %v1066 = vunpack.c.l.b16 %v1038
  %v1067 = vunpack.c.l.b16 %v1039
  %v1068 = vunpack.c.l.b16 %v1040
  %v1069 = vunpack.c.l.b16 %v1041
  %v1070 = vpack.c.b16 %v1067, %v1066
  %v1071 = vpack.c.b16 %v1069, %v1068
  %vm1072 = vcmask 261120
  %v1074 = vsel %vm1072, %v1070, 0
  %v1077 = vsel %vm1072, %v1071, 0
  %1079 = vmatprep.subr.bf16.mxu0 0
  %1080 = vmatpush1.bf16.msra.mxu0 %v1042
  %1081 = vmatprep.subr.bf16.mxu0 0
  %1082 = vmatpush1.bf16.msra.mxu0 %v1043
  %1083 = vmatprep.subr.bf16.mxu0 0
  %1084 = vmatpush1.bf16.msra.mxu0 0
  %1085 = vmatprep.subr.bf16.mxu0 0
  %1086 = vmatpush1.bf16.msra.mxu0 0
  %1087 = vmatprep.subr.bf16.mxu0 0
  %1088 = vmatpush1.bf16.msra.mxu0 0
  %1089 = vmatprep.subr.bf16.mxu0 0
  %1090 = vmatpush1.bf16.msra.mxu0 0
  %1091 = vmatprep.subr.bf16.mxu0 0
  %1092 = vmatpush1.bf16.msra.mxu0 0
  %1093 = vmatprep.subr.bf16.mxu0 0
  %1094 = vmatpush1.bf16.msra.mxu0 0
  %1095 = vmatprep.subr.bf16.mxu0 0
  %1096 = vmatpush1.bf16.msra.mxu0 0
  %1097 = vmatprep.subr.bf16.mxu0 0
  %1098 = vmatpush1.bf16.msra.mxu0 0
  %1099 = vmatprep.subr.bf16.mxu0 0
  %1100 = vmatpush1.bf16.msra.mxu0 0
  %1101 = vmatprep.subr.bf16.mxu0 0
  %1102 = vmatpush1.bf16.msra.mxu0 0
  %1103 = vmatprep.subr.bf16.mxu0 0
  %1104 = vmatpush1.bf16.msra.mxu0 0
  %1105 = vmatprep.subr.bf16.mxu0 0
  %1106 = vmatpush1.bf16.msra.mxu0 0
  %1107 = vmatprep.subr.bf16.mxu0 0
  %1108 = vmatpush1.bf16.msra.mxu0 0
  %1109 = vmatprep.subr.bf16.mxu0 0
  %1110 = vmatpush1.bf16.msra.mxu0 0
  %1111 = vmatprep.mubr.bf16.mxu0 0
  %1112 = vmatmul.mubr.bf16.gmra.mrb[0].mxu0 %v1074
  %v1113 = vpop.f32.mrb[0].mxu0
  %v1114 = vadd.f32 %v1046, %v1113
  %v1115 = vpop.f32.mrb[0].mxu0
  %v1116 = vpop.f32.mrb[0].mxu0
  %v1117 = vadd.f32 %v1050, %v1116
  %v1118 = vpop.f32.mrb[0].mxu0
  %1119 = vmatprep.mubr.bf16.mxu0 0
  %1120 = vmatmul.mubr.bf16.gmra.mrb[0].mxu0 %v1077
  %v1121 = vpop.f32.mrb[0].mxu0
  %v1122 = vadd.f32 %v1055, %v1121
  %v1123 = vpop.f32.mrb[0].mxu0
  %v1124 = vpop.f32.mrb[0].mxu0
  %v1125 = vadd.f32 %v1060, %v1124
  %v1126 = vpop.f32.mrb[0].mxu0
  %1127 = vdwg.mxu0
  %v1128 = vmax.f32 %v1114, 0.0
  %v1129 = vmax.f32 %v1117, 0.0
  %v1130 = vmax.f32 %v1122, 0.0
  %v1131 = vmax.f32 %v1125, 0.0
  %1136 = vrot.lane.b32.xlu0 %v1128, 1
  %v1137 = vpop.permute.xlu0 %1136
  %1138 = vrot.lane.b32.xlu0 %v1129, 1
  %v1139 = vpop.permute.xlu0 %1138
  %1140 = vrot.lane.b32.xlu0 %v1130, 1
  %v1141 = vpop.permute.xlu0 %1140
  %1142 = vrot.lane.b32.xlu0 %v1131, 1
  %v1143 = vpop.permute.xlu0 %1142
  %vm1148 = vcmask 7168
  %v1149 = vsel %vm1148, 0.0, %v1137
  %v1150 = vsel %vm1148, 0.0, %v1139
  %v1151 = vsel %vm1148, 0.0, %v1141
  %v1152 = vsel %vm1148, 0.0, %v1143
  %1153 = vrot.lane.b32.xlu0 %v1128, 127
  %v1154 = vpop.permute.xlu0 %1153
  %1155 = vrot.lane.b32.xlu0 %v1129, 127
  %v1156 = vpop.permute.xlu0 %1155
  %1157 = vrot.lane.b32.xlu0 %v1130, 127
  %v1158 = vpop.permute.xlu0 %1157
  %1159 = vrot.lane.b32.xlu0 %v1131, 127
  %v1160 = vpop.permute.xlu0 %1159
  %vm1165 = vcmask 515072
  %v1166 = vsel %vm1165, %v1154, 0.0
  %v1167 = vsel %vm1165, %v1156, 0.0
  %v1168 = vsel %vm1165, %v1158, 0.0
  %v1169 = vsel %vm1165, %v1160, 0.0
  %1170 = vset.pattern.permute.xlu0 7
  %1171 = vperm.xlu0 %1170, %v48
  %v1172 = vpop.permute.xlu0 %1171
  %1174 = vset.pattern.permute.xlu0 7
  %1175 = vperm.xlu0 %1174, %v49
  %v1176 = vpop.permute.xlu0 %1175
  %1178 = vset.pattern.permute.xlu0 7
  %1179 = vperm.xlu0 %1178, %v50
  %v1180 = vpop.permute.xlu0 %1179
  %1182 = vset.pattern.permute.xlu0 7
  %1183 = vperm.xlu0 %1182, %v51
  %v1184 = vpop.permute.xlu0 %1183
  %v1186 = vmul.f32 %v1128, %v1172
  %v1187 = vmul.f32 %v1129, %v1176
  %v1188 = vmul.f32 %v1130, %v1180
  %v1189 = vmul.f32 %v1131, %v1184
  %1190 = vset.pattern.permute.xlu0 6
  %1191 = vperm.xlu0 %1190, %v48
  %v1192 = vpop.permute.xlu0 %1191
  %1194 = vset.pattern.permute.xlu0 6
  %1195 = vperm.xlu0 %1194, %v49
  %v1196 = vpop.permute.xlu0 %1195
  %1198 = vset.pattern.permute.xlu0 6
  %1199 = vperm.xlu0 %1198, %v50
  %v1200 = vpop.permute.xlu0 %1199
  %1202 = vset.pattern.permute.xlu0 6
  %1203 = vperm.xlu0 %1202, %v51
  %v1204 = vpop.permute.xlu0 %1203
  %v1206 = vmul.f32 %v1149, %v1192
  %v1207 = vmul.f32 %v1150, %v1196
  %v1208 = vmul.f32 %v1151, %v1200
  %v1209 = vmul.f32 %v1152, %v1204
  %v1210 = vadd.f32 %v1186, %v1206
  %v1211 = vadd.f32 %v1187, %v1207
  %v1212 = vadd.f32 %v1188, %v1208
  %v1213 = vadd.f32 %v1189, %v1209
  %1214 = vset.pattern.permute.xlu0 8
  %1215 = vperm.xlu0 %1214, %v48
  %v1216 = vpop.permute.xlu0 %1215
  %1218 = vset.pattern.permute.xlu0 8
  %1219 = vperm.xlu0 %1218, %v49
  %v1220 = vpop.permute.xlu0 %1219
  %1222 = vset.pattern.permute.xlu0 8
  %1223 = vperm.xlu0 %1222, %v50
  %v1224 = vpop.permute.xlu0 %1223
  %1226 = vset.pattern.permute.xlu0 8
  %1227 = vperm.xlu0 %1226, %v51
  %v1228 = vpop.permute.xlu0 %1227
  %v1230 = vmul.f32 %v1166, %v1216
  %v1231 = vmul.f32 %v1167, %v1220
  %v1232 = vmul.f32 %v1168, %v1224
  %v1233 = vmul.f32 %v1169, %v1228
  %v1234 = vadd.f32 %v1210, %v1230
  %v1235 = vadd.f32 %v1211, %v1231
  %v1236 = vadd.f32 %v1212, %v1232
  %v1237 = vadd.f32 %v1213, %v1233
  %v1238 = vld [vmem:[%s5] sm:$0xf]
  %v1239 = vld [vmem:[%s5 + $0x4] sm:$0xf]
  %v1240 = vpack.c.bf16 %v1235, %v1234
  %v1241 = vpack.c.bf16 %v1237, %v1236
  %1242 = vset.pattern.permute.xlu0 2
  %1243 = vperm.xlu0 %1242, %v52
  %v1244 = vpop.permute.xlu0 %1243
  %1246 = vset.pattern.permute.xlu0 2
  %1247 = vperm.xlu0 %1246, %v53
  %v1248 = vpop.permute.xlu0 %1247
  %v1252 = vunpack.c.l.b16 %v1238
  %v1253 = vunpack.c.l.b16 %v1239
  %v1254 = vpack.c.b16 %v1253, %v1252
  %v1256 = vsel %vm1072, %v1254, 0
  %1258 = vmatprep.subr.bf16.mxu0 0
  %1259 = vmatpush1.bf16.msra.mxu0 %v1240
  %1260 = vmatprep.subr.bf16.mxu0 0
  %1261 = vmatpush1.bf16.msra.mxu0 %v1241
  %1262 = vmatprep.subr.bf16.mxu0 0
  %1263 = vmatpush1.bf16.msra.mxu0 0
  %1264 = vmatprep.subr.bf16.mxu0 0
  %1265 = vmatpush1.bf16.msra.mxu0 0
  %1266 = vmatprep.subr.bf16.mxu0 0
  %1267 = vmatpush1.bf16.msra.mxu0 0
  %1268 = vmatprep.subr.bf16.mxu0 0
  %1269 = vmatpush1.bf16.msra.mxu0 0
  %1270 = vmatprep.subr.bf16.mxu0 0
  %1271 = vmatpush1.bf16.msra.mxu0 0
  %1272 = vmatprep.subr.bf16.mxu0 0
  %1273 = vmatpush1.bf16.msra.mxu0 0
  %1274 = vmatprep.subr.bf16.mxu0 0
  %1275 = vmatpush1.bf16.msra.mxu0 0
  %1276 = vmatprep.subr.bf16.mxu0 0
  %1277 = vmatpush1.bf16.msra.mxu0 0
  %1278 = vmatprep.subr.bf16.mxu0 0
  %1279 = vmatpush1.bf16.msra.mxu0 0
  %1280 = vmatprep.subr.bf16.mxu0 0
  %1281 = vmatpush1.bf16.msra.mxu0 0
  %1282 = vmatprep.subr.bf16.mxu0 0
  %1283 = vmatpush1.bf16.msra.mxu0 0
  %1284 = vmatprep.subr.bf16.mxu0 0
  %1285 = vmatpush1.bf16.msra.mxu0 0
  %1286 = vmatprep.subr.bf16.mxu0 0
  %1287 = vmatpush1.bf16.msra.mxu0 0
  %1288 = vmatprep.subr.bf16.mxu0 0
  %1289 = vmatpush1.bf16.msra.mxu0 0
  %1290 = vmatprep.mubr.bf16.mxu0 0
  %1291 = vmatmul.mubr.bf16.gmra.mrb[0].mxu0 %v1256
  %v1292 = vpop.f32.mrb[0].mxu0
  %v1293 = vadd.f32 %v1244, %v1292
  %v1294 = vpop.f32.mrb[0].mxu0
  %v1295 = vpop.f32.mrb[0].mxu0
  %v1296 = vadd.f32 %v1248, %v1295
  %v1297 = vpop.f32.mrb[0].mxu0
  %1298 = vdwg.mxu0
  %v1299 = vmax.f32 %v1293, 0.0
  %v1300 = vmax.f32 %v1296, 0.0
  %1301 = vset.pattern.permute.xlu0 9
  %1302 = vperm.xlu0 %1301, %v48
  %v1303 = vpop.permute.xlu0 %1302
  %1305 = vset.pattern.permute.xlu0 9
  %1306 = vperm.xlu0 %1305, %v49
  %v1307 = vpop.permute.xlu0 %1306
  %1309 = vset.pattern.permute.xlu0 9
  %1310 = vperm.xlu0 %1309, %v50
  %v1311 = vpop.permute.xlu0 %1310
  %1313 = vset.pattern.permute.xlu0 9
  %1314 = vperm.xlu0 %1313, %v51
  %v1315 = vpop.permute.xlu0 %1314
  %v1317 = vmul.f32 %v1299, %v1303
  %v1318 = vmul.f32 %v1300, %v1307
  %v1319 = vmul.f32 %v1299, %v1311
  %v1320 = vmul.f32 %v1300, %v1315
  %v1321 = vpack.c.bf16 %v1318, %v1317
  %v1322 = vpack.c.bf16 %v1320, %v1319
  %1323 = vset.pattern.permute.xlu0 10
  %1324 = vperm.xlu0 %1323, %v48
  %v1325 = vpop.permute.xlu0 %1324
  %1327 = vset.pattern.permute.xlu0 10
  %1328 = vperm.xlu0 %1327, %v49
  %v1329 = vpop.permute.xlu0 %1328
  %1331 = vset.pattern.permute.xlu0 10
  %1332 = vperm.xlu0 %1331, %v50
  %v1333 = vpop.permute.xlu0 %1332
  %1335 = vset.pattern.permute.xlu0 10
  %1336 = vperm.xlu0 %1335, %v51
  %v1337 = vpop.permute.xlu0 %1336
  %v1339 = vmul.f32 %v1299, %v1325
  %v1340 = vmul.f32 %v1300, %v1329
  %v1341 = vmul.f32 %v1299, %v1333
  %v1342 = vmul.f32 %v1300, %v1337
  %v1343 = vpack.c.bf16 %v1340, %v1339
  %v1344 = vpack.c.bf16 %v1342, %v1341
  %1345 = vset.pattern.permute.xlu0 11
  %1346 = vperm.xlu0 %1345, %v48
  %v1347 = vpop.permute.xlu0 %1346
  %1349 = vset.pattern.permute.xlu0 11
  %1350 = vperm.xlu0 %1349, %v49
  %v1351 = vpop.permute.xlu0 %1350
  %1353 = vset.pattern.permute.xlu0 11
  %1354 = vperm.xlu0 %1353, %v50
  %v1355 = vpop.permute.xlu0 %1354
  %1357 = vset.pattern.permute.xlu0 11
  %1358 = vperm.xlu0 %1357, %v51
  %v1359 = vpop.permute.xlu0 %1358
  %v1361 = vmul.f32 %v1299, %v1347
  %v1362 = vmul.f32 %v1300, %v1351
  %v1363 = vmul.f32 %v1299, %v1355
  %v1364 = vmul.f32 %v1300, %v1359
  %v1365 = vpack.c.bf16 %v1362, %v1361
  %v1366 = vpack.c.bf16 %v1364, %v1363
  %1369 = vrot.lane.b32.xlu0 %v1343, 64
  %v1370 = vpop.permute.xlu0 %1369
  %1371 = vrot.lane.b32.xlu0 %v1344, 64
  %v1372 = vpop.permute.xlu0 %1371
  %vm1373 = vcmask 523264
  %v1376 = vsel %vm1373, %v1321, %v1370
  %v1380 = vsel %vm1373, %v1322, %v1372
  %v1382 = vld [vmem:[%s10] sm:$0xf]
  %v1383 = vld [vmem:[%s10 + $0x4] sm:$0xf]
  %v1384 = vld [vmem:[%s10 + $0x8] sm:$0xf]
  %v1385 = vld [vmem:[%s10 + $0xc] sm:$0xf]
  %v1386 = vld [vmem:[%s10 + $0x10] sm:$0xf]
  %v1387 = vld [vmem:[%s10 + $0x14] sm:$0xf]
  %v1388 = vld [vmem:[%s10 + $0x18] sm:$0xf]
  %v1389 = vld [vmem:[%s10 + $0x1c] sm:$0xf]
  %v1390 = vld [vmem:[%s10 + $0x20] sm:$0xf]
  %v1391 = vld [vmem:[%s10 + $0x24] sm:$0xf]
  %v1392 = vld [vmem:[%s10 + $0x28] sm:$0xf]
  %v1393 = vld [vmem:[%s10 + $0x2c] sm:$0xf]
  %v1394 = vld [vmem:[%s10 + $0x30] sm:$0xf]
  %v1395 = vld [vmem:[%s10 + $0x34] sm:$0xf]
  %v1396 = vld [vmem:[%s10 + $0x38] sm:$0xf]
  %v1397 = vld [vmem:[%s10 + $0x3c] sm:$0xf]
  %v1398 = vld [vmem:[%s10 + $0x40] sm:$0xf]
  %v1399 = vld [vmem:[%s10 + $0x44] sm:$0xf]
  %v1400 = vld [vmem:[%s10 + $0x48] sm:$0xf]
  %v1401 = vld [vmem:[%s10 + $0x4c] sm:$0xf]
  %v1402 = vld [vmem:[%s10 + $0x50] sm:$0xf]
  %v1403 = vld [vmem:[%s10 + $0x54] sm:$0xf]
  %v1404 = vld [vmem:[%s10 + $0x58] sm:$0xf]
  %v1405 = vld [vmem:[%s10 + $0x5c] sm:$0xf]
  %v1430 = vunpack.c.l.b16 %v1382
  %v1431 = vunpack.c.l.b16 %v1383
  %v1432 = vunpack.c.l.b16 %v1384
  %v1433 = vunpack.c.l.b16 %v1385
  %v1434 = vunpack.c.l.b16 %v1386
  %v1435 = vunpack.c.l.b16 %v1387
  %v1436 = vunpack.c.l.b16 %v1388
  %v1437 = vunpack.c.l.b16 %v1389
  %v1438 = vunpack.c.l.b16 %v1390
  %v1439 = vunpack.c.l.b16 %v1391
  %v1440 = vunpack.c.l.b16 %v1392
  %v1441 = vunpack.c.l.b16 %v1393
  %v1442 = vunpack.c.l.b16 %v1394
  %v1443 = vunpack.c.l.b16 %v1395
  %v1444 = vunpack.c.l.b16 %v1396
  %v1445 = vunpack.c.l.b16 %v1397
  %v1446 = vunpack.c.l.b16 %v1398
  %v1447 = vunpack.c.l.b16 %v1399
  %v1448 = vunpack.c.l.b16 %v1400
  %v1449 = vunpack.c.l.b16 %v1401
  %v1450 = vunpack.c.l.b16 %v1402
  %v1451 = vunpack.c.l.b16 %v1403
  %v1452 = vunpack.c.l.b16 %v1404
  %v1453 = vunpack.c.l.b16 %v1405
  %v1454 = vpack.c.b16 %v1431, %v1430
  %v1455 = vpack.c.b16 %v1433, %v1432
  %v1456 = vpack.c.b16 %v1435, %v1434
  %v1457 = vpack.c.b16 %v1437, %v1436
  %v1458 = vpack.c.b16 %v1439, %v1438
  %v1459 = vpack.c.b16 %v1441, %v1440
  %v1460 = vpack.c.b16 %v1443, %v1442
  %v1461 = vpack.c.b16 %v1445, %v1444
  %v1462 = vpack.c.b16 %v1447, %v1446
  %v1463 = vpack.c.b16 %v1449, %v1448
  %v1464 = vpack.c.b16 %v1451, %v1450
  %v1465 = vpack.c.b16 %v1453, %v1452
  %v1479 = vsel %vm1373, %v1365, 0
  %v1482 = vsel %vm1373, %v1366, 0
  %1484 = vmatprep.subr.bf16.mxu0 0
  %1485 = vmatpush1.bf16.msra.mxu0 %v1454
  %1486 = vmatprep.subr.bf16.mxu0 0
  %1487 = vmatpush1.bf16.msra.mxu0 %v1455
  %1488 = vmatprep.subr.bf16.mxu0 0
  %1489 = vmatpush1.bf16.msra.mxu0 %v1456
  %1490 = vmatprep.subr.bf16.mxu0 0
  %1491 = vmatpush1.bf16.msra.mxu0 %v1457
  %1492 = vmatprep.subr.bf16.mxu0 0
  %1493 = vmatpush1.bf16.msra.mxu0 %v1458
  %1494 = vmatprep.subr.bf16.mxu0 0
  %1495 = vmatpush1.bf16.msra.mxu0 %v1459
  %1496 = vmatprep.subr.bf16.mxu0 0
  %1497 = vmatpush1.bf16.msra.mxu0 %v1460
  %1498 = vmatprep.subr.bf16.mxu0 0
  %1499 = vmatpush1.bf16.msra.mxu0 %v1461
  %1500 = vmatprep.subr.bf16.mxu0 0
  %1501 = vmatpush1.bf16.msra.mxu0 %v1462
  %1502 = vmatprep.subr.bf16.mxu0 0
  %1503 = vmatpush1.bf16.msra.mxu0 %v1463
  %1504 = vmatprep.subr.bf16.mxu0 0
  %1505 = vmatpush1.bf16.msra.mxu0 %v1464
  %1506 = vmatprep.subr.bf16.mxu0 0
  %1507 = vmatpush1.bf16.msra.mxu0 %v1465
  %1508 = vmatprep.subr.bf16.mxu0 0
  %1509 = vmatpush1.bf16.msra.mxu0 0
  %1510 = vmatprep.subr.bf16.mxu0 0
  %1511 = vmatpush1.bf16.msra.mxu0 0
  %1512 = vmatprep.subr.bf16.mxu0 0
  %1513 = vmatpush1.bf16.msra.mxu0 0
  %1514 = vmatprep.subr.bf16.mxu0 0
  %1515 = vmatpush1.bf16.msra.mxu0 0
  %1516 = vmatprep.mubr.bf16.mxu0 %v1479
  %1517 = vmatmul.mubr.bf16.gmra.mrb[0].mxu0 %v1376
  %v1518 = vpop.f32.mrb[0].mxu0
  %v1519 = vadd.f32 0.0, %v1518
  %v1520 = vpop.f32.mrb[0].mxu0
  %v1521 = vpop.f32.mrb[0].mxu0
  %v1522 = vadd.f32 0.0, %v1521
  %v1523 = vpop.f32.mrb[0].mxu0
  %1524 = vmatprep.mubr.bf16.mxu0 %v1482
  %1525 = vmatmul.mubr.bf16.gmra.mrb[0].mxu0 %v1380
  %v1526 = vpop.f32.mrb[0].mxu0
  %v1527 = vadd.f32 0.0, %v1526
  %v1528 = vpop.f32.mrb[0].mxu0
  %v1529 = vpop.f32.mrb[0].mxu0
  %v1530 = vadd.f32 0.0, %v1529
  %v1531 = vpop.f32.mrb[0].mxu0
  %1532 = vdwg.mxu0
  %s1533 = scalar_lea.vmem %s4, 16
  %v1534 = vld [vmem:[%s1533] sm:$0xf]
  %v1535 = vld [vmem:[%s1533 + $0x4] sm:$0xf]
  %v1536 = vld [vmem:[%s1533 + $0x8] sm:$0xf]
  %v1537 = vld [vmem:[%s1533 + $0xc] sm:$0xf]
  %v1538 = vpack.c.bf16 %v1522, %v1519
  %v1539 = vpack.c.bf16 %v1530, %v1527
  %1540 = vset.pattern.permute.xlu0 3
  %1541 = vperm.xlu0 %1540, %v52
  %v1542 = vpop.permute.xlu0 %1541
  %1544 = vset.pattern.permute.xlu0 3
  %1545 = vperm.xlu0 %1544, %v53
  %v1546 = vpop.permute.xlu0 %1545
  %1548 = vset.pattern.permute.xlu0 3
  %1549 = vperm.xlu0 %1548, %v54
  %v1550 = vpop.permute.xlu0 %1549
  %1552 = vset.pattern.permute.xlu0 3
  %1553 = vperm.xlu0 %1552, %v55
  %v1554 = vpop.permute.xlu0 %1553
  %v1560 = vunpack.c.l.b16 %v1534
  %v1561 = vunpack.c.l.b16 %v1535
  %v1562 = vunpack.c.l.b16 %v1536
  %v1563 = vunpack.c.l.b16 %v1537
  %v1564 = vpack.c.b16 %v1561, %v1560
  %v1565 = vpack.c.b16 %v1563, %v1562
  %v1567 = vsel %vm1072, %v1564, 0
  %v1570 = vsel %vm1072, %v1565, 0
  %1572 = vmatprep.subr.bf16.mxu0 0
  %1573 = vmatpush1.bf16.msra.mxu0 %v1538
  %1574 = vmatprep.subr.bf16.mxu0 0
  %1575 = vmatpush1.bf16.msra.mxu0 %v1539
  %1576 = vmatprep.subr.bf16.mxu0 0
  %1577 = vmatpush1.bf16.msra.mxu0 0
  %1578 = vmatprep.subr.bf16.mxu0 0
  %1579 = vmatpush1.bf16.msra.mxu0 0
  %1580 = vmatprep.subr.bf16.mxu0 0
  %1581 = vmatpush1.bf16.msra.mxu0 0
  %1582 = vmatprep.subr.bf16.mxu0 0
  %1583 = vmatpush1.bf16.msra.mxu0 0
  %1584 = vmatprep.subr.bf16.mxu0 0
  %1585 = vmatpush1.bf16.msra.mxu0 0
  %1586 = vmatprep.subr.bf16.mxu0 0
  %1587 = vmatpush1.bf16.msra.mxu0 0
  %1588 = vmatprep.subr.bf16.mxu0 0
  %1589 = vmatpush1.bf16.msra.mxu0 0
  %1590 = vmatprep.subr.bf16.mxu0 0
  %1591 = vmatpush1.bf16.msra.mxu0 0
  %1592 = vmatprep.subr.bf16.mxu0 0
  %1593 = vmatpush1.bf16.msra.mxu0 0
  %1594 = vmatprep.subr.bf16.mxu0 0
  %1595 = vmatpush1.bf16.msra.mxu0 0
  %1596 = vmatprep.subr.bf16.mxu0 0
  %1597 = vmatpush1.bf16.msra.mxu0 0
  %1598 = vmatprep.subr.bf16.mxu0 0
  %1599 = vmatpush1.bf16.msra.mxu0 0
  %1600 = vmatprep.subr.bf16.mxu0 0
  %1601 = vmatpush1.bf16.msra.mxu0 0
  %1602 = vmatprep.subr.bf16.mxu0 0
  %1603 = vmatpush1.bf16.msra.mxu0 0
  %1604 = vmatprep.mubr.bf16.mxu0 0
  %1605 = vmatmul.mubr.bf16.gmra.mrb[0].mxu0 %v1567
  %v1606 = vpop.f32.mrb[0].mxu0
  %v1607 = vadd.f32 %v1542, %v1606
  %v1608 = vpop.f32.mrb[0].mxu0
  %v1609 = vpop.f32.mrb[0].mxu0
  %v1610 = vadd.f32 %v1546, %v1609
  %v1611 = vpop.f32.mrb[0].mxu0
  %1612 = vmatprep.mubr.bf16.mxu0 0
  %1613 = vmatmul.mubr.bf16.gmra.mrb[0].mxu0 %v1570
  %v1614 = vpop.f32.mrb[0].mxu0
  %v1615 = vadd.f32 %v1550, %v1614
  %v1616 = vpop.f32.mrb[0].mxu0
  %v1617 = vpop.f32.mrb[0].mxu0
  %v1618 = vadd.f32 %v1554, %v1617
  %v1619 = vpop.f32.mrb[0].mxu0
  %1620 = vdwg.mxu0
  %v1621 = vmax.f32 %v1607, 0.0
  %v1622 = vmax.f32 %v1610, 0.0
  %v1623 = vmax.f32 %v1615, 0.0
  %v1624 = vmax.f32 %v1618, 0.0
  %1629 = vrot.lane.b32.xlu0 %v1621, 1
  %v1630 = vpop.permute.xlu0 %1629
  %1631 = vrot.lane.b32.xlu0 %v1622, 1
  %v1632 = vpop.permute.xlu0 %1631
  %1633 = vrot.lane.b32.xlu0 %v1623, 1
  %v1634 = vpop.permute.xlu0 %1633
  %1635 = vrot.lane.b32.xlu0 %v1624, 1
  %v1636 = vpop.permute.xlu0 %1635
  %v1641 = vsel %vm1148, 0.0, %v1630
  %v1642 = vsel %vm1148, 0.0, %v1632
  %v1643 = vsel %vm1148, 0.0, %v1634
  %v1644 = vsel %vm1148, 0.0, %v1636
  %1645 = vrot.lane.b32.xlu0 %v1621, 127
  %v1646 = vpop.permute.xlu0 %1645
  %1647 = vrot.lane.b32.xlu0 %v1622, 127
  %v1648 = vpop.permute.xlu0 %1647
  %1649 = vrot.lane.b32.xlu0 %v1623, 127
  %v1650 = vpop.permute.xlu0 %1649
  %1651 = vrot.lane.b32.xlu0 %v1624, 127
  %v1652 = vpop.permute.xlu0 %1651
  %vm1657 = vcmask 252928
  %v1658 = vsel %vm1657, %v1646, 0.0
  %v1659 = vsel %vm1657, %v1648, 0.0
  %v1660 = vsel %vm1657, %v1650, 0.0
  %v1661 = vsel %vm1657, %v1652, 0.0
  %1662 = vset.pattern.permute.xlu0 13
  %1663 = vperm.xlu0 %1662, %v48
  %v1664 = vpop.permute.xlu0 %1663
  %1666 = vset.pattern.permute.xlu0 13
  %1667 = vperm.xlu0 %1666, %v49
  %v1668 = vpop.permute.xlu0 %1667
  %1670 = vset.pattern.permute.xlu0 13
  %1671 = vperm.xlu0 %1670, %v50
  %v1672 = vpop.permute.xlu0 %1671
  %1674 = vset.pattern.permute.xlu0 13
  %1675 = vperm.xlu0 %1674, %v51
  %v1676 = vpop.permute.xlu0 %1675
  %v1678 = vmul.f32 %v1621, %v1664
  %v1679 = vmul.f32 %v1622, %v1668
  %v1680 = vmul.f32 %v1623, %v1672
  %v1681 = vmul.f32 %v1624, %v1676
  %1682 = vset.pattern.permute.xlu0 12
  %1683 = vperm.xlu0 %1682, %v48
  %v1684 = vpop.permute.xlu0 %1683
  %1686 = vset.pattern.permute.xlu0 12
  %1687 = vperm.xlu0 %1686, %v49
  %v1688 = vpop.permute.xlu0 %1687
  %1690 = vset.pattern.permute.xlu0 12
  %1691 = vperm.xlu0 %1690, %v50
  %v1692 = vpop.permute.xlu0 %1691
  %1694 = vset.pattern.permute.xlu0 12
  %1695 = vperm.xlu0 %1694, %v51
  %v1696 = vpop.permute.xlu0 %1695
  %v1698 = vmul.f32 %v1641, %v1684
  %v1699 = vmul.f32 %v1642, %v1688
  %v1700 = vmul.f32 %v1643, %v1692
  %v1701 = vmul.f32 %v1644, %v1696
  %v1702 = vadd.f32 %v1678, %v1698
  %v1703 = vadd.f32 %v1679, %v1699
  %v1704 = vadd.f32 %v1680, %v1700
  %v1705 = vadd.f32 %v1681, %v1701
  %1706 = vset.pattern.permute.xlu0 14
  %1707 = vperm.xlu0 %1706, %v48
  %v1708 = vpop.permute.xlu0 %1707
  %1710 = vset.pattern.permute.xlu0 14
  %1711 = vperm.xlu0 %1710, %v49
  %v1712 = vpop.permute.xlu0 %1711
  %1714 = vset.pattern.permute.xlu0 14
  %1715 = vperm.xlu0 %1714, %v50
  %v1716 = vpop.permute.xlu0 %1715
  %1718 = vset.pattern.permute.xlu0 14
  %1719 = vperm.xlu0 %1718, %v51
  %v1720 = vpop.permute.xlu0 %1719
  %v1722 = vmul.f32 %v1658, %v1708
  %v1723 = vmul.f32 %v1659, %v1712
  %v1724 = vmul.f32 %v1660, %v1716
  %v1725 = vmul.f32 %v1661, %v1720
  %v1726 = vadd.f32 %v1702, %v1722
  %v1727 = vadd.f32 %v1703, %v1723
  %v1728 = vadd.f32 %v1704, %v1724
  %v1729 = vadd.f32 %v1705, %v1725
  %s1730 = scalar_lea.vmem %s5, 8
  %v1731 = vld [vmem:[%s1730] sm:$0xf]
  %v1732 = vld [vmem:[%s1730 + $0x4] sm:$0xf]
  %v1733 = vpack.c.bf16 %v1727, %v1726
  %v1734 = vpack.c.bf16 %v1729, %v1728
  %1735 = vset.pattern.permute.xlu0 4
  %1736 = vperm.xlu0 %1735, %v52
  %v1737 = vpop.permute.xlu0 %1736
  %1739 = vset.pattern.permute.xlu0 4
  %1740 = vperm.xlu0 %1739, %v53
  %v1741 = vpop.permute.xlu0 %1740
  %v1745 = vunpack.c.l.b16 %v1731
  %v1746 = vunpack.c.l.b16 %v1732
  %v1747 = vpack.c.b16 %v1746, %v1745
  %v1749 = vsel %vm1072, %v1747, 0
  %1751 = vmatprep.subr.bf16.mxu0 0
  %1752 = vmatpush1.bf16.msra.mxu0 %v1733
  %1753 = vmatprep.subr.bf16.mxu0 0
  %1754 = vmatpush1.bf16.msra.mxu0 %v1734
  %1755 = vmatprep.subr.bf16.mxu0 0
  %1756 = vmatpush1.bf16.msra.mxu0 0
  %1757 = vmatprep.subr.bf16.mxu0 0
  %1758 = vmatpush1.bf16.msra.mxu0 0
  %1759 = vmatprep.subr.bf16.mxu0 0
  %1760 = vmatpush1.bf16.msra.mxu0 0
  %1761 = vmatprep.subr.bf16.mxu0 0
  %1762 = vmatpush1.bf16.msra.mxu0 0
  %1763 = vmatprep.subr.bf16.mxu0 0
  %1764 = vmatpush1.bf16.msra.mxu0 0
  %1765 = vmatprep.subr.bf16.mxu0 0
  %1766 = vmatpush1.bf16.msra.mxu0 0
  %1767 = vmatprep.subr.bf16.mxu0 0
  %1768 = vmatpush1.bf16.msra.mxu0 0
  %1769 = vmatprep.subr.bf16.mxu0 0
  %1770 = vmatpush1.bf16.msra.mxu0 0
  %1771 = vmatprep.subr.bf16.mxu0 0
  %1772 = vmatpush1.bf16.msra.mxu0 0
  %1773 = vmatprep.subr.bf16.mxu0 0
  %1774 = vmatpush1.bf16.msra.mxu0 0
  %1775 = vmatprep.subr.bf16.mxu0 0
  %1776 = vmatpush1.bf16.msra.mxu0 0
  %1777 = vmatprep.subr.bf16.mxu0 0
  %1778 = vmatpush1.bf16.msra.mxu0 0
  %1779 = vmatprep.subr.bf16.mxu0 0
  %1780 = vmatpush1.bf16.msra.mxu0 0
  %1781 = vmatprep.subr.bf16.mxu0 0
  %1782 = vmatpush1.bf16.msra.mxu0 0
  %1783 = vmatprep.mubr.bf16.mxu0 0
  %1784 = vmatmul.mubr.bf16.gmra.mrb[0].mxu0 %v1749
  %v1785 = vpop.f32.mrb[0].mxu0
  %v1786 = vadd.f32 %v1737, %v1785
  %v1787 = vpop.f32.mrb[0].mxu0
  %v1788 = vpop.f32.mrb[0].mxu0
  %v1789 = vadd.f32 %v1741, %v1788
  %v1790 = vpop.f32.mrb[0].mxu0
  %1791 = vdwg.mxu0
  %v1792 = vmax.f32 %v1786, 0.0
  %v1793 = vmax.f32 %v1789, 0.0
  %1794 = vset.pattern.permute.xlu0 15
  %1795 = vperm.xlu0 %1794, %v48
  %v1796 = vpop.permute.xlu0 %1795
  %1798 = vset.pattern.permute.xlu0 15
  %1799 = vperm.xlu0 %1798, %v49
  %v1800 = vpop.permute.xlu0 %1799
  %1802 = vset.pattern.permute.xlu0 15
  %1803 = vperm.xlu0 %1802, %v50
  %v1804 = vpop.permute.xlu0 %1803
  %1806 = vset.pattern.permute.xlu0 15
  %1807 = vperm.xlu0 %1806, %v51
  %v1808 = vpop.permute.xlu0 %1807
  %v1810 = vmul.f32 %v1792, %v1796
  %v1811 = vmul.f32 %v1793, %v1800
  %v1812 = vmul.f32 %v1792, %v1804
  %v1813 = vmul.f32 %v1793, %v1808
  %v1814 = vpack.c.bf16 %v1811, %v1810
  %v1815 = vpack.c.bf16 %v1813, %v1812
  %1816 = vset.pattern.permute.xlu0 16
  %1817 = vperm.xlu0 %1816, %v48
  %v1818 = vpop.permute.xlu0 %1817
  %1820 = vset.pattern.permute.xlu0 16
  %1821 = vperm.xlu0 %1820, %v49
  %v1822 = vpop.permute.xlu0 %1821
  %1824 = vset.pattern.permute.xlu0 16
  %1825 = vperm.xlu0 %1824, %v50
  %v1826 = vpop.permute.xlu0 %1825
  %1828 = vset.pattern.permute.xlu0 16
  %1829 = vperm.xlu0 %1828, %v51
  %v1830 = vpop.permute.xlu0 %1829
  %v1832 = vmul.f32 %v1792, %v1818
  %v1833 = vmul.f32 %v1793, %v1822
  %v1834 = vmul.f32 %v1792, %v1826
  %v1835 = vmul.f32 %v1793, %v1830
  %v1836 = vpack.c.bf16 %v1833, %v1832
  %v1837 = vpack.c.bf16 %v1835, %v1834
  %1838 = vset.pattern.permute.xlu0 17
  %1839 = vperm.xlu0 %1838, %v48
  %v1840 = vpop.permute.xlu0 %1839
  %1842 = vset.pattern.permute.xlu0 17
  %1843 = vperm.xlu0 %1842, %v49
  %v1844 = vpop.permute.xlu0 %1843
  %1846 = vset.pattern.permute.xlu0 17
  %1847 = vperm.xlu0 %1846, %v50
  %v1848 = vpop.permute.xlu0 %1847
  %1850 = vset.pattern.permute.xlu0 17
  %1851 = vperm.xlu0 %1850, %v51
  %v1852 = vpop.permute.xlu0 %1851
  %v1854 = vmul.f32 %v1792, %v1840
  %v1855 = vmul.f32 %v1793, %v1844
  %v1856 = vmul.f32 %v1792, %v1848
  %v1857 = vmul.f32 %v1793, %v1852
  %v1858 = vpack.c.bf16 %v1855, %v1854
  %v1859 = vpack.c.bf16 %v1857, %v1856
  %1862 = vrot.lane.b32.xlu0 %v1836, 32
  %v1863 = vpop.permute.xlu0 %1862
  %1864 = vrot.lane.b32.xlu0 %v1837, 32
  %v1865 = vpop.permute.xlu0 %1864
  %1868 = vrot.lane.b32.xlu0 %v1858, 64
  %v1869 = vpop.permute.xlu0 %1868
  %1870 = vrot.lane.b32.xlu0 %v1859, 64
  %v1871 = vpop.permute.xlu0 %1870
  %v1874 = vsel %vm1072, %v1814, %v1863
  %v1877 = vsel %vm1072, %v1815, %v1865
  %v1879 = vsel %vm1373, %v1874, %v1869
  %v1881 = vsel %vm1373, %v1877, %v1871
  %v1882 = vld [vmem:[%s11] sm:$0xf]
  %v1883 = vld [vmem:[%s11 + $0x4] sm:$0xf]
  %v1884 = vld [vmem:[%s11 + $0x8] sm:$0xf]
  %v1885 = vld [vmem:[%s11 + $0xc] sm:$0xf]
  %v1886 = vld [vmem:[%s11 + $0x10] sm:$0xf]
  %v1887 = vld [vmem:[%s11 + $0x14] sm:$0xf]
  %v1888 = vld [vmem:[%s11 + $0x18] sm:$0xf]
  %v1889 = vld [vmem:[%s11 + $0x1c] sm:$0xf]
  %v1890 = vld [vmem:[%s11 + $0x20] sm:$0xf]
  %v1891 = vld [vmem:[%s11 + $0x24] sm:$0xf]
  %v1892 = vld [vmem:[%s11 + $0x28] sm:$0xf]
  %v1893 = vld [vmem:[%s11 + $0x2c] sm:$0xf]
  %v1906 = vunpack.c.l.b16 %v1882
  %v1907 = vunpack.c.l.b16 %v1883
  %v1908 = vunpack.c.l.b16 %v1884
  %v1909 = vunpack.c.l.b16 %v1885
  %v1910 = vunpack.c.l.b16 %v1886
  %v1911 = vunpack.c.l.b16 %v1887
  %v1912 = vunpack.c.l.b16 %v1888
  %v1913 = vunpack.c.l.b16 %v1889
  %v1914 = vunpack.c.l.b16 %v1890
  %v1915 = vunpack.c.l.b16 %v1891
  %v1916 = vunpack.c.l.b16 %v1892
  %v1917 = vunpack.c.l.b16 %v1893
  %v1918 = vpack.c.b16 %v1907, %v1906
  %v1919 = vpack.c.b16 %v1909, %v1908
  %v1920 = vpack.c.b16 %v1911, %v1910
  %v1921 = vpack.c.b16 %v1913, %v1912
  %v1922 = vpack.c.b16 %v1915, %v1914
  %v1923 = vpack.c.b16 %v1917, %v1916
  %vm1930 = vcmask 785408
  %v1931 = vsel %vm1930, %v1879, 0
  %v1933 = vsel %vm1930, %v1881, 0
  %1935 = vmatprep.subr.bf16.mxu0 0
  %1936 = vmatpush1.bf16.msra.mxu0 %v1918
  %1937 = vmatprep.subr.bf16.mxu0 0
  %1938 = vmatpush1.bf16.msra.mxu0 %v1919
  %1939 = vmatprep.subr.bf16.mxu0 0
  %1940 = vmatpush1.bf16.msra.mxu0 %v1920
  %1941 = vmatprep.subr.bf16.mxu0 0
  %1942 = vmatpush1.bf16.msra.mxu0 %v1921
  %1943 = vmatprep.subr.bf16.mxu0 0
  %1944 = vmatpush1.bf16.msra.mxu0 %v1922
  %1945 = vmatprep.subr.bf16.mxu0 0
  %1946 = vmatpush1.bf16.msra.mxu0 %v1923
  %1947 = vmatprep.subr.bf16.mxu0 0
  %1948 = vmatpush1.bf16.msra.mxu0 0
  %1949 = vmatprep.subr.bf16.mxu0 0
  %1950 = vmatpush1.bf16.msra.mxu0 0
  %1951 = vmatprep.subr.bf16.mxu0 0
  %1952 = vmatpush1.bf16.msra.mxu0 0
  %1953 = vmatprep.subr.bf16.mxu0 0
  %1954 = vmatpush1.bf16.msra.mxu0 0
  %1955 = vmatprep.subr.bf16.mxu0 0
  %1956 = vmatpush1.bf16.msra.mxu0 0
  %1957 = vmatprep.subr.bf16.mxu0 0
  %1958 = vmatpush1.bf16.msra.mxu0 0
  %1959 = vmatprep.subr.bf16.mxu0 0
  %1960 = vmatpush1.bf16.msra.mxu0 0
  %1961 = vmatprep.subr.bf16.mxu0 0
  %1962 = vmatpush1.bf16.msra.mxu0 0
  %1963 = vmatprep.subr.bf16.mxu0 0
  %1964 = vmatpush1.bf16.msra.mxu0 0
  %1965 = vmatprep.subr.bf16.mxu0 0
  %1966 = vmatpush1.bf16.msra.mxu0 0
  %1967 = vmatprep.mubr.bf16.mxu0 0
  %1968 = vmatmul.mubr.bf16.gmra.mrb[0].mxu0 %v1931
  %v1969 = vpop.f32.mrb[0].mxu0
  %v1970 = vadd.f32 0.0, %v1969
  %v1971 = vpop.f32.mrb[0].mxu0
  %v1972 = vpop.f32.mrb[0].mxu0
  %v1973 = vadd.f32 0.0, %v1972
  %v1974 = vpop.f32.mrb[0].mxu0
  %1975 = vmatprep.mubr.bf16.mxu0 0
  %1976 = vmatmul.mubr.bf16.gmra.mrb[0].mxu0 %v1933
  %v1977 = vpop.f32.mrb[0].mxu0
  %v1978 = vadd.f32 0.0, %v1977
  %v1979 = vpop.f32.mrb[0].mxu0
  %v1980 = vpop.f32.mrb[0].mxu0
  %v1981 = vadd.f32 0.0, %v1980
  %v1982 = vpop.f32.mrb[0].mxu0
  %1983 = vdwg.mxu0
  %s1984 = scalar_lea.vmem %s4, 32
  %v1985 = vld [vmem:[%s1984] sm:$0xf]
  %v1986 = vld [vmem:[%s1984 + $0x4] sm:$0xf]
  %v1987 = vld [vmem:[%s1984 + $0x8] sm:$0xf]
  %v1988 = vld [vmem:[%s1984 + $0xc] sm:$0xf]
  %v1989 = vpack.c.bf16 %v1973, %v1970
  %v1990 = vpack.c.bf16 %v1981, %v1978
  %1991 = vset.pattern.permute.xlu0 5
  %1992 = vperm.xlu0 %1991, %v52
  %v1993 = vpop.permute.xlu0 %1992
  %1995 = vset.pattern.permute.xlu0 5
  %1996 = vperm.xlu0 %1995, %v53
  %v1997 = vpop.permute.xlu0 %1996
  %1999 = vset.pattern.permute.xlu0 5
  %2000 = vperm.xlu0 %1999, %v54
  %v2001 = vpop.permute.xlu0 %2000
  %2003 = vset.pattern.permute.xlu0 5
  %2004 = vperm.xlu0 %2003, %v55
  %v2005 = vpop.permute.xlu0 %2004
  %v2011 = vunpack.c.l.b16 %v1985
  %v2012 = vunpack.c.l.b16 %v1986
  %v2013 = vunpack.c.l.b16 %v1987
  %v2014 = vunpack.c.l.b16 %v1988
  %v2015 = vpack.c.b16 %v2012, %v2011
  %v2016 = vpack.c.b16 %v2014, %v2013
  %v2018 = vsel %vm1072, %v2015, 0
  %v2021 = vsel %vm1072, %v2016, 0
  %2023 = vmatprep.subr.bf16.mxu0 0
  %2024 = vmatpush1.bf16.msra.mxu0 %v1989
  %2025 = vmatprep.subr.bf16.mxu0 0
  %2026 = vmatpush1.bf16.msra.mxu0 %v1990
  %2027 = vmatprep.subr.bf16.mxu0 0
  %2028 = vmatpush1.bf16.msra.mxu0 0
  %2029 = vmatprep.subr.bf16.mxu0 0
  %2030 = vmatpush1.bf16.msra.mxu0 0
  %2031 = vmatprep.subr.bf16.mxu0 0
  %2032 = vmatpush1.bf16.msra.mxu0 0
  %2033 = vmatprep.subr.bf16.mxu0 0
  %2034 = vmatpush1.bf16.msra.mxu0 0
  %2035 = vmatprep.subr.bf16.mxu0 0
  %2036 = vmatpush1.bf16.msra.mxu0 0
  %2037 = vmatprep.subr.bf16.mxu0 0
  %2038 = vmatpush1.bf16.msra.mxu0 0
  %2039 = vmatprep.subr.bf16.mxu0 0
  %2040 = vmatpush1.bf16.msra.mxu0 0
  %2041 = vmatprep.subr.bf16.mxu0 0
  %2042 = vmatpush1.bf16.msra.mxu0 0
  %2043 = vmatprep.subr.bf16.mxu0 0
  %2044 = vmatpush1.bf16.msra.mxu0 0
  %2045 = vmatprep.subr.bf16.mxu0 0
  %2046 = vmatpush1.bf16.msra.mxu0 0
  %2047 = vmatprep.subr.bf16.mxu0 0
  %2048 = vmatpush1.bf16.msra.mxu0 0
  %2049 = vmatprep.subr.bf16.mxu0 0
  %2050 = vmatpush1.bf16.msra.mxu0 0
  %2051 = vmatprep.subr.bf16.mxu0 0
  %2052 = vmatpush1.bf16.msra.mxu0 0
  %2053 = vmatprep.subr.bf16.mxu0 0
  %2054 = vmatpush1.bf16.msra.mxu0 0
  %2055 = vmatprep.mubr.bf16.mxu0 0
  %2056 = vmatmul.mubr.bf16.gmra.mrb[0].mxu0 %v2018
  %v2057 = vpop.f32.mrb[0].mxu0
  %v2058 = vadd.f32 %v1993, %v2057
  %v2059 = vpop.f32.mrb[0].mxu0
  %v2060 = vpop.f32.mrb[0].mxu0
  %v2061 = vadd.f32 %v1997, %v2060
  %v2062 = vpop.f32.mrb[0].mxu0
  %2063 = vmatprep.mubr.bf16.mxu0 0
  %2064 = vmatmul.mubr.bf16.gmra.mrb[0].mxu0 %v2021
  %v2065 = vpop.f32.mrb[0].mxu0
  %v2066 = vadd.f32 %v2001, %v2065
  %v2067 = vpop.f32.mrb[0].mxu0
  %v2068 = vpop.f32.mrb[0].mxu0
  %v2069 = vadd.f32 %v2005, %v2068
  %v2070 = vpop.f32.mrb[0].mxu0
  %2071 = vdwg.mxu0
  %v2072 = vmax.f32 %v2058, 0.0
  %v2073 = vmax.f32 %v2061, 0.0
  %v2074 = vmax.f32 %v2066, 0.0
  %v2075 = vmax.f32 %v2069, 0.0
  %2080 = vrot.lane.b32.xlu0 %v2072, 1
  %v2081 = vpop.permute.xlu0 %2080
  %2082 = vrot.lane.b32.xlu0 %v2073, 1
  %v2083 = vpop.permute.xlu0 %2082
  %2084 = vrot.lane.b32.xlu0 %v2074, 1
  %v2085 = vpop.permute.xlu0 %2084
  %2086 = vrot.lane.b32.xlu0 %v2075, 1
  %v2087 = vpop.permute.xlu0 %2086
  %v2092 = vsel %vm1148, 0.0, %v2081
  %v2093 = vsel %vm1148, 0.0, %v2083
  %v2094 = vsel %vm1148, 0.0, %v2085
  %v2095 = vsel %vm1148, 0.0, %v2087
  %2096 = vrot.lane.b32.xlu0 %v2072, 127
  %v2097 = vpop.permute.xlu0 %2096
  %2098 = vrot.lane.b32.xlu0 %v2073, 127
  %v2099 = vpop.permute.xlu0 %2098
  %2100 = vrot.lane.b32.xlu0 %v2074, 127
  %v2101 = vpop.permute.xlu0 %2100
  %2102 = vrot.lane.b32.xlu0 %v2075, 127
  %v2103 = vpop.permute.xlu0 %2102
  %vm2108 = vcmask 121856
  %v2109 = vsel %vm2108, %v2097, 0.0
  %v2110 = vsel %vm2108, %v2099, 0.0
  %v2111 = vsel %vm2108, %v2101, 0.0
  %v2112 = vsel %vm2108, %v2103, 0.0
  %2113 = vset.pattern.permute.xlu0 19
  %2114 = vperm.xlu0 %2113, %v48
  %v2115 = vpop.permute.xlu0 %2114
  %2117 = vset.pattern.permute.xlu0 19
  %2118 = vperm.xlu0 %2117, %v49
  %v2119 = vpop.permute.xlu0 %2118
  %2121 = vset.pattern.permute.xlu0 19
  %2122 = vperm.xlu0 %2121, %v50
  %v2123 = vpop.permute.xlu0 %2122
  %2125 = vset.pattern.permute.xlu0 19
  %2126 = vperm.xlu0 %2125, %v51
  %v2127 = vpop.permute.xlu0 %2126
  %v2129 = vmul.f32 %v2072, %v2115
  %v2130 = vmul.f32 %v2073, %v2119
  %v2131 = vmul.f32 %v2074, %v2123
  %v2132 = vmul.f32 %v2075, %v2127
  %2133 = vset.pattern.permute.xlu0 18
  %2134 = vperm.xlu0 %2133, %v48
  %v2135 = vpop.permute.xlu0 %2134
  %2137 = vset.pattern.permute.xlu0 18
  %2138 = vperm.xlu0 %2137, %v49
  %v2139 = vpop.permute.xlu0 %2138
  %2141 = vset.pattern.permute.xlu0 18
  %2142 = vperm.xlu0 %2141, %v50
  %v2143 = vpop.permute.xlu0 %2142
  %2145 = vset.pattern.permute.xlu0 18
  %2146 = vperm.xlu0 %2145, %v51
  %v2147 = vpop.permute.xlu0 %2146
  %v2149 = vmul.f32 %v2092, %v2135
  %v2150 = vmul.f32 %v2093, %v2139
  %v2151 = vmul.f32 %v2094, %v2143
  %v2152 = vmul.f32 %v2095, %v2147
  %v2153 = vadd.f32 %v2129, %v2149
  %v2154 = vadd.f32 %v2130, %v2150
  %v2155 = vadd.f32 %v2131, %v2151
  %v2156 = vadd.f32 %v2132, %v2152
  %2157 = vset.pattern.permute.xlu0 20
  %2158 = vperm.xlu0 %2157, %v48
  %v2159 = vpop.permute.xlu0 %2158
  %2161 = vset.pattern.permute.xlu0 20
  %2162 = vperm.xlu0 %2161, %v49
  %v2163 = vpop.permute.xlu0 %2162
  %2165 = vset.pattern.permute.xlu0 20
  %2166 = vperm.xlu0 %2165, %v50
  %v2167 = vpop.permute.xlu0 %2166
  %2169 = vset.pattern.permute.xlu0 20
  %2170 = vperm.xlu0 %2169, %v51
  %v2171 = vpop.permute.xlu0 %2170
  %v2173 = vmul.f32 %v2109, %v2159
  %v2174 = vmul.f32 %v2110, %v2163
  %v2175 = vmul.f32 %v2111, %v2167
  %v2176 = vmul.f32 %v2112, %v2171
  %v2177 = vadd.f32 %v2153, %v2173
  %v2178 = vadd.f32 %v2154, %v2174
  %v2179 = vadd.f32 %v2155, %v2175
  %v2180 = vadd.f32 %v2156, %v2176
  %s2181 = scalar_lea.vmem %s5, 16
  %v2182 = vld [vmem:[%s2181] sm:$0xf]
  %v2183 = vld [vmem:[%s2181 + $0x4] sm:$0xf]
  %v2184 = vpack.c.bf16 %v2178, %v2177
  %v2185 = vpack.c.bf16 %v2180, %v2179
  %2186 = vset.pattern.permute.xlu0 6
  %2187 = vperm.xlu0 %2186, %v52
  %v2188 = vpop.permute.xlu0 %2187
  %2190 = vset.pattern.permute.xlu0 6
  %2191 = vperm.xlu0 %2190, %v53
  %v2192 = vpop.permute.xlu0 %2191
  %v2196 = vunpack.c.l.b16 %v2182
  %v2197 = vunpack.c.l.b16 %v2183
  %v2198 = vpack.c.b16 %v2197, %v2196
  %v2200 = vsel %vm1072, %v2198, 0
  %2202 = vmatprep.subr.bf16.mxu0 0
  %2203 = vmatpush1.bf16.msra.mxu0 %v2184
  %2204 = vmatprep.subr.bf16.mxu0 0
  %2205 = vmatpush1.bf16.msra.mxu0 %v2185
  %2206 = vmatprep.subr.bf16.mxu0 0
  %2207 = vmatpush1.bf16.msra.mxu0 0
  %2208 = vmatprep.subr.bf16.mxu0 0
  %2209 = vmatpush1.bf16.msra.mxu0 0
  %2210 = vmatprep.subr.bf16.mxu0 0
  %2211 = vmatpush1.bf16.msra.mxu0 0
  %2212 = vmatprep.subr.bf16.mxu0 0
  %2213 = vmatpush1.bf16.msra.mxu0 0
  %2214 = vmatprep.subr.bf16.mxu0 0
  %2215 = vmatpush1.bf16.msra.mxu0 0
  %2216 = vmatprep.subr.bf16.mxu0 0
  %2217 = vmatpush1.bf16.msra.mxu0 0
  %2218 = vmatprep.subr.bf16.mxu0 0
  %2219 = vmatpush1.bf16.msra.mxu0 0
  %2220 = vmatprep.subr.bf16.mxu0 0
  %2221 = vmatpush1.bf16.msra.mxu0 0
  %2222 = vmatprep.subr.bf16.mxu0 0
  %2223 = vmatpush1.bf16.msra.mxu0 0
  %2224 = vmatprep.subr.bf16.mxu0 0
  %2225 = vmatpush1.bf16.msra.mxu0 0
  %2226 = vmatprep.subr.bf16.mxu0 0
  %2227 = vmatpush1.bf16.msra.mxu0 0
  %2228 = vmatprep.subr.bf16.mxu0 0
  %2229 = vmatpush1.bf16.msra.mxu0 0
  %2230 = vmatprep.subr.bf16.mxu0 0
  %2231 = vmatpush1.bf16.msra.mxu0 0
  %2232 = vmatprep.subr.bf16.mxu0 0
  %2233 = vmatpush1.bf16.msra.mxu0 0
  %2234 = vmatprep.mubr.bf16.mxu0 0
  %2235 = vmatmul.mubr.bf16.gmra.mrb[0].mxu0 %v2200
  %v2236 = vpop.f32.mrb[0].mxu0
  %v2237 = vadd.f32 %v2188, %v2236
  %v2238 = vpop.f32.mrb[0].mxu0
  %v2239 = vpop.f32.mrb[0].mxu0
  %v2240 = vadd.f32 %v2192, %v2239
  %v2241 = vpop.f32.mrb[0].mxu0
  %2242 = vdwg.mxu0
  %v2243 = vmax.f32 %v2237, 0.0
  %v2244 = vmax.f32 %v2240, 0.0
  %2245 = vset.pattern.permute.xlu0 21
  %2246 = vperm.xlu0 %2245, %v48
  %v2247 = vpop.permute.xlu0 %2246
  %2249 = vset.pattern.permute.xlu0 21
  %2250 = vperm.xlu0 %2249, %v49
  %v2251 = vpop.permute.xlu0 %2250
  %2253 = vset.pattern.permute.xlu0 21
  %2254 = vperm.xlu0 %2253, %v50
  %v2255 = vpop.permute.xlu0 %2254
  %2257 = vset.pattern.permute.xlu0 21
  %2258 = vperm.xlu0 %2257, %v51
  %v2259 = vpop.permute.xlu0 %2258
  %v2261 = vmul.f32 %v2243, %v2247
  %v2262 = vmul.f32 %v2244, %v2251
  %v2263 = vmul.f32 %v2243, %v2255
  %v2264 = vmul.f32 %v2244, %v2259
  %v2265 = vpack.c.bf16 %v2262, %v2261
  %v2266 = vpack.c.bf16 %v2264, %v2263
  %2267 = vset.pattern.permute.xlu0 22
  %2268 = vperm.xlu0 %2267, %v48
  %v2269 = vpop.permute.xlu0 %2268
  %2271 = vset.pattern.permute.xlu0 22
  %2272 = vperm.xlu0 %2271, %v49
  %v2273 = vpop.permute.xlu0 %2272
  %2275 = vset.pattern.permute.xlu0 22
  %2276 = vperm.xlu0 %2275, %v50
  %v2277 = vpop.permute.xlu0 %2276
  %2279 = vset.pattern.permute.xlu0 22
  %2280 = vperm.xlu0 %2279, %v51
  %v2281 = vpop.permute.xlu0 %2280
  %v2283 = vmul.f32 %v2243, %v2269
  %v2284 = vmul.f32 %v2244, %v2273
  %v2285 = vmul.f32 %v2243, %v2277
  %v2286 = vmul.f32 %v2244, %v2281
  %v2287 = vpack.c.bf16 %v2284, %v2283
  %v2288 = vpack.c.bf16 %v2286, %v2285
  %2289 = vset.pattern.permute.xlu0 23
  %2290 = vperm.xlu0 %2289, %v48
  %v2291 = vpop.permute.xlu0 %2290
  %2293 = vset.pattern.permute.xlu0 23
  %2294 = vperm.xlu0 %2293, %v49
  %v2295 = vpop.permute.xlu0 %2294
  %2297 = vset.pattern.permute.xlu0 23
  %2298 = vperm.xlu0 %2297, %v50
  %v2299 = vpop.permute.xlu0 %2298
  %2301 = vset.pattern.permute.xlu0 23
  %2302 = vperm.xlu0 %2301, %v51
  %v2303 = vpop.permute.xlu0 %2302
  %v2305 = vmul.f32 %v2243, %v2291
  %v2306 = vmul.f32 %v2244, %v2295
  %v2307 = vmul.f32 %v2243, %v2299
  %v2308 = vmul.f32 %v2244, %v2303
  %v2309 = vpack.c.bf16 %v2306, %v2305
  %v2310 = vpack.c.bf16 %v2308, %v2307
  %2313 = vrot.lane.b32.xlu0 %v2287, 16
  %v2314 = vpop.permute.xlu0 %2313
  %2315 = vrot.lane.b32.xlu0 %v2288, 16
  %v2316 = vpop.permute.xlu0 %2315
  %2319 = vrot.lane.b32.xlu0 %v2309, 32
  %v2320 = vpop.permute.xlu0 %2319
  %2321 = vrot.lane.b32.xlu0 %v2310, 32
  %v2322 = vpop.permute.xlu0 %2321
  %v2325 = vsel %vm633, %v2265, %v2314
  %v2328 = vsel %vm633, %v2266, %v2316
  %v2330 = vsel %vm1072, %v2325, %v2320
  %v2332 = vsel %vm1072, %v2328, %v2322
  %v2333 = vld [vmem:[%s12] sm:$0xf]
  %v2334 = vld [vmem:[%s12 + $0x4] sm:$0xf]
  %v2335 = vld [vmem:[%s12 + $0x8] sm:$0xf]
  %v2336 = vld [vmem:[%s12 + $0xc] sm:$0xf]
  %v2337 = vld [vmem:[%s12 + $0x10] sm:$0xf]
  %v2338 = vld [vmem:[%s12 + $0x14] sm:$0xf]
  %v2345 = vunpack.c.l.b16 %v2333
  %v2346 = vunpack.c.l.b16 %v2334
  %v2347 = vunpack.c.l.b16 %v2335
  %v2348 = vunpack.c.l.b16 %v2336
  %v2349 = vunpack.c.l.b16 %v2337
  %v2350 = vunpack.c.l.b16 %v2338
  %v2351 = vpack.c.b16 %v2346, %v2345
  %v2352 = vpack.c.b16 %v2348, %v2347
  %v2353 = vpack.c.b16 %v2350, %v2349
  %vm2357 = vcmask 392192
  %v2358 = vsel %vm2357, %v2330, 0
  %v2360 = vsel %vm2357, %v2332, 0
  %2362 = vmatprep.subr.bf16.mxu0 0
  %2363 = vmatpush1.bf16.msra.mxu0 %v2351
  %2364 = vmatprep.subr.bf16.mxu0 0
  %2365 = vmatpush1.bf16.msra.mxu0 %v2352
  %2366 = vmatprep.subr.bf16.mxu0 0
  %2367 = vmatpush1.bf16.msra.mxu0 %v2353
  %2368 = vmatprep.subr.bf16.mxu0 0
  %2369 = vmatpush1.bf16.msra.mxu0 0
  %2370 = vmatprep.subr.bf16.mxu0 0
  %2371 = vmatpush1.bf16.msra.mxu0 0
  %2372 = vmatprep.subr.bf16.mxu0 0
  %2373 = vmatpush1.bf16.msra.mxu0 0
  %2374 = vmatprep.subr.bf16.mxu0 0
  %2375 = vmatpush1.bf16.msra.mxu0 0
  %2376 = vmatprep.subr.bf16.mxu0 0
  %2377 = vmatpush1.bf16.msra.mxu0 0
  %2378 = vmatprep.subr.bf16.mxu0 0
  %2379 = vmatpush1.bf16.msra.mxu0 0
  %2380 = vmatprep.subr.bf16.mxu0 0
  %2381 = vmatpush1.bf16.msra.mxu0 0
  %2382 = vmatprep.subr.bf16.mxu0 0
  %2383 = vmatpush1.bf16.msra.mxu0 0
  %2384 = vmatprep.subr.bf16.mxu0 0
  %2385 = vmatpush1.bf16.msra.mxu0 0
  %2386 = vmatprep.subr.bf16.mxu0 0
  %2387 = vmatpush1.bf16.msra.mxu0 0
  %2388 = vmatprep.subr.bf16.mxu0 0
  %2389 = vmatpush1.bf16.msra.mxu0 0
  %2390 = vmatprep.subr.bf16.mxu0 0
  %2391 = vmatpush1.bf16.msra.mxu0 0
  %2392 = vmatprep.subr.bf16.mxu0 0
  %2393 = vmatpush1.bf16.msra.mxu0 0
  %2394 = vmatprep.mubr.bf16.mxu0 0
  %2395 = vmatmul.mubr.bf16.gmra.mrb[0].mxu0 %v2358
  %v2396 = vpop.f32.mrb[0].mxu0
  %v2397 = vadd.f32 0.0, %v2396
  %v2398 = vpop.f32.mrb[0].mxu0
  %v2399 = vpop.f32.mrb[0].mxu0
  %v2400 = vadd.f32 0.0, %v2399
  %v2401 = vpop.f32.mrb[0].mxu0
  %2402 = vmatprep.mubr.bf16.mxu0 0
  %2403 = vmatmul.mubr.bf16.gmra.mrb[0].mxu0 %v2360
  %v2404 = vpop.f32.mrb[0].mxu0
  %v2405 = vadd.f32 0.0, %v2404
  %v2406 = vpop.f32.mrb[0].mxu0
  %v2407 = vpop.f32.mrb[0].mxu0
  %v2408 = vadd.f32 0.0, %v2407
  %v2409 = vpop.f32.mrb[0].mxu0
  %2410 = vdwg.mxu0
  %s2411 = scalar_lea.vmem %s4, 48
  %v2412 = vld [vmem:[%s2411] sm:$0xf]
  %v2413 = vld [vmem:[%s2411 + $0x4] sm:$0xf]
  %v2414 = vld [vmem:[%s2411 + $0x8] sm:$0xf]
  %v2415 = vld [vmem:[%s2411 + $0xc] sm:$0xf]
  %v2416 = vpack.c.bf16 %v2400, %v2397
  %v2417 = vpack.c.bf16 %v2408, %v2405
  %2418 = vset.pattern.permute.xlu0 7
  %2419 = vperm.xlu0 %2418, %v52
  %v2420 = vpop.permute.xlu0 %2419
  %2422 = vset.pattern.permute.xlu0 7
  %2423 = vperm.xlu0 %2422, %v53
  %v2424 = vpop.permute.xlu0 %2423
  %2426 = vset.pattern.permute.xlu0 7
  %2427 = vperm.xlu0 %2426, %v54
  %v2428 = vpop.permute.xlu0 %2427
  %2430 = vset.pattern.permute.xlu0 7
  %2431 = vperm.xlu0 %2430, %v55
  %v2432 = vpop.permute.xlu0 %2431
  %v2438 = vunpack.c.l.b16 %v2412
  %v2439 = vunpack.c.l.b16 %v2413
  %v2440 = vunpack.c.l.b16 %v2414
  %v2441 = vunpack.c.l.b16 %v2415
  %v2442 = vpack.c.b16 %v2439, %v2438
  %v2443 = vpack.c.b16 %v2441, %v2440
  %v2445 = vsel %vm1072, %v2442, 0
  %v2448 = vsel %vm1072, %v2443, 0
  %2450 = vmatprep.subr.bf16.mxu0 0
  %2451 = vmatpush1.bf16.msra.mxu0 %v2416
  %2452 = vmatprep.subr.bf16.mxu0 0
  %2453 = vmatpush1.bf16.msra.mxu0 %v2417
  %2454 = vmatprep.subr.bf16.mxu0 0
  %2455 = vmatpush1.bf16.msra.mxu0 0
  %2456 = vmatprep.subr.bf16.mxu0 0
  %2457 = vmatpush1.bf16.msra.mxu0 0
  %2458 = vmatprep.subr.bf16.mxu0 0
  %2459 = vmatpush1.bf16.msra.mxu0 0
  %2460 = vmatprep.subr.bf16.mxu0 0
  %2461 = vmatpush1.bf16.msra.mxu0 0
  %2462 = vmatprep.subr.bf16.mxu0 0
  %2463 = vmatpush1.bf16.msra.mxu0 0
  %2464 = vmatprep.subr.bf16.mxu0 0
  %2465 = vmatpush1.bf16.msra.mxu0 0
  %2466 = vmatprep.subr.bf16.mxu0 0
  %2467 = vmatpush1.bf16.msra.mxu0 0
  %2468 = vmatprep.subr.bf16.mxu0 0
  %2469 = vmatpush1.bf16.msra.mxu0 0
  %2470 = vmatprep.subr.bf16.mxu0 0
  %2471 = vmatpush1.bf16.msra.mxu0 0
  %2472 = vmatprep.subr.bf16.mxu0 0
  %2473 = vmatpush1.bf16.msra.mxu0 0
  %2474 = vmatprep.subr.bf16.mxu0 0
  %2475 = vmatpush1.bf16.msra.mxu0 0
  %2476 = vmatprep.subr.bf16.mxu0 0
  %2477 = vmatpush1.bf16.msra.mxu0 0
  %2478 = vmatprep.subr.bf16.mxu0 0
  %2479 = vmatpush1.bf16.msra.mxu0 0
  %2480 = vmatprep.subr.bf16.mxu0 0
  %2481 = vmatpush1.bf16.msra.mxu0 0
  %2482 = vmatprep.mubr.bf16.mxu0 0
  %2483 = vmatmul.mubr.bf16.gmra.mrb[0].mxu0 %v2445
  %v2484 = vpop.f32.mrb[0].mxu0
  %v2485 = vadd.f32 %v2420, %v2484
  %v2486 = vpop.f32.mrb[0].mxu0
  %v2487 = vpop.f32.mrb[0].mxu0
  %v2488 = vadd.f32 %v2424, %v2487
  %v2489 = vpop.f32.mrb[0].mxu0
  %2490 = vmatprep.mubr.bf16.mxu0 0
  %2491 = vmatmul.mubr.bf16.gmra.mrb[0].mxu0 %v2448
  %v2492 = vpop.f32.mrb[0].mxu0
  %v2493 = vadd.f32 %v2428, %v2492
  %v2494 = vpop.f32.mrb[0].mxu0
  %v2495 = vpop.f32.mrb[0].mxu0
  %v2496 = vadd.f32 %v2432, %v2495
  %v2497 = vpop.f32.mrb[0].mxu0
  %2498 = vdwg.mxu0
  %v2499 = vmax.f32 %v2485, 0.0
  %v2500 = vmax.f32 %v2488, 0.0
  %v2501 = vmax.f32 %v2493, 0.0
  %v2502 = vmax.f32 %v2496, 0.0
  %2507 = vrot.lane.b32.xlu0 %v2499, 1
  %v2508 = vpop.permute.xlu0 %2507
  %2509 = vrot.lane.b32.xlu0 %v2500, 1
  %v2510 = vpop.permute.xlu0 %2509
  %2511 = vrot.lane.b32.xlu0 %v2501, 1
  %v2512 = vpop.permute.xlu0 %2511
  %2513 = vrot.lane.b32.xlu0 %v2502, 1
  %v2514 = vpop.permute.xlu0 %2513
  %v2519 = vsel %vm1148, 0.0, %v2508
  %v2520 = vsel %vm1148, 0.0, %v2510
  %v2521 = vsel %vm1148, 0.0, %v2512
  %v2522 = vsel %vm1148, 0.0, %v2514
  %2523 = vrot.lane.b32.xlu0 %v2499, 127
  %v2524 = vpop.permute.xlu0 %2523
  %2525 = vrot.lane.b32.xlu0 %v2500, 127
  %v2526 = vpop.permute.xlu0 %2525
  %2527 = vrot.lane.b32.xlu0 %v2501, 127
  %v2528 = vpop.permute.xlu0 %2527
  %2529 = vrot.lane.b32.xlu0 %v2502, 127
  %v2530 = vpop.permute.xlu0 %2529
  %vm2535 = vcmask 56320
  %v2536 = vsel %vm2535, %v2524, 0.0
  %v2537 = vsel %vm2535, %v2526, 0.0
  %v2538 = vsel %vm2535, %v2528, 0.0
  %v2539 = vsel %vm2535, %v2530, 0.0
  %2540 = vset.pattern.permute.xlu0 25
  %2541 = vperm.xlu0 %2540, %v48
  %v2542 = vpop.permute.xlu0 %2541
  %2544 = vset.pattern.permute.xlu0 25
  %2545 = vperm.xlu0 %2544, %v49
  %v2546 = vpop.permute.xlu0 %2545
  %2548 = vset.pattern.permute.xlu0 25
  %2549 = vperm.xlu0 %2548, %v50
  %v2550 = vpop.permute.xlu0 %2549
  %2552 = vset.pattern.permute.xlu0 25
  %2553 = vperm.xlu0 %2552, %v51
  %v2554 = vpop.permute.xlu0 %2553
  %v2556 = vmul.f32 %v2499, %v2542
  %v2557 = vmul.f32 %v2500, %v2546
  %v2558 = vmul.f32 %v2501, %v2550
  %v2559 = vmul.f32 %v2502, %v2554
  %2560 = vset.pattern.permute.xlu0 24
  %2561 = vperm.xlu0 %2560, %v48
  %v2562 = vpop.permute.xlu0 %2561
  %2564 = vset.pattern.permute.xlu0 24
  %2565 = vperm.xlu0 %2564, %v49
  %v2566 = vpop.permute.xlu0 %2565
  %2568 = vset.pattern.permute.xlu0 24
  %2569 = vperm.xlu0 %2568, %v50
  %v2570 = vpop.permute.xlu0 %2569
  %2572 = vset.pattern.permute.xlu0 24
  %2573 = vperm.xlu0 %2572, %v51
  %v2574 = vpop.permute.xlu0 %2573
  %v2576 = vmul.f32 %v2519, %v2562
  %v2577 = vmul.f32 %v2520, %v2566
  %v2578 = vmul.f32 %v2521, %v2570
  %v2579 = vmul.f32 %v2522, %v2574
  %v2580 = vadd.f32 %v2556, %v2576
  %v2581 = vadd.f32 %v2557, %v2577
  %v2582 = vadd.f32 %v2558, %v2578
  %v2583 = vadd.f32 %v2559, %v2579
  %2584 = vset.pattern.permute.xlu0 26
  %2585 = vperm.xlu0 %2584, %v48
  %v2586 = vpop.permute.xlu0 %2585
  %2588 = vset.pattern.permute.xlu0 26
  %2589 = vperm.xlu0 %2588, %v49
  %v2590 = vpop.permute.xlu0 %2589
  %2592 = vset.pattern.permute.xlu0 26
  %2593 = vperm.xlu0 %2592, %v50
  %v2594 = vpop.permute.xlu0 %2593
  %2596 = vset.pattern.permute.xlu0 26
  %2597 = vperm.xlu0 %2596, %v51
  %v2598 = vpop.permute.xlu0 %2597
  %v2600 = vmul.f32 %v2536, %v2586
  %v2601 = vmul.f32 %v2537, %v2590
  %v2602 = vmul.f32 %v2538, %v2594
  %v2603 = vmul.f32 %v2539, %v2598
  %v2604 = vadd.f32 %v2580, %v2600
  %v2605 = vadd.f32 %v2581, %v2601
  %v2606 = vadd.f32 %v2582, %v2602
  %v2607 = vadd.f32 %v2583, %v2603
  %s2608 = scalar_lea.vmem %s5, 24
  %v2609 = vld [vmem:[%s2608] sm:$0xf]
  %v2610 = vld [vmem:[%s2608 + $0x4] sm:$0xf]
  %v2611 = vpack.c.bf16 %v2605, %v2604
  %v2612 = vpack.c.bf16 %v2607, %v2606
  %2613 = vset.pattern.permute.xlu0 8
  %2614 = vperm.xlu0 %2613, %v52
  %v2615 = vpop.permute.xlu0 %2614
  %2617 = vset.pattern.permute.xlu0 8
  %2618 = vperm.xlu0 %2617, %v53
  %v2619 = vpop.permute.xlu0 %2618
  %v2623 = vunpack.c.l.b16 %v2609
  %v2624 = vunpack.c.l.b16 %v2610
  %v2625 = vpack.c.b16 %v2624, %v2623
  %v2627 = vsel %vm1072, %v2625, 0
  %2629 = vmatprep.subr.bf16.mxu0 0
  %2630 = vmatpush1.bf16.msra.mxu0 %v2611
  %2631 = vmatprep.subr.bf16.mxu0 0
  %2632 = vmatpush1.bf16.msra.mxu0 %v2612
  %2633 = vmatprep.subr.bf16.mxu0 0
  %2634 = vmatpush1.bf16.msra.mxu0 0
  %2635 = vmatprep.subr.bf16.mxu0 0
  %2636 = vmatpush1.bf16.msra.mxu0 0
  %2637 = vmatprep.subr.bf16.mxu0 0
  %2638 = vmatpush1.bf16.msra.mxu0 0
  %2639 = vmatprep.subr.bf16.mxu0 0
  %2640 = vmatpush1.bf16.msra.mxu0 0
  %2641 = vmatprep.subr.bf16.mxu0 0
  %2642 = vmatpush1.bf16.msra.mxu0 0
  %2643 = vmatprep.subr.bf16.mxu0 0
  %2644 = vmatpush1.bf16.msra.mxu0 0
  %2645 = vmatprep.subr.bf16.mxu0 0
  %2646 = vmatpush1.bf16.msra.mxu0 0
  %2647 = vmatprep.subr.bf16.mxu0 0
  %2648 = vmatpush1.bf16.msra.mxu0 0
  %2649 = vmatprep.subr.bf16.mxu0 0
  %2650 = vmatpush1.bf16.msra.mxu0 0
  %2651 = vmatprep.subr.bf16.mxu0 0
  %2652 = vmatpush1.bf16.msra.mxu0 0
  %2653 = vmatprep.subr.bf16.mxu0 0
  %2654 = vmatpush1.bf16.msra.mxu0 0
  %2655 = vmatprep.subr.bf16.mxu0 0
  %2656 = vmatpush1.bf16.msra.mxu0 0
  %2657 = vmatprep.subr.bf16.mxu0 0
  %2658 = vmatpush1.bf16.msra.mxu0 0
  %2659 = vmatprep.subr.bf16.mxu0 0
  %2660 = vmatpush1.bf16.msra.mxu0 0
  %2661 = vmatprep.mubr.bf16.mxu0 0
  %2662 = vmatmul.mubr.bf16.gmra.mrb[0].mxu0 %v2627
  %v2663 = vpop.f32.mrb[0].mxu0
  %v2664 = vadd.f32 %v2615, %v2663
  %v2665 = vpop.f32.mrb[0].mxu0
  %v2666 = vpop.f32.mrb[0].mxu0
  %v2667 = vadd.f32 %v2619, %v2666
  %v2668 = vpop.f32.mrb[0].mxu0
  %2669 = vdwg.mxu0
  %v2670 = vmax.f32 %v2664, 0.0
  %v2671 = vmax.f32 %v2667, 0.0
  %2672 = vset.pattern.permute.xlu0 27
  %2673 = vperm.xlu0 %2672, %v48
  %v2674 = vpop.permute.xlu0 %2673
  %2676 = vset.pattern.permute.xlu0 27
  %2677 = vperm.xlu0 %2676, %v49
  %v2678 = vpop.permute.xlu0 %2677
  %2680 = vset.pattern.permute.xlu0 27
  %2681 = vperm.xlu0 %2680, %v50
  %v2682 = vpop.permute.xlu0 %2681
  %2684 = vset.pattern.permute.xlu0 27
  %2685 = vperm.xlu0 %2684, %v51
  %v2686 = vpop.permute.xlu0 %2685
  %v2688 = vmul.f32 %v2670, %v2674
  %v2689 = vmul.f32 %v2671, %v2678
  %v2690 = vmul.f32 %v2670, %v2682
  %v2691 = vmul.f32 %v2671, %v2686
  %v2692 = vpack.c.bf16 %v2689, %v2688
  %v2693 = vpack.c.bf16 %v2691, %v2690
  %2694 = vset.pattern.permute.xlu0 28
  %2695 = vperm.xlu0 %2694, %v48
  %v2696 = vpop.permute.xlu0 %2695
  %2698 = vset.pattern.permute.xlu0 28
  %2699 = vperm.xlu0 %2698, %v49
  %v2700 = vpop.permute.xlu0 %2699
  %2702 = vset.pattern.permute.xlu0 28
  %2703 = vperm.xlu0 %2702, %v50
  %v2704 = vpop.permute.xlu0 %2703
  %2706 = vset.pattern.permute.xlu0 28
  %2707 = vperm.xlu0 %2706, %v51
  %v2708 = vpop.permute.xlu0 %2707
  %v2710 = vmul.f32 %v2670, %v2696
  %v2711 = vmul.f32 %v2671, %v2700
  %v2712 = vmul.f32 %v2670, %v2704
  %v2713 = vmul.f32 %v2671, %v2708
  %v2714 = vpack.c.bf16 %v2711, %v2710
  %v2715 = vpack.c.bf16 %v2713, %v2712
  %2716 = vset.pattern.permute.xlu0 29
  %2717 = vperm.xlu0 %2716, %v48
  %v2718 = vpop.permute.xlu0 %2717
  %2720 = vset.pattern.permute.xlu0 29
  %2721 = vperm.xlu0 %2720, %v49
  %v2722 = vpop.permute.xlu0 %2721
  %2724 = vset.pattern.permute.xlu0 29
  %2725 = vperm.xlu0 %2724, %v50
  %v2726 = vpop.permute.xlu0 %2725
  %2728 = vset.pattern.permute.xlu0 29
  %2729 = vperm.xlu0 %2728, %v51
  %v2730 = vpop.permute.xlu0 %2729
  %v2732 = vmul.f32 %v2670, %v2718
  %v2733 = vmul.f32 %v2671, %v2722
  %v2734 = vmul.f32 %v2670, %v2726
  %v2735 = vmul.f32 %v2671, %v2730
  %v2736 = vpack.c.bf16 %v2733, %v2732
  %v2737 = vpack.c.bf16 %v2735, %v2734
  %2740 = vrot.lane.b32.xlu0 %v2714, 8
  %v2741 = vpop.permute.xlu0 %2740
  %2742 = vrot.lane.b32.xlu0 %v2715, 8
  %v2743 = vpop.permute.xlu0 %2742
  %2746 = vrot.lane.b32.xlu0 %v2736, 16
  %v2747 = vpop.permute.xlu0 %2746
  %2748 = vrot.lane.b32.xlu0 %v2737, 16
  %v2749 = vpop.permute.xlu0 %2748
  %vm2750 = vcmask 64512
  %v2753 = vsel %vm2750, %v2692, %v2741
  %v2756 = vsel %vm2750, %v2693, %v2743
  %v2758 = vsel %vm633, %v2753, %v2747
  %v2760 = vsel %vm633, %v2756, %v2749
  %v2761 = vld [vmem:[%s13] sm:$0xf]
  %v2762 = vld [vmem:[%s13 + $0x4] sm:$0xf]
  %v2763 = vld [vmem:[%s13 + $0x8] sm:$0xf]
  %v2767 = vunpack.c.l.b16 %v2761
  %v2768 = vunpack.c.l.b16 %v2762
  %v2769 = vunpack.c.l.b16 %v2763
  %v2770 = vpack.c.b16 %v2768, %v2767
  %v2771 = vpack.c.b16 %v2769, %v2769
  %vm2773 = vcmask 195584
  %v2774 = vsel %vm2773, %v2758, 0
  %v2776 = vsel %vm2773, %v2760, 0
  %vm2778 = vcmask 1043456
  %v2780 = vsel %vm2778, %v2771, 0
  %2782 = vmatprep.subr.bf16.mxu0 0
  %2783 = vmatpush1.bf16.msra.mxu0 %v2770
  %2784 = vmatprep.subr.bf16.mxu0 0
  %2785 = vmatpush1.bf16.msra.mxu0 %v2780
  %2786 = vmatprep.subr.bf16.mxu0 0
  %2787 = vmatpush1.bf16.msra.mxu0 0
  %2788 = vmatprep.subr.bf16.mxu0 0
  %2789 = vmatpush1.bf16.msra.mxu0 0
  %2790 = vmatprep.subr.bf16.mxu0 0
  %2791 = vmatpush1.bf16.msra.mxu0 0
  %2792 = vmatprep.subr.bf16.mxu0 0
  %2793 = vmatpush1.bf16.msra.mxu0 0
  %2794 = vmatprep.subr.bf16.mxu0 0
  %2795 = vmatpush1.bf16.msra.mxu0 0
  %2796 = vmatprep.subr.bf16.mxu0 0
  %2797 = vmatpush1.bf16.msra.mxu0 0
  %2798 = vmatprep.subr.bf16.mxu0 0
  %2799 = vmatpush1.bf16.msra.mxu0 0
  %2800 = vmatprep.subr.bf16.mxu0 0
  %2801 = vmatpush1.bf16.msra.mxu0 0
  %2802 = vmatprep.subr.bf16.mxu0 0
  %2803 = vmatpush1.bf16.msra.mxu0 0
  %2804 = vmatprep.subr.bf16.mxu0 0
  %2805 = vmatpush1.bf16.msra.mxu0 0
  %2806 = vmatprep.subr.bf16.mxu0 0
  %2807 = vmatpush1.bf16.msra.mxu0 0
  %2808 = vmatprep.subr.bf16.mxu0 0
  %2809 = vmatpush1.bf16.msra.mxu0 0
  %2810 = vmatprep.subr.bf16.mxu0 0
  %2811 = vmatpush1.bf16.msra.mxu0 0
  %2812 = vmatprep.subr.bf16.mxu0 0
  %2813 = vmatpush1.bf16.msra.mxu0 0
  %2814 = vmatprep.mubr.bf16.mxu0 0
  %2815 = vmatmul.mubr.bf16.gmra.mrb[0].mxu0 %v2774
  %v2816 = vpop.f32.mrb[0].mxu0
  %v2817 = vadd.f32 0.0, %v2816
  %v2818 = vpop.f32.mrb[0].mxu0
  %v2819 = vpop.f32.mrb[0].mxu0
  %v2820 = vadd.f32 0.0, %v2819
  %v2821 = vpop.f32.mrb[0].mxu0
  %2822 = vmatprep.mubr.bf16.mxu0 0
  %2823 = vmatmul.mubr.bf16.gmra.mrb[0].mxu0 %v2776
  %v2824 = vpop.f32.mrb[0].mxu0
  %v2825 = vadd.f32 0.0, %v2824
  %v2826 = vpop.f32.mrb[0].mxu0
  %v2827 = vpop.f32.mrb[0].mxu0
  %v2828 = vadd.f32 0.0, %v2827
  %v2829 = vpop.f32.mrb[0].mxu0
  %2830 = vdwg.mxu0
  %s2831 = scalar_lea.vmem %s4, 64
  %v2832 = vld [vmem:[%s2831] sm:$0xf]
  %v2833 = vld [vmem:[%s2831 + $0x4] sm:$0xf]
  %v2834 = vld [vmem:[%s2831 + $0x8] sm:$0xf]
  %v2835 = vld [vmem:[%s2831 + $0xc] sm:$0xf]
  %v2836 = vpack.c.bf16 %v2820, %v2817
  %v2837 = vpack.c.bf16 %v2828, %v2825
  %2838 = vset.pattern.permute.xlu0 9
  %2839 = vperm.xlu0 %2838, %v52
  %v2840 = vpop.permute.xlu0 %2839
  %2842 = vset.pattern.permute.xlu0 9
  %2843 = vperm.xlu0 %2842, %v53
  %v2844 = vpop.permute.xlu0 %2843
  %2846 = vset.pattern.permute.xlu0 9
  %2847 = vperm.xlu0 %2846, %v54
  %v2848 = vpop.permute.xlu0 %2847
  %2850 = vset.pattern.permute.xlu0 9
  %2851 = vperm.xlu0 %2850, %v55
  %v2852 = vpop.permute.xlu0 %2851
  %v2858 = vunpack.c.l.b16 %v2832
  %v2859 = vunpack.c.l.b16 %v2833
  %v2860 = vunpack.c.l.b16 %v2834
  %v2861 = vunpack.c.l.b16 %v2835
  %v2862 = vpack.c.b16 %v2859, %v2858
  %v2863 = vpack.c.b16 %v2861, %v2860
  %v2865 = vsel %vm1072, %v2862, 0
  %v2868 = vsel %vm1072, %v2863, 0
  %2870 = vmatprep.subr.bf16.mxu0 0
  %2871 = vmatpush1.bf16.msra.mxu0 %v2836
  %2872 = vmatprep.subr.bf16.mxu0 0
  %2873 = vmatpush1.bf16.msra.mxu0 %v2837
  %2874 = vmatprep.subr.bf16.mxu0 0
  %2875 = vmatpush1.bf16.msra.mxu0 0
  %2876 = vmatprep.subr.bf16.mxu0 0
  %2877 = vmatpush1.bf16.msra.mxu0 0
  %2878 = vmatprep.subr.bf16.mxu0 0
  %2879 = vmatpush1.bf16.msra.mxu0 0
  %2880 = vmatprep.subr.bf16.mxu0 0
  %2881 = vmatpush1.bf16.msra.mxu0 0
  %2882 = vmatprep.subr.bf16.mxu0 0
  %2883 = vmatpush1.bf16.msra.mxu0 0
  %2884 = vmatprep.subr.bf16.mxu0 0
  %2885 = vmatpush1.bf16.msra.mxu0 0
  %2886 = vmatprep.subr.bf16.mxu0 0
  %2887 = vmatpush1.bf16.msra.mxu0 0
  %2888 = vmatprep.subr.bf16.mxu0 0
  %2889 = vmatpush1.bf16.msra.mxu0 0
  %2890 = vmatprep.subr.bf16.mxu0 0
  %2891 = vmatpush1.bf16.msra.mxu0 0
  %2892 = vmatprep.subr.bf16.mxu0 0
  %2893 = vmatpush1.bf16.msra.mxu0 0
  %2894 = vmatprep.subr.bf16.mxu0 0
  %2895 = vmatpush1.bf16.msra.mxu0 0
  %2896 = vmatprep.subr.bf16.mxu0 0
  %2897 = vmatpush1.bf16.msra.mxu0 0
  %2898 = vmatprep.subr.bf16.mxu0 0
  %2899 = vmatpush1.bf16.msra.mxu0 0
  %2900 = vmatprep.subr.bf16.mxu0 0
  %2901 = vmatpush1.bf16.msra.mxu0 0
  %2902 = vmatprep.mubr.bf16.mxu0 0
  %2903 = vmatmul.mubr.bf16.gmra.mrb[0].mxu0 %v2865
  %v2904 = vpop.f32.mrb[0].mxu0
  %v2905 = vadd.f32 %v2840, %v2904
  %v2906 = vpop.f32.mrb[0].mxu0
  %v2907 = vpop.f32.mrb[0].mxu0
  %v2908 = vadd.f32 %v2844, %v2907
  %v2909 = vpop.f32.mrb[0].mxu0
  %2910 = vmatprep.mubr.bf16.mxu0 0
  %2911 = vmatmul.mubr.bf16.gmra.mrb[0].mxu0 %v2868
  %v2912 = vpop.f32.mrb[0].mxu0
  %v2913 = vadd.f32 %v2848, %v2912
  %v2914 = vpop.f32.mrb[0].mxu0
  %v2915 = vpop.f32.mrb[0].mxu0
  %v2916 = vadd.f32 %v2852, %v2915
  %v2917 = vpop.f32.mrb[0].mxu0
  %2918 = vdwg.mxu0
  %v2919 = vmax.f32 %v2905, 0.0
  %v2920 = vmax.f32 %v2908, 0.0
  %v2921 = vmax.f32 %v2913, 0.0
  %v2922 = vmax.f32 %v2916, 0.0
  %2927 = vrot.lane.b32.xlu0 %v2919, 1
  %v2928 = vpop.permute.xlu0 %2927
  %2929 = vrot.lane.b32.xlu0 %v2920, 1
  %v2930 = vpop.permute.xlu0 %2929
  %2931 = vrot.lane.b32.xlu0 %v2921, 1
  %v2932 = vpop.permute.xlu0 %2931
  %2933 = vrot.lane.b32.xlu0 %v2922, 1
  %v2934 = vpop.permute.xlu0 %2933
  %v2939 = vsel %vm1148, 0.0, %v2928
  %v2940 = vsel %vm1148, 0.0, %v2930
  %v2941 = vsel %vm1148, 0.0, %v2932
  %v2942 = vsel %vm1148, 0.0, %v2934
  %2943 = vrot.lane.b32.xlu0 %v2919, 127
  %v2944 = vpop.permute.xlu0 %2943
  %2945 = vrot.lane.b32.xlu0 %v2920, 127
  %v2946 = vpop.permute.xlu0 %2945
  %2947 = vrot.lane.b32.xlu0 %v2921, 127
  %v2948 = vpop.permute.xlu0 %2947
  %2949 = vrot.lane.b32.xlu0 %v2922, 127
  %v2950 = vpop.permute.xlu0 %2949
  %vm2955 = vcmask 23552
  %v2956 = vsel %vm2955, %v2944, 0.0
  %v2957 = vsel %vm2955, %v2946, 0.0
  %v2958 = vsel %vm2955, %v2948, 0.0
  %v2959 = vsel %vm2955, %v2950, 0.0
  %2960 = vset.pattern.permute.xlu0 31
  %2961 = vperm.xlu0 %2960, %v48
  %v2962 = vpop.permute.xlu0 %2961
  %2964 = vset.pattern.permute.xlu0 31
  %2965 = vperm.xlu0 %2964, %v49
  %v2966 = vpop.permute.xlu0 %2965
  %2968 = vset.pattern.permute.xlu0 31
  %2969 = vperm.xlu0 %2968, %v50
  %v2970 = vpop.permute.xlu0 %2969
  %2972 = vset.pattern.permute.xlu0 31
  %2973 = vperm.xlu0 %2972, %v51
  %v2974 = vpop.permute.xlu0 %2973
  %v2976 = vmul.f32 %v2919, %v2962
  %v2977 = vmul.f32 %v2920, %v2966
  %v2978 = vmul.f32 %v2921, %v2970
  %v2979 = vmul.f32 %v2922, %v2974
  %2980 = vset.pattern.permute.xlu0 30
  %2981 = vperm.xlu0 %2980, %v48
  %v2982 = vpop.permute.xlu0 %2981
  %2984 = vset.pattern.permute.xlu0 30
  %2985 = vperm.xlu0 %2984, %v49
  %v2986 = vpop.permute.xlu0 %2985
  %2988 = vset.pattern.permute.xlu0 30
  %2989 = vperm.xlu0 %2988, %v50
  %v2990 = vpop.permute.xlu0 %2989
  %2992 = vset.pattern.permute.xlu0 30
  %2993 = vperm.xlu0 %2992, %v51
  %v2994 = vpop.permute.xlu0 %2993
  %v2996 = vmul.f32 %v2939, %v2982
  %v2997 = vmul.f32 %v2940, %v2986
  %v2998 = vmul.f32 %v2941, %v2990
  %v2999 = vmul.f32 %v2942, %v2994
  %v3000 = vadd.f32 %v2976, %v2996
  %v3001 = vadd.f32 %v2977, %v2997
  %v3002 = vadd.f32 %v2978, %v2998
  %v3003 = vadd.f32 %v2979, %v2999
  %3004 = vset.pattern.permute.xlu0 32
  %3005 = vperm.xlu0 %3004, %v48
  %v3006 = vpop.permute.xlu0 %3005
  %3008 = vset.pattern.permute.xlu0 32
  %3009 = vperm.xlu0 %3008, %v49
  %v3010 = vpop.permute.xlu0 %3009
  %3012 = vset.pattern.permute.xlu0 32
  %3013 = vperm.xlu0 %3012, %v50
  %v3014 = vpop.permute.xlu0 %3013
  %3016 = vset.pattern.permute.xlu0 32
  %3017 = vperm.xlu0 %3016, %v51
  %v3018 = vpop.permute.xlu0 %3017
  %v3020 = vmul.f32 %v2956, %v3006
  %v3021 = vmul.f32 %v2957, %v3010
  %v3022 = vmul.f32 %v2958, %v3014
  %v3023 = vmul.f32 %v2959, %v3018
  %v3024 = vadd.f32 %v3000, %v3020
  %v3025 = vadd.f32 %v3001, %v3021
  %v3026 = vadd.f32 %v3002, %v3022
  %v3027 = vadd.f32 %v3003, %v3023
  %s3028 = scalar_lea.vmem %s5, 32
  %v3029 = vld [vmem:[%s3028] sm:$0xf]
  %v3030 = vld [vmem:[%s3028 + $0x4] sm:$0xf]
  %v3031 = vpack.c.bf16 %v3025, %v3024
  %v3032 = vpack.c.bf16 %v3027, %v3026
  %3033 = vset.pattern.permute.xlu0 10
  %3034 = vperm.xlu0 %3033, %v52
  %v3035 = vpop.permute.xlu0 %3034
  %3037 = vset.pattern.permute.xlu0 10
  %3038 = vperm.xlu0 %3037, %v53
  %v3039 = vpop.permute.xlu0 %3038
  %v3043 = vunpack.c.l.b16 %v3029
  %v3044 = vunpack.c.l.b16 %v3030
  %v3045 = vpack.c.b16 %v3044, %v3043
  %v3047 = vsel %vm1072, %v3045, 0
  %3049 = vmatprep.subr.bf16.mxu0 0
  %3050 = vmatpush1.bf16.msra.mxu0 %v3031
  %3051 = vmatprep.subr.bf16.mxu0 0
  %3052 = vmatpush1.bf16.msra.mxu0 %v3032
  %3053 = vmatprep.subr.bf16.mxu0 0
  %3054 = vmatpush1.bf16.msra.mxu0 0
  %3055 = vmatprep.subr.bf16.mxu0 0
  %3056 = vmatpush1.bf16.msra.mxu0 0
  %3057 = vmatprep.subr.bf16.mxu0 0
  %3058 = vmatpush1.bf16.msra.mxu0 0
  %3059 = vmatprep.subr.bf16.mxu0 0
  %3060 = vmatpush1.bf16.msra.mxu0 0
  %3061 = vmatprep.subr.bf16.mxu0 0
  %3062 = vmatpush1.bf16.msra.mxu0 0
  %3063 = vmatprep.subr.bf16.mxu0 0
  %3064 = vmatpush1.bf16.msra.mxu0 0
  %3065 = vmatprep.subr.bf16.mxu0 0
  %3066 = vmatpush1.bf16.msra.mxu0 0
  %3067 = vmatprep.subr.bf16.mxu0 0
  %3068 = vmatpush1.bf16.msra.mxu0 0
  %3069 = vmatprep.subr.bf16.mxu0 0
  %3070 = vmatpush1.bf16.msra.mxu0 0
  %3071 = vmatprep.subr.bf16.mxu0 0
  %3072 = vmatpush1.bf16.msra.mxu0 0
  %3073 = vmatprep.subr.bf16.mxu0 0
  %3074 = vmatpush1.bf16.msra.mxu0 0
  %3075 = vmatprep.subr.bf16.mxu0 0
  %3076 = vmatpush1.bf16.msra.mxu0 0
  %3077 = vmatprep.subr.bf16.mxu0 0
  %3078 = vmatpush1.bf16.msra.mxu0 0
  %3079 = vmatprep.subr.bf16.mxu0 0
  %3080 = vmatpush1.bf16.msra.mxu0 0
  %3081 = vmatprep.mubr.bf16.mxu0 0
  %3082 = vmatmul.mubr.bf16.gmra.mrb[0].mxu0 %v3047
  %v3083 = vpop.f32.mrb[0].mxu0
  %v3084 = vadd.f32 %v3035, %v3083
  %v3085 = vpop.f32.mrb[0].mxu0
  %v3086 = vpop.f32.mrb[0].mxu0
  %v3087 = vadd.f32 %v3039, %v3086
  %v3088 = vpop.f32.mrb[0].mxu0
  %3089 = vdwg.mxu0
  %v3090 = vmax.f32 %v3084, 0.0
  %v3091 = vmax.f32 %v3087, 0.0
  %v3092 = vld [vmem:[%s6] sm:$0xf]
  %v3093 = vld [vmem:[%s6 + $0x4] sm:$0xf]
  %v3094 = vld [vmem:[%s6 + $0x8] sm:$0xf]
  %v3095 = vld [vmem:[%s6 + $0xc] sm:$0xf]
  %v3096 = vld [vmem:[%s6 + $0x10] sm:$0xf]
  %v3097 = vld [vmem:[%s6 + $0x14] sm:$0xf]
  %v3098 = vld [vmem:[%s6 + $0x18] sm:$0xf]
  %v3099 = vld [vmem:[%s6 + $0x1c] sm:$0xf]
  %v3100 = vpack.c.bf16 %v3091, %v3090
  %3101 = vset.pattern.permute.xlu0 11
  %3102 = vperm.xlu0 %3101, %v52
  %v3103 = vpop.permute.xlu0 %3102
  %3105 = vset.pattern.permute.xlu0 11
  %3106 = vperm.xlu0 %3105, %v53
  %v3107 = vpop.permute.xlu0 %3106
  %3109 = vset.pattern.permute.xlu0 11
  %3110 = vperm.xlu0 %3109, %v54
  %v3111 = vpop.permute.xlu0 %3110
  %3113 = vset.pattern.permute.xlu0 11
  %3114 = vperm.xlu0 %3113, %v55
  %v3115 = vpop.permute.xlu0 %3114
  %3118 = vset.pattern.permute.xlu0 11
  %3119 = vperm.xlu0 %3118, %v56
  %v3120 = vpop.permute.xlu0 %3119
  %3123 = vset.pattern.permute.xlu0 11
  %3124 = vperm.xlu0 %3123, %v57
  %v3125 = vpop.permute.xlu0 %3124
  %3128 = vset.pattern.permute.xlu0 11
  %3129 = vperm.xlu0 %3128, %v58
  %v3130 = vpop.permute.xlu0 %3129
  %3133 = vset.pattern.permute.xlu0 11
  %3134 = vperm.xlu0 %3133, %v59
  %v3135 = vpop.permute.xlu0 %3134
  %v3145 = vunpack.c.l.b16 %v3092
  %v3146 = vunpack.c.l.b16 %v3093
  %v3147 = vunpack.c.l.b16 %v3094
  %v3148 = vunpack.c.l.b16 %v3095
  %v3149 = vunpack.c.l.b16 %v3096
  %v3150 = vunpack.c.l.b16 %v3097
  %v3151 = vunpack.c.l.b16 %v3098
  %v3152 = vunpack.c.l.b16 %v3099
  %v3153 = vpack.c.b16 %v3146, %v3145
  %v3154 = vpack.c.b16 %v3148, %v3147
  %v3155 = vpack.c.b16 %v3150, %v3149
  %v3156 = vpack.c.b16 %v3152, %v3151
  %v3158 = vsel %vm633, %v3153, 0
  %v3161 = vsel %vm633, %v3154, 0
  %v3164 = vsel %vm633, %v3155, 0
  %v3167 = vsel %vm633, %v3156, 0
  %3169 = vmatprep.subr.bf16.mxu0 0
  %3170 = vmatpush1.bf16.msra.mxu0 %v3100
  %3171 = vmatprep.subr.bf16.mxu0 0
  %3172 = vmatpush1.bf16.msra.mxu0 0
  %3173 = vmatprep.subr.bf16.mxu0 0
  %3174 = vmatpush1.bf16.msra.mxu0 0
  %3175 = vmatprep.subr.bf16.mxu0 0
  %3176 = vmatpush1.bf16.msra.mxu0 0
  %3177 = vmatprep.subr.bf16.mxu0 0
  %3178 = vmatpush1.bf16.msra.mxu0 0
  %3179 = vmatprep.subr.bf16.mxu0 0
  %3180 = vmatpush1.bf16.msra.mxu0 0
  %3181 = vmatprep.subr.bf16.mxu0 0
  %3182 = vmatpush1.bf16.msra.mxu0 0
  %3183 = vmatprep.subr.bf16.mxu0 0
  %3184 = vmatpush1.bf16.msra.mxu0 0
  %3185 = vmatprep.subr.bf16.mxu0 0
  %3186 = vmatpush1.bf16.msra.mxu0 0
  %3187 = vmatprep.subr.bf16.mxu0 0
  %3188 = vmatpush1.bf16.msra.mxu0 0
  %3189 = vmatprep.subr.bf16.mxu0 0
  %3190 = vmatpush1.bf16.msra.mxu0 0
  %3191 = vmatprep.subr.bf16.mxu0 0
  %3192 = vmatpush1.bf16.msra.mxu0 0
  %3193 = vmatprep.subr.bf16.mxu0 0
  %3194 = vmatpush1.bf16.msra.mxu0 0
  %3195 = vmatprep.subr.bf16.mxu0 0
  %3196 = vmatpush1.bf16.msra.mxu0 0
  %3197 = vmatprep.subr.bf16.mxu0 0
  %3198 = vmatpush1.bf16.msra.mxu0 0
  %3199 = vmatprep.subr.bf16.mxu0 0
  %3200 = vmatpush1.bf16.msra.mxu0 0
  %3201 = vmatprep.mubr.bf16.mxu0 0
  %3202 = vmatmul.mubr.bf16.gmra.mrb[0].mxu0 %v3158
  %v3203 = vpop.f32.mrb[0].mxu0
  %v3204 = vadd.f32 %v3103, %v3203
  %v3205 = vpop.f32.mrb[0].mxu0
  %v3206 = vpop.f32.mrb[0].mxu0
  %v3207 = vadd.f32 %v3107, %v3206
  %v3208 = vpop.f32.mrb[0].mxu0
  %3209 = vmatprep.mubr.bf16.mxu0 0
  %3210 = vmatmul.mubr.bf16.gmra.mrb[0].mxu0 %v3161
  %v3211 = vpop.f32.mrb[0].mxu0
  %v3212 = vadd.f32 %v3111, %v3211
  %v3213 = vpop.f32.mrb[0].mxu0
  %v3214 = vpop.f32.mrb[0].mxu0
  %v3215 = vadd.f32 %v3115, %v3214
  %v3216 = vpop.f32.mrb[0].mxu0
  %3217 = vmatprep.mubr.bf16.mxu0 0
  %3218 = vmatmul.mubr.bf16.gmra.mrb[0].mxu0 %v3164
  %v3219 = vpop.f32.mrb[0].mxu0
  %v3220 = vadd.f32 %v3120, %v3219
  %v3221 = vpop.f32.mrb[0].mxu0
  %v3222 = vpop.f32.mrb[0].mxu0
  %v3223 = vadd.f32 %v3125, %v3222
  %v3224 = vpop.f32.mrb[0].mxu0
  %3225 = vmatprep.mubr.bf16.mxu0 0
  %3226 = vmatmul.mubr.bf16.gmra.mrb[0].mxu0 %v3167
  %v3227 = vpop.f32.mrb[0].mxu0
  %v3228 = vadd.f32 %v3130, %v3227
  %v3229 = vpop.f32.mrb[0].mxu0
  %v3230 = vpop.f32.mrb[0].mxu0
  %v3231 = vadd.f32 %v3135, %v3230
  %v3232 = vpop.f32.mrb[0].mxu0
  %3233 = vdwg.mxu0
  %v3234 = vmax.f32 %v3204, 0.0
  %v3235 = vmax.f32 %v3207, 0.0
  %v3236 = vmax.f32 %v3212, 0.0
  %v3237 = vmax.f32 %v3215, 0.0
  %v3238 = vmax.f32 %v3220, 0.0
  %v3239 = vmax.f32 %v3223, 0.0
  %v3240 = vmax.f32 %v3228, 0.0
  %v3241 = vmax.f32 %v3231, 0.0
  %vm3242 = vcmask 31744
  %v3243 = vsel %vm3242, %v3234, -inf
  %3244 = vmax.xlane.f32.xlu0 %v3243
  %v3245 = vpop.xlane.xlu0 %3244
  %v3246 = vsel %vm3242, %v3235, -inf
  %3247 = vmax.xlane.f32.xlu0 %v3246
  %v3248 = vpop.xlane.xlu0 %3247
  %v3249 = vsel %vm3242, %v3236, -inf
  %3250 = vmax.xlane.f32.xlu0 %v3249
  %v3251 = vpop.xlane.xlu0 %3250
  %v3252 = vsel %vm3242, %v3237, -inf
  %3253 = vmax.xlane.f32.xlu0 %v3252
  %v3254 = vpop.xlane.xlu0 %3253
  %v3255 = vsel %vm3242, %v3238, -inf
  %3256 = vmax.xlane.f32.xlu0 %v3255
  %v3257 = vpop.xlane.xlu0 %3256
  %v3258 = vsel %vm3242, %v3239, -inf
  %3259 = vmax.xlane.f32.xlu0 %v3258
  %v3260 = vpop.xlane.xlu0 %3259
  %v3261 = vsel %vm3242, %v3240, -inf
  %3262 = vmax.xlane.f32.xlu0 %v3261
  %v3263 = vpop.xlane.xlu0 %3262
  %v3264 = vsel %vm3242, %v3241, -inf
  %3265 = vmax.xlane.f32.xlu0 %v3264
  %v3266 = vpop.xlane.xlu0 %3265
  %v3267 = vld [vmem:[%s7] sm:$0x7]
  %v3268 = vpack.c.bf16 %v3248, %v3245
  %v3269 = vpack.c.bf16 %v3254, %v3251
  %v3270 = vpack.c.bf16 %v3260, %v3257
  %v3271 = vpack.c.bf16 %v3266, %v3263
  %3272 = vrot.lane.b32.xlu0 %v52, 116
  %v3273 = vpop.permute.xlu0 %3272
  %v3276 = vsel %vm1373, %v3267, 0
  %3278 = vmatprep.subr.bf16.mxu0 0
  %3279 = vmatpush1.bf16.msra.mxu0 %v3268
  %3280 = vmatprep.subr.bf16.mxu0 0
  %3281 = vmatpush1.bf16.msra.mxu0 %v3269
  %3282 = vmatprep.subr.bf16.mxu0 0
  %3283 = vmatpush1.bf16.msra.mxu0 %v3270
  %3284 = vmatprep.subr.bf16.mxu0 0
  %3285 = vmatpush1.bf16.msra.mxu0 %v3271
  %3286 = vmatprep.subr.bf16.mxu0 0
  %3287 = vmatpush1.bf16.msra.mxu0 0
  %3288 = vmatprep.subr.bf16.mxu0 0
  %3289 = vmatpush1.bf16.msra.mxu0 0
  %3290 = vmatprep.subr.bf16.mxu0 0
  %3291 = vmatpush1.bf16.msra.mxu0 0
  %3292 = vmatprep.subr.bf16.mxu0 0
  %3293 = vmatpush1.bf16.msra.mxu0 0
  %3294 = vmatprep.subr.bf16.mxu0 0
  %3295 = vmatpush1.bf16.msra.mxu0 0
  %3296 = vmatprep.subr.bf16.mxu0 0
  %3297 = vmatpush1.bf16.msra.mxu0 0
  %3298 = vmatprep.subr.bf16.mxu0 0
  %3299 = vmatpush1.bf16.msra.mxu0 0
  %3300 = vmatprep.subr.bf16.mxu0 0
  %3301 = vmatpush1.bf16.msra.mxu0 0
  %3302 = vmatprep.subr.bf16.mxu0 0
  %3303 = vmatpush1.bf16.msra.mxu0 0
  %3304 = vmatprep.subr.bf16.mxu0 0
  %3305 = vmatpush1.bf16.msra.mxu0 0
  %3306 = vmatprep.subr.bf16.mxu0 0
  %3307 = vmatpush1.bf16.msra.mxu0 0
  %3308 = vmatprep.subr.bf16.mxu0 0
  %3309 = vmatpush1.bf16.msra.mxu0 0
  %3310 = vmatprep.mubr.bf16.mxu0 0
  %3311 = vmatmul.mubr.bf16.gmra.mrb[0].mxu0 %v3276
  %v3312 = vpop.f32.mrb[0].mxu0
  %v3313 = vadd.f32 %v3273, %v3312
  %v3314 = vpop.f32.mrb[0].mxu0
  %v3315 = vpop.f32.mrb[0].mxu0
  %v3316 = vpop.f32.mrb[0].mxu0
  %3317 = vdwg.mxu0
  %vm3318 = vcmask 5120
  %3319 = vst.msk [vmem:[%s14] sm:$0x3f] %vm3318, %v3313
  // Predicated region
  $region58: #{cnn_forward.1} parent=0 // pred_check
    _
  $region59: #{cnn_forward.1} parent=0 // pred_check_branch
    %3321 = sbr.rel (0) target = $region61
  $region60: #{cnn_forward.1} parent=0 // pred_region
    _
  $region61: #{cnn_forward.1} parent=0 // pred_fallthru
    _
  // Predicated region
  $region62: #{cnn_forward.1} parent=0 // pred_check
    _
  $region63: #{cnn_forward.1} parent=0 // pred_check_branch
    %3323 = sbr.rel (0) target = $region65
  $region64: #{cnn_forward.1} parent=0 // pred_region
    _
  $region65: #{cnn_forward.1} parent=0 // pred_fallthru
    _

</llo_original>
